<compile_context>
chip_gen: v5e
topology: v5e:2x2
jax: 0.10.0
libtpu: 0.0.40
codegen_flags: <defaults>
</compile_context>

<pallas_src>
import jax
import jax.numpy as jnp
from jax import lax
from jax.experimental import pallas as pl
from jax.experimental.pallas import tpu as pltpu


def _fusion_gemm_kernel(xr_ref, xa_ref, wr_ref, wa_ref, b_ref, o_ref):
    # xr_ref, xa_ref: (TB, H*W*d)        bf16   (res / attn halves of the concat)
    # wr_ref, wa_ref: (H*W*d, H*W*Cout)  bf16   (unrolled conv+BN, per half)
    # b_ref:          (1, H*W*Cout)      f32    (folded bias, tiled over pixels)
    # o_ref:          (TB, H*W*Cout)     f32 or bf16
    acc = jnp.dot(xr_ref[...], wr_ref[...], preferred_element_type=jnp.float32)
    acc = acc + jnp.dot(xa_ref[...], wa_ref[...],
                        preferred_element_type=jnp.float32)
    o_ref[...] = jnp.maximum(acc + b_ref[...], 0.0).astype(o_ref.dtype)


def _pick_tb(B, max_tb=512):
    """Largest frame-block <= max_tb dividing B while keeping >= 2 grid steps
    (two v7x TensorCores both get work on the "parallel" axis).  Falls back to a
    single step (tb=B) when B is too small to split."""
    for t in (512, 256, 128, 64, 32, 16, 8):
        if t <= max_tb and B % t == 0 and B // t >= 2:
            return t
    return B


def fusion_block(x_res, x_attn, w_res, w_attn, bias, *, data_format="NCDHW",
                 tb=None, out_dtype=jnp.float32, single_buffer_weights=True):
    """Fused concat + (1,3,3) Conv3d + folded BN + ReLU.

    data_format:
      "NCDHW": x_res/x_attn are (N, d, T, H, W); output (N, Cout, T, H, W).
               Boundary transposes are done here only for PyTorch layout parity.
      "NDHWC": x_res/x_attn are (N, T, H, W, d); output (N, T, H, W, Cout).
               No HBM relayouts at all (preferred fast path).
    """
    if data_format == "NCDHW":
        N, d, T, H, W = x_res.shape
        # cast to bf16 BEFORE the relayout so the transpose moves half the bytes
        xr = jnp.transpose(x_res.astype(jnp.bfloat16), (0, 2, 3, 4, 1))
        xa = jnp.transpose(x_attn.astype(jnp.bfloat16), (0, 2, 3, 4, 1))
    elif data_format == "NDHWC":
        N, T, H, W, d = x_res.shape
        xr = x_res.astype(jnp.bfloat16)
        xa = x_attn.astype(jnp.bfloat16)
    else:
        raise ValueError(f"unknown data_format {data_format!r}")

    B = N * T                       # total frames
    Kh = H * W * d                  # contraction dim per input half
    Nout = bias.shape[0]            # H * W * Cout
    Cout = Nout // (H * W)

    xr = xr.reshape(B, Kh)
    xa = xa.reshape(B, Kh)
    wr = w_res if w_res.dtype == jnp.bfloat16 else w_res.astype(jnp.bfloat16)
    wa = w_attn if w_attn.dtype == jnp.bfloat16 else w_attn.astype(jnp.bfloat16)
    b2 = bias.reshape(1, Nout).astype(jnp.float32)

    if tb is None:
        tb = _pick_tb(B)
    assert B % tb == 0, f"frame count {B} must be divisible by tb={tb}"

    # VMEM estimate: double-buffered activations/output + resident weights.
    out_bytes = jnp.dtype(out_dtype).itemsize
    wbuf = 1 if single_buffer_weights else 2
    vmem_est = (2 * tb * Kh * 2 * 2
                + tb * Nout * out_bytes * 2
                + (2 * Kh * Nout * 2 + Nout * 4) * wbuf)
    vmem_limit = None
    if vmem_est > 12 * 1024 * 1024:      # above the conservative v5e scoped default
        vmem_limit = min(int(vmem_est * 3 // 2), 48 * 1024 * 1024)

    # Advisory cost: true conv FLOPs (3x3 taps), weights counted once.
    cost = pl.CostEstimate(
        flops=2 * B * H * W * 9 * (2 * d) * Cout,
        transcendentals=0,
        bytes_accessed=(xr.size + xa.size) * 2 + (wr.size + wa.size) * 2
        + Nout * 4 + B * Nout * out_bytes,
    )

    def run(single_buf):
        res_kw = {"pipeline_mode": pl.Buffered(1)} if single_buf else {}
        w_spec = pl.BlockSpec((Kh, Nout), lambda i: (0, 0), **res_kw)
        b_spec = pl.BlockSpec((1, Nout), lambda i: (0, 0), **res_kw)
        cparams = {"dimension_semantics": ("parallel",)}
        if vmem_limit is not None:
            cparams["vmem_limit_bytes"] = vmem_limit
        return pl.pallas_call(
            _fusion_gemm_kernel,
            out_shape=jax.ShapeDtypeStruct((B, Nout), out_dtype),
            grid_spec=pltpu.PrefetchScalarGridSpec(
                num_scalar_prefetch=0,
                grid=(B // tb,),
                in_specs=[
                    pl.BlockSpec((tb, Kh), lambda i: (i, 0)),
                    pl.BlockSpec((tb, Kh), lambda i: (i, 0)),
                    w_spec,            # grid-invariant, resident
                    w_spec,
                    b_spec,
                ],
                out_specs=pl.BlockSpec((tb, Nout), lambda i: (i, 0)),
            ),
            compiler_params=pltpu.CompilerParams(**cparams),
            cost_estimate=cost,
        )(xr, xa, wr, wa, b2)

    if single_buffer_weights:
        try:
            y = run(True)
        except Exception:
            # TODO(synk): pl.Buffered(1) unsupported in this build; fall back to
            # default double-buffered resident weights (correctness identical).
            y = run(False)
    else:
        y = run(False)

    y = y.reshape(N, T, H, W, Cout)
    if data_format == "NCDHW":
        return jnp.transpose(y, (0, 4, 1, 2, 3))
    return y


def make_params(d_model, H, W, key):
    """Synthetic Conv3d + BatchNorm3d params; BN folded; conv unrolled to a
    Toeplitz GEMM matrix split into res/attn halves and pre-cast to bf16.
    One-time parameter preprocessing."""
    Cin, Cout = 2 * d_model, d_model
    k0, k1, k2, k3, k4, k5 = jax.random.split(key, 6)
    w_conv = jax.random.normal(k0, (Cout, Cin, 1, 3, 3), jnp.float32) * 0.1
    b_conv = jax.random.normal(k1, (Cout,), jnp.float32) * 0.1
    gamma = 1.0 + 0.1 * jax.random.normal(k2, (Cout,), jnp.float32)
    beta = 0.1 * jax.random.normal(k3, (Cout,), jnp.float32)
    run_mean = 0.1 * jax.random.normal(k4, (Cout,), jnp.float32)
    run_var = jnp.abs(1.0 + 0.1 * jax.random.normal(k5, (Cout,), jnp.float32))
    eps = 1e-5
    scale = gamma / jnp.sqrt(run_var + eps)                      # (Cout,)
    w_fold = w_conv * scale[:, None, None, None, None]           # fold BN scale
    b_fold = (b_conv - run_mean) * scale + beta                  # fold BN shift
    w_hwio = jnp.transpose(w_fold[:, :, 0, :, :], (2, 3, 1, 0))  # (3,3,Cin,Cout)

    # Unrolled-conv (Toeplitz) matrix via the identity basis; SAME padding shows
    # up as structural zeros.  Row index = pixel*Cin + cin, col = pixel*Cout + cout.
    # TODO(synk): replace with a band-blocked weight (K = 3*W*Cin) once H*W grows.
    basis = jnp.eye(H * W * Cin, dtype=jnp.float32).reshape(H * W * Cin, H, W, Cin)
    w_dense = lax.conv_general_dilated(
        basis, w_hwio, window_strides=(1, 1), padding="SAME",
        dimension_numbers=("NHWC", "HWIO", "NHWC"))              # (HWCin, H, W, Cout)
    w_dense = w_dense.reshape(H * W, Cin, H * W * Cout)
    w_res = w_dense[:, :d_model, :].reshape(H * W * d_model, H * W * Cout)
    w_attn = w_dense[:, d_model:, :].reshape(H * W * d_model, H * W * Cout)
    # Pre-cast once here (not per fusion_block call).
    w_res = w_res.astype(jnp.bfloat16)
    w_attn = w_attn.astype(jnp.bfloat16)
    b_tiled = jnp.tile(b_fold, H * W).astype(jnp.float32)        # (H*W*Cout,)
    return (w_res, w_attn, b_tiled), (w_hwio, b_fold)


def reference(x_res, x_attn, w_hwio, b_folded):
    """Plain-JAX f32 reference (NHWC 2D conv per frame) for correctness check."""
    N, d, T, H, W = x_res.shape
    Cin = 2 * d
    x_all = jnp.concatenate([x_res, x_attn], axis=1)
    x_nhwc = jnp.transpose(x_all, (0, 2, 3, 4, 1)).reshape(N * T, H, W, Cin)
    y = lax.conv_general_dilated(
        x_nhwc, w_hwio, window_strides=(1, 1), padding="SAME",
        dimension_numbers=("NHWC", "HWIO", "NHWC"))
    y = jnp.maximum(y + b_folded, 0.0)
    y = y.reshape(N, T, H, W, d)
    return jnp.transpose(y, (0, 4, 1, 2, 3))


if __name__ == "__main__":
    d_model = 8
    N, T, H, W = 2, 32, 8, 8          # B = 64 frames; Kh = Nout = 512 lanes

    key = jax.random.PRNGKey(0)
    kx1, kx2, kw = jax.random.split(key, 3)
    x_res = jax.random.normal(kx1, (N, d_model, T, H, W), jnp.float32)
    x_attn = jax.random.normal(kx2, (N, d_model, T, H, W), jnp.float32)

    (w_res, w_attn, b_tiled), (w_hwio, b_fold) = make_params(d_model, H, W, kw)
    y_ref = reference(x_res, x_attn, w_hwio, b_fold)

    # Path 1: PyTorch-compatible NCDHW interface.  tb is auto-picked:
    # B=64 -> tb=32, grid=(2,) ("parallel" so both v7x TCs are used).
    y = fusion_block(x_res, x_attn, w_res, w_attn, b_tiled)
    y = jax.block_until_ready(y)
    assert y.shape == (N, d_model, T, H, W)
    # bf16 inputs/weights + f32 accumulation vs f32 reference -> loose tolerance.
    assert jnp.allclose(y, y_ref, atol=5e-2, rtol=5e-2), \
        float(jnp.max(jnp.abs(y - y_ref)))

    # Path 2: channels-last fast path (no HBM relayouts around the kernel) with
    # bf16 output.  The transposes below only simulate a channels-last caller.
    xr_cl = jnp.transpose(x_res, (0, 2, 3, 4, 1))
    xa_cl = jnp.transpose(x_attn, (0, 2, 3, 4, 1))
    y_cl = fusion_block(xr_cl, xa_cl, w_res, w_attn, b_tiled,
                        data_format="NDHWC", out_dtype=jnp.bfloat16)
    y_cl = jax.block_until_ready(y_cl)
    y_ref_cl = jnp.transpose(y_ref, (0, 2, 3, 4, 1))
    assert y_cl.shape == (N, T, H, W, d_model)
    assert jnp.allclose(y_cl.astype(jnp.float32), y_ref_cl, atol=5e-2, rtol=5e-2), \
        float(jnp.max(jnp.abs(y_cl.astype(jnp.float32) - y_ref_cl)))

    print("KERNEL_OK")
</pallas_src>

<mosaic_0001>
module attributes {stable_mosaic.version = 11 : i64} {
  func.func @_fusion_gemm_kernel(%arg0: i32, %arg1: memref<32x512xbf16, #tpu.memory_space<vmem>>, %arg2: memref<32x512xbf16, #tpu.memory_space<vmem>>, %arg3: memref<512x512xbf16, #tpu.memory_space<vmem>>, %arg4: memref<512x512xbf16, #tpu.memory_space<vmem>>, %arg5: memref<1x512xf32, #tpu.memory_space<vmem>>, %arg6: memref<32x512xf32, #tpu.memory_space<vmem>>) attributes {dimension_semantics = [#tpu.dimension_semantics<parallel>], iteration_bounds = array<i64: 2>, scalar_prefetch = 0 : i64, scratch_operands = 0 : i64, tpu.core_type = #tpu.core_type<tc>, window_params = [{transform_indices = @transform_0, window_bounds = array<i64: 32, 512>}, {transform_indices = @transform_1, window_bounds = array<i64: 32, 512>}, {pipeline_mode = #tpu.pipeline_mode<synchronous>, transform_indices = @transform_2, window_bounds = array<i64: 512, 512>}, {pipeline_mode = #tpu.pipeline_mode<synchronous>, transform_indices = @transform_3, window_bounds = array<i64: 512, 512>}, {pipeline_mode = #tpu.pipeline_mode<synchronous>, transform_indices = @transform_4, window_bounds = array<i64: 1, 512>}, {transform_indices = @transform_5, window_bounds = array<i64: 32, 512>}]} {
    %c0 = arith.constant 0 : index
    %c0_0 = arith.constant 0 : index
    %0 = vector.load %arg1[%c0, %c0_0] : memref<32x512xbf16, #tpu.memory_space<vmem>>, vector<32x512xbf16>
    %c0_1 = arith.constant 0 : index
    %c0_2 = arith.constant 0 : index
    %1 = vector.load %arg3[%c0_1, %c0_2] : memref<512x512xbf16, #tpu.memory_space<vmem>>, vector<512x512xbf16>
    %cst = arith.constant dense<0.000000e+00> : vector<32x512xf32>
    %2 = tpu.matmul %0, %1, %cst {dimension_numbers = #tpu.dot_dimension_numbers<[1], [0], [0], [1], [0, 0, 1, 1], [], []>} : vector<32x512xbf16>, vector<512x512xbf16>, vector<32x512xf32> -> vector<32x512xf32>
    %c0_3 = arith.constant 0 : index
    %c0_4 = arith.constant 0 : index
    %3 = vector.load %arg2[%c0_3, %c0_4] : memref<32x512xbf16, #tpu.memory_space<vmem>>, vector<32x512xbf16>
    %c0_5 = arith.constant 0 : index
    %c0_6 = arith.constant 0 : index
    %4 = vector.load %arg4[%c0_5, %c0_6] : memref<512x512xbf16, #tpu.memory_space<vmem>>, vector<512x512xbf16>
    %cst_7 = arith.constant dense<0.000000e+00> : vector<32x512xf32>
    %5 = tpu.matmul %3, %4, %cst_7 {dimension_numbers = #tpu.dot_dimension_numbers<[1], [0], [0], [1], [0, 0, 1, 1], [], []>} : vector<32x512xbf16>, vector<512x512xbf16>, vector<32x512xf32> -> vector<32x512xf32>
    %6 = arith.addf %2, %5 : vector<32x512xf32>
    %c0_8 = arith.constant 0 : index
    %c0_9 = arith.constant 0 : index
    %7 = vector.load %arg5[%c0_8, %c0_9] : memref<1x512xf32, #tpu.memory_space<vmem>>, vector<1x512xf32>
    %8 = vector.broadcast %7 : vector<1x512xf32> to vector<32x512xf32>
    %9 = arith.addf %6, %8 : vector<32x512xf32>
    %cst_10 = arith.constant 0.000000e+00 : f32
    %10 = vector.broadcast %cst_10 : f32 to vector<32x512xf32>
    %11 = arith.maximumf %9, %10 : vector<32x512xf32>
    %c0_11 = arith.constant 0 : index
    %c0_12 = arith.constant 0 : index
    %12 = vector.load %arg6[%c0_11, %c0_12] : memref<32x512xf32, #tpu.memory_space<vmem>>, vector<32x512xf32>
    tpu.vector_store %arg6[%c0_11, %c0_12], %11 {strides = array<i32>} : memref<32x512xf32, #tpu.memory_space<vmem>>, vector<32x512xf32>,
    return
  }
  func.func @transform_0(%arg0: i32) -> (i32, i32) {
    %c0_i32 = arith.constant 0 : i32
    %c0_i32_0 = arith.constant 0 : i32
    return %arg0, %c0_i32 : i32, i32
  }
  func.func @transform_1(%arg0: i32) -> (i32, i32) {
    %c0_i32 = arith.constant 0 : i32
    %c0_i32_0 = arith.constant 0 : i32
    return %arg0, %c0_i32 : i32, i32
  }
  func.func @transform_2(%arg0: i32) -> (i32, i32) {
    %c0_i32 = arith.constant 0 : i32
    %c0_i32_0 = arith.constant 0 : i32
    %c0_i32_1 = arith.constant 0 : i32
    return %c0_i32, %c0_i32_0 : i32, i32
  }
  func.func @transform_3(%arg0: i32) -> (i32, i32) {
    %c0_i32 = arith.constant 0 : i32
    %c0_i32_0 = arith.constant 0 : i32
    %c0_i32_1 = arith.constant 0 : i32
    return %c0_i32, %c0_i32_0 : i32, i32
  }
  func.func @transform_4(%arg0: i32) -> (i32, i32) {
    %c0_i32 = arith.constant 0 : i32
    %c0_i32_0 = arith.constant 0 : i32
    %c0_i32_1 = arith.constant 0 : i32
    return %c0_i32, %c0_i32_0 : i32, i32
  }
  func.func @transform_5(%arg0: i32) -> (i32, i32) {
    %c0_i32 = arith.constant 0 : i32
    %c0_i32_0 = arith.constant 0 : i32
    return %arg0, %c0_i32 : i32, i32
  }
}

module attributes {stable_mosaic.version = 11 : i64} {
  func.func @_fusion_gemm_kernel(%arg0: i32, %arg1: memref<32x512xbf16, #tpu.memory_space<vmem>>, %arg2: memref<32x512xbf16, #tpu.memory_space<vmem>>, %arg3: memref<512x512xbf16, #tpu.memory_space<vmem>>, %arg4: memref<512x512xbf16, #tpu.memory_space<vmem>>, %arg5: memref<1x512xf32, #tpu.memory_space<vmem>>, %arg6: memref<32x512xf32, #tpu.memory_space<vmem>>) attributes {dimension_semantics = [#tpu.dimension_semantics<parallel>], iteration_bounds = array<i64: 2>, scalar_prefetch = 0 : i64, scratch_operands = 0 : i64, tpu.core_type = #tpu.core_type<tc>, window_params = [{transform_indices = @transform_0, window_bounds = array<i64: 32, 512>}, {transform_indices = @transform_1, window_bounds = array<i64: 32, 512>}, {pipeline_mode = #tpu.pipeline_mode<synchronous>, transform_indices = @transform_2, window_bounds = array<i64: 512, 512>}, {pipeline_mode = #tpu.pipeline_mode<synchronous>, transform_indices = @transform_3, window_bounds = array<i64: 512, 512>}, {pipeline_mode = #tpu.pipeline_mode<synchronous>, transform_indices = @transform_4, window_bounds = array<i64: 1, 512>}, {transform_indices = @transform_5, window_bounds = array<i64: 32, 512>}]} {
    %c0 = arith.constant 0 : index
    %c0_0 = arith.constant 0 : index
    %0 = vector.load %arg1[%c0, %c0_0] : memref<32x512xbf16, #tpu.memory_space<vmem>>, vector<32x512xbf16>
    %c0_1 = arith.constant 0 : index
    %c0_2 = arith.constant 0 : index
    %1 = vector.load %arg3[%c0_1, %c0_2] : memref<512x512xbf16, #tpu.memory_space<vmem>>, vector<512x512xbf16>
    %cst = arith.constant dense<0.000000e+00> : vector<32x512xf32>
    %2 = tpu.matmul %0, %1, %cst {dimension_numbers = #tpu.dot_dimension_numbers<[1], [0], [0], [1], [0, 0, 1, 1], [], []>} : vector<32x512xbf16>, vector<512x512xbf16>, vector<32x512xf32> -> vector<32x512xf32>
    %c0_3 = arith.constant 0 : index
    %c0_4 = arith.constant 0 : index
    %3 = vector.load %arg2[%c0_3, %c0_4] : memref<32x512xbf16, #tpu.memory_space<vmem>>, vector<32x512xbf16>
    %c0_5 = arith.constant 0 : index
    %c0_6 = arith.constant 0 : index
    %4 = vector.load %arg4[%c0_5, %c0_6] : memref<512x512xbf16, #tpu.memory_space<vmem>>, vector<512x512xbf16>
    %cst_7 = arith.constant dense<0.000000e+00> : vector<32x512xf32>
    %5 = tpu.matmul %3, %4, %cst_7 {dimension_numbers = #tpu.dot_dimension_numbers<[1], [0], [0], [1], [0, 0, 1, 1], [], []>} : vector<32x512xbf16>, vector<512x512xbf16>, vector<32x512xf32> -> vector<32x512xf32>
    %6 = arith.addf %2, %5 : vector<32x512xf32>
    %c0_8 = arith.constant 0 : index
    %c0_9 = arith.constant 0 : index
    %7 = vector.load %arg5[%c0_8, %c0_9] : memref<1x512xf32, #tpu.memory_space<vmem>>, vector<1x512xf32>
    %8 = vector.broadcast %7 : vector<1x512xf32> to vector<32x512xf32>
    %9 = arith.addf %6, %8 : vector<32x512xf32>
    %cst_10 = arith.constant 0.000000e+00 : f32
    %10 = vector.broadcast %cst_10 : f32 to vector<32x512xf32>
    %11 = arith.maximumf %9, %10 : vector<32x512xf32>
    %c0_11 = arith.constant 0 : index
    %c0_12 = arith.constant 0 : index
    %12 = vector.load %arg6[%c0_11, %c0_12] : memref<32x512xf32, #tpu.memory_space<vmem>>, vector<32x512xf32>
    tpu.vector_store %arg6[%c0_11, %c0_12], %11 {strides = array<i32>} : memref<32x512xf32, #tpu.memory_space<vmem>>, vector<32x512xf32>,
    return
  }
  func.func @transform_0(%arg0: i32) -> (i32, i32) {
    %c0_i32 = arith.constant 0 : i32
    %c0_i32_0 = arith.constant 0 : i32
    return %arg0, %c0_i32 : i32, i32
  }
  func.func @transform_1(%arg0: i32) -> (i32, i32) {
    %c0_i32 = arith.constant 0 : i32
    %c0_i32_0 = arith.constant 0 : i32
    return %arg0, %c0_i32 : i32, i32
  }
  func.func @transform_2(%arg0: i32) -> (i32, i32) {
    %c0_i32 = arith.constant 0 : i32
    %c0_i32_0 = arith.constant 0 : i32
    %c0_i32_1 = arith.constant 0 : i32
    return %c0_i32, %c0_i32_0 : i32, i32
  }
  func.func @transform_3(%arg0: i32) -> (i32, i32) {
    %c0_i32 = arith.constant 0 : i32
    %c0_i32_0 = arith.constant 0 : i32
    %c0_i32_1 = arith.constant 0 : i32
    return %c0_i32, %c0_i32_0 : i32, i32
  }
  func.func @transform_4(%arg0: i32) -> (i32, i32) {
    %c0_i32 = arith.constant 0 : i32
    %c0_i32_0 = arith.constant 0 : i32
    %c0_i32_1 = arith.constant 0 : i32
    return %c0_i32, %c0_i32_0 : i32, i32
  }
  func.func @transform_5(%arg0: i32) -> (i32, i32) {
    %c0_i32 = arith.constant 0 : i32
    %c0_i32_0 = arith.constant 0 : i32
    return %arg0, %c0_i32 : i32, i32
  }
}

</mosaic_0001>

<llo_original>
// kernel: tpu_custom_call.1
$region0: #{tpu_custom_call.1}
  #allocation0 [shape = 'u32[]', space=smem, size = 0x4, offset = 0x4, fixed_abs, tag = 'smem constant byte address 0x4 - core index']
  #allocation1 [shape = 'u32[72,128]{1,0:T(1,128)}', space=vmem, size = 0x9000, scoped, tag = 'internal scratch']
  %s0 = inlined_call_operand.hbm [shape: bf16[64,512], index: 0, kind: input, shape index: {}]
  %s1 = inlined_call_operand.hbm [shape: bf16[64,512], index: 1, kind: input, shape index: {}]
  %s2 = inlined_call_operand.hbm [shape: bf16[512,512], index: 2, kind: input, shape index: {}]
  %s3 = inlined_call_operand.hbm [shape: bf16[512,512], index: 3, kind: input, shape index: {}]
  %s4 = inlined_call_operand.hbm [shape: f32[1,512], index: 4, kind: input, shape index: {}]
  %s5 = inlined_call_operand.hbm [shape: f32[64,512], index: 5, kind: output, shape index: {}]
  %s6 = sld [smem:[#allocation0]]
  $region73: #{tpu_custom_call.1} parent=0
    _
  %s8 = ssub.s32 1, %s6
  %s9 = scalar_select 0, %s8, %s6
  $region1: #{tpu_custom_call.1} parent=0
    #allocation2 [shape = 'u8[65536]{0}', space=vmem, size = 0x10000, scoped, tag = 'input window, operand 0']
    #allocation3 [shape = 's32[2]{0}', space=sflag, size = 0x8, scoped, tag = 'scoped memory for tpu_custom_call.1']
    #allocation4 [shape = 's32[2]{0}', space=sflag, size = 0x8, scoped, tag = 'scoped memory for tpu_custom_call.1']
    #allocation5 [shape = 'u8[65536]{0}', space=vmem, size = 0x10000, scoped, tag = 'input window, operand 1']
    #allocation6 [shape = 's32[2]{0}', space=sflag, size = 0x8, scoped, tag = 'scoped memory for tpu_custom_call.1']
    #allocation7 [shape = 'u8[524288]{0}', space=vmem, size = 0x80000, scoped, tag = 'input window, operand 2, single buffered']
    #allocation8 [shape = 'u8[524288]{0}', space=vmem, size = 0x80000, scoped, tag = 'input window, operand 3, single buffered']
    #allocation9 [shape = 's32[1]{0}', space=sflag, size = 0x4, scoped, tag = 'scoped memory for tpu_custom_call.1']
    #allocation10 [shape = 'u8[2048]{0}', space=vmem, size = 0x800, scoped, tag = 'input window, operand 4, single buffered']
    #allocation11 [shape = 'u8[131072]{0}', space=vmem, size = 0x20000, scoped, tag = 'output window, operand 0']
    %10 = vsyncpa [#allocation3], 0
    %s11 = scalar_lea.sflag [#allocation3], 1
    %12 = vsyncpa %s11, 0
    %13 = vsyncpa [#allocation6], 0
    %s14 = scalar_lea.sflag [#allocation6], 1
    %15 = vsyncpa %s14, 0
    %16 = vsyncpa [#allocation9], 0
    %17 = vsyncpa [#allocation4], 0
    %s18 = scalar_lea.sflag [#allocation4], 1
    %19 = vsyncpa %s18, 0
    loop: start=0, step=1, limit=4
    $region2: #{tpu_custom_call.1} parent=1 // loop_pre_header
      _
    $region3: #{tpu_custom_call.1} parent=1 // loop_header
      %s21 = sphi 0, %s25
      %p22 = scmp.ge.s32.totalorder %s21, 4
      %s31 = sphi 0, %s33
      %s34 = sphi 0, %s31
      %s35 = sphi 0, %s34
      %s51 = sphi 0, %s35
      %s57 = sphi 0, %s59
      %s60 = sphi 0, %s57
      %s61 = sphi 0, %s60
      %s77 = sphi 0, %s61
      %s81 = sphi 0, %s81
      %s83 = sphi 0, %s81
      %s84 = sphi 0, %s83
      %s98 = sphi 0, %s84
      %s102 = sphi 0, %s102
      %s104 = sphi 0, %s102
      %s105 = sphi 0, %s104
      %s119 = sphi 0, %s105
      %s123 = sphi 0, %s123
      %s125 = sphi 0, %s123
      %s126 = sphi 0, %s125
      %s140 = sphi 0, %s126
      %s146 = sphi 0, %s148
      %s149 = sphi 0, %s146
      %s150 = sphi 0, %s149
      %s166 = sphi 0, %s150
    $region4: #{tpu_custom_call.1} parent=1 // loop_header_branch
      %24 = sbr.rel (%p22) target = $region8
    $region5: #{tpu_custom_call.1} parent=1 // loop_body
      %s26 = ssub.s32 %s21, 1
      %s27 = ssub.s32 %s21, 2
      %s28 = sadd.s32 %s21, 1
      %s29 = ssub.s32 %s21, %s28
      %p30 = scmp.eq.s32.totalorder %s29, 0
      %s32 = sadd.s32 %s31, 1
      %s33 = scalar_select %p30, %s31, %s32
      %p36 = pneg %p30
      %p37 = scmp.eq.s32.totalorder %s21, 1
      %p38 = por %p36, %p37
      %p39 = scmp.ne.s32.totalorder %s31, %s34
      %p40 = scmp.eq.s32.totalorder %s21, 0
      %p41 = por %p39, %p40
      %p42 = scmp.ne.s32.totalorder %s31, %s34
      %p43 = scmp.eq.s32.totalorder %s26, 1
      %p44 = por %p42, %p43
      %p45 = scmp.ne.s32.totalorder %s34, %s35
      %p46 = scmp.eq.s32.totalorder %s26, 0
      %p47 = por %p45, %p46
      %p48 = scmp.ne.s32.totalorder %s34, %s35
      %p49 = scmp.eq.s32.totalorder %s27, 1
      %p50 = por %p48, %p49
      %p52 = scmp.ne.s32.totalorder %s35, %s51
      %p53 = scmp.eq.s32.totalorder %s27, 0
      %p54 = por %p52, %p53
      %s55 = ssub.s32 %s21, %s28
      %p56 = scmp.eq.s32.totalorder %s55, 0
      %s58 = sadd.s32 %s57, 1
      %s59 = scalar_select %p56, %s57, %s58
      %p62 = pneg %p56
      %p63 = scmp.eq.s32.totalorder %s21, 1
      %p64 = por %p62, %p63
      %p65 = scmp.ne.s32.totalorder %s57, %s60
      %p66 = scmp.eq.s32.totalorder %s21, 0
      %p67 = por %p65, %p66
      %p68 = scmp.ne.s32.totalorder %s57, %s60
      %p69 = scmp.eq.s32.totalorder %s26, 1
      %p70 = por %p68, %p69
      %p71 = scmp.ne.s32.totalorder %s60, %s61
      %p72 = scmp.eq.s32.totalorder %s26, 0
      %p73 = por %p71, %p72
      %p74 = scmp.ne.s32.totalorder %s60, %s61
      %p75 = scmp.eq.s32.totalorder %s27, 1
      %p76 = por %p74, %p75
      %p78 = scmp.ne.s32.totalorder %s61, %s77
      %p79 = scmp.eq.s32.totalorder %s27, 0
      %p80 = por %p78, %p79
      %s82 = sadd.s32 %s81, 1
      %p85 = scmp.eq.s32.totalorder %s21, 1
      %p86 = scmp.ne.s32.totalorder %s81, %s83
      %p87 = scmp.eq.s32.totalorder %s21, 0
      %p88 = por %p86, %p87
      %p89 = scmp.ne.s32.totalorder %s81, %s83
      %p90 = scmp.eq.s32.totalorder %s26, 1
      %p91 = por %p89, %p90
      %p92 = scmp.ne.s32.totalorder %s83, %s84
      %p93 = scmp.eq.s32.totalorder %s26, 0
      %p94 = por %p92, %p93
      %p95 = scmp.ne.s32.totalorder %s83, %s84
      %p96 = scmp.eq.s32.totalorder %s27, 1
      %p97 = por %p95, %p96
      %p99 = scmp.ne.s32.totalorder %s84, %s98
      %p100 = scmp.eq.s32.totalorder %s27, 0
      %p101 = por %p99, %p100
      %s103 = sadd.s32 %s102, 1
      %p106 = scmp.eq.s32.totalorder %s21, 1
      %p107 = scmp.ne.s32.totalorder %s102, %s104
      %p108 = scmp.eq.s32.totalorder %s21, 0
      %p109 = por %p107, %p108
      %p110 = scmp.ne.s32.totalorder %s102, %s104
      %p111 = scmp.eq.s32.totalorder %s26, 1
      %p112 = por %p110, %p111
      %p113 = scmp.ne.s32.totalorder %s104, %s105
      %p114 = scmp.eq.s32.totalorder %s26, 0
      %p115 = por %p113, %p114
      %p116 = scmp.ne.s32.totalorder %s104, %s105
      %p117 = scmp.eq.s32.totalorder %s27, 1
      %p118 = por %p116, %p117
      %p120 = scmp.ne.s32.totalorder %s105, %s119
      %p121 = scmp.eq.s32.totalorder %s27, 0
      %p122 = por %p120, %p121
      %s124 = sadd.s32 %s123, 1
      %p127 = scmp.eq.s32.totalorder %s21, 1
      %p128 = scmp.ne.s32.totalorder %s123, %s125
      %p129 = scmp.eq.s32.totalorder %s21, 0
      %p130 = por %p128, %p129
      %p131 = scmp.ne.s32.totalorder %s123, %s125
      %p132 = scmp.eq.s32.totalorder %s26, 1
      %p133 = por %p131, %p132
      %p134 = scmp.ne.s32.totalorder %s125, %s126
      %p135 = scmp.eq.s32.totalorder %s26, 0
      %p136 = por %p134, %p135
      %p137 = scmp.ne.s32.totalorder %s125, %s126
      %p138 = scmp.eq.s32.totalorder %s27, 1
      %p139 = por %p137, %p138
      %p141 = scmp.ne.s32.totalorder %s126, %s140
      %p142 = scmp.eq.s32.totalorder %s27, 0
      %p143 = por %p141, %p142
      %s144 = ssub.s32 %s21, %s28
      %p145 = scmp.eq.s32.totalorder %s144, 0
      %s147 = sadd.s32 %s146, 1
      %s148 = scalar_select %p145, %s146, %s147
      %p151 = pneg %p145
      %p152 = scmp.eq.s32.totalorder %s21, 1
      %p153 = por %p151, %p152
      %p154 = scmp.ne.s32.totalorder %s146, %s149
      %p155 = scmp.eq.s32.totalorder %s21, 0
      %p156 = por %p154, %p155
      %p157 = scmp.ne.s32.totalorder %s146, %s149
      %p158 = scmp.eq.s32.totalorder %s26, 1
      %p159 = por %p157, %p158
      %p160 = scmp.ne.s32.totalorder %s149, %s150
      %p161 = scmp.eq.s32.totalorder %s26, 0
      %p162 = por %p160, %p161
      %p163 = scmp.ne.s32.totalorder %s149, %s150
      %p164 = scmp.eq.s32.totalorder %s27, 1
      %p165 = por %p163, %p164
      %p167 = scmp.ne.s32.totalorder %s150, %s166
      %p168 = scmp.eq.s32.totalorder %s27, 0
      %p169 = por %p167, %p168
      %p170 = scmp.le.s32.totalorder 1, %s21
      %p171 = scmp.lt.s32.totalorder %s21, 3
      %p172 = pnand %p170, %p171
      %p173 = pneg %p172
      // Predicated region
      $region9: #{tpu_custom_call.1} parent=5 // pred_check
        _
      $region10: #{tpu_custom_call.1} parent=5 // pred_check_branch
        %175 = sbr.rel (%p172) target = $region12
      $region11: #{tpu_custom_call.1} parent=5 // pred_region
        %s176 = ssub.s32 %s21, 1
        // Predicated region
        $region13: #{tpu_custom_call.1} parent=11 // pred_check
          %p177 = pneg %p94
        $region14: #{tpu_custom_call.1} parent=11 // pred_check_branch
          %179 = sbr.rel (%p177) target = $region16
        $region15: #{tpu_custom_call.1} parent=11 // pred_region
          %181 = vsyncadd [#allocation6], 0
          %s182 = sshll.u32 %s2, 4
          %s183 = int_to_ptr.hbm [resolvable:$true] %s182
          %s184 = sshll.u32 [#allocation7], 4
          %s185 = int_to_ptr.vmem [resolvable:$true] %s184
          %190 = dma.hbm_to_vmem [thread:$0]  %s183, 16384, %s185, [#allocation6], 256, 256, 16
        $region16: #{tpu_custom_call.1} parent=11 // pred_fallthru
          _
        // Predicated region
        $region17: #{tpu_custom_call.1} parent=11 // pred_check
          %p191 = pneg %p115
        $region18: #{tpu_custom_call.1} parent=11 // pred_check_branch
          %193 = sbr.rel (%p191) target = $region20
        $region19: #{tpu_custom_call.1} parent=11 // pred_region
          %195 = vsyncadd [#allocation9], 0
          %s196 = sshll.u32 %s3, 4
          %s197 = int_to_ptr.hbm [resolvable:$true] %s196
          %s198 = sshll.u32 [#allocation8], 4
          %s199 = int_to_ptr.vmem [resolvable:$true] %s198
          %204 = dma.hbm_to_vmem [thread:$0]  %s197, 16384, %s199, [#allocation9], 256, 256, 16
        $region20: #{tpu_custom_call.1} parent=11 // pred_fallthru
          _
        // Predicated region
        $region21: #{tpu_custom_call.1} parent=11 // pred_check
          %p205 = pneg %p136
        $region22: #{tpu_custom_call.1} parent=11 // pred_check_branch
          %207 = sbr.rel (%p205) target = $region24
        $region23: #{tpu_custom_call.1} parent=11 // pred_region
          %209 = vsyncadd [#allocation9], 0
          %s211 = sshll.u32 %s4, 4
          %s212 = int_to_ptr.hbm [resolvable:$true] %s211
          %s213 = sshll.u32 [#allocation10], 4
          %s214 = int_to_ptr.vmem [resolvable:$true] %s213
          %216 = dma.hbm_to_vmem [thread:$0]  %s212, 64, %s214, [#allocation9]
        $region24: #{tpu_custom_call.1} parent=11 // pred_fallthru
          _
      $region12: #{tpu_custom_call.1} parent=5 // pred_fallthru
        _
      %p217 = scmp.lt.s32.totalorder %s21, 2
      // Predicated region
      $region25: #{tpu_custom_call.1} parent=5 // pred_check
        %p218 = pneg %p217
      $region26: #{tpu_custom_call.1} parent=5 // pred_check_branch
        %220 = sbr.rel (%p218) target = $region28
      $region27: #{tpu_custom_call.1} parent=5 // pred_region
        // Predicated region
        $region29: #{tpu_custom_call.1} parent=27 // pred_check
          %p221 = pneg %p41
        $region30: #{tpu_custom_call.1} parent=27 // pred_check_branch
          %223 = sbr.rel (%p221) target = $region32
        $region31: #{tpu_custom_call.1} parent=27 // pred_region
          %s224 = sand.u32 %s31, 1
          %s225 = scalar_lea.sflag [#allocation3], %s224
          %s226 = sand.u32 %s31, 1
          %s227 = smul.addr %s226, 64
          %s228 = scalar_lea.vmem [#allocation2], %s227
          %s229 = smul.u32 4, %s21
          %231 = vsyncadd %s225, 0
          %s232 = smul.addr %s229, 4
          %s233 = smul.addr %s232, 4
          %s234 = scalar_lea.hbm %s0, %s233
          %s235 = sshll.u32 %s234, 4
          %s236 = int_to_ptr.hbm [resolvable:$true] %s235
          %s237 = sshll.u32 %s228, 4
          %s238 = int_to_ptr.vmem [resolvable:$true] %s237
          %243 = dma.hbm_to_vmem [thread:$0]  %s236, 1024, %s238, %s225, 256, 256, 16
        $region32: #{tpu_custom_call.1} parent=27 // pred_fallthru
          _
        // Predicated region
        $region33: #{tpu_custom_call.1} parent=27 // pred_check
          %p244 = pneg %p67
        $region34: #{tpu_custom_call.1} parent=27 // pred_check_branch
          %246 = sbr.rel (%p244) target = $region36
        $region35: #{tpu_custom_call.1} parent=27 // pred_region
          %s247 = sand.u32 %s21, 1
          %s248 = scalar_lea.sflag [#allocation6], %s247
          %s249 = sand.u32 %s57, 1
          %s250 = smul.addr %s249, 64
          %s251 = scalar_lea.vmem [#allocation5], %s250
          %s252 = smul.u32 4, %s21
          %254 = vsyncadd %s248, 0
          %s255 = smul.addr %s252, 4
          %s256 = smul.addr %s255, 4
          %s257 = scalar_lea.hbm %s1, %s256
          %s258 = sshll.u32 %s257, 4
          %s259 = int_to_ptr.hbm [resolvable:$true] %s258
          %s260 = sshll.u32 %s251, 4
          %s261 = int_to_ptr.vmem [resolvable:$true] %s260
          %266 = dma.hbm_to_vmem [thread:$0]  %s259, 1024, %s261, %s248, 256, 256, 16
        $region36: #{tpu_custom_call.1} parent=27 // pred_fallthru
          _
      $region28: #{tpu_custom_call.1} parent=5 // pred_fallthru
        _
      %p267 = scmp.le.s32.totalorder 1, %s21
      %p268 = scmp.lt.s32.totalorder %s21, 3
      %p269 = pnand %p267, %p268
      %p270 = pneg %p269
      // Predicated region
      $region37: #{tpu_custom_call.1} parent=5 // pred_check
        _
      $region38: #{tpu_custom_call.1} parent=5 // pred_check_branch
        %272 = sbr.rel (%p269) target = $region40
      $region39: #{tpu_custom_call.1} parent=5 // pred_region
        %s273 = ssub.s32 %s21, 1
        %s274 = sand.u32 %s34, 1
        %s275 = scalar_lea.sflag [#allocation3], %s274
        %s276 = sand.u32 %s34, 1
        %s277 = smul.addr %s276, 64
        %s278 = scalar_lea.vmem [#allocation2], %s277
        // Predicated region
        $region41: #{tpu_custom_call.1} parent=39 // pred_check
          %p279 = pneg %p47
        $region42: #{tpu_custom_call.1} parent=39 // pred_check_branch
          %281 = sbr.rel (%p279) target = $region44
        $region43: #{tpu_custom_call.1} parent=39 // pred_region
          %283 = dma.done %s275, 1024
        $region44: #{tpu_custom_call.1} parent=39 // pred_fallthru
          _
        %s284 = sand.u32 %s26, 1
        %s285 = scalar_lea.sflag [#allocation6], %s284
        %s286 = sand.u32 %s60, 1
        %s287 = smul.addr %s286, 64
        %s288 = scalar_lea.vmem [#allocation5], %s287
        // Predicated region
        $region45: #{tpu_custom_call.1} parent=39 // pred_check
          %p289 = pneg %p73
        $region46: #{tpu_custom_call.1} parent=39 // pred_check_branch
          %291 = sbr.rel (%p289) target = $region48
        $region47: #{tpu_custom_call.1} parent=39 // pred_region
          %293 = dma.done %s285, 1024
        $region48: #{tpu_custom_call.1} parent=39 // pred_fallthru
          _
        // Predicated region
        $region49: #{tpu_custom_call.1} parent=39 // pred_check
          %p294 = pneg %p94
        $region50: #{tpu_custom_call.1} parent=39 // pred_check_branch
          %296 = sbr.rel (%p294) target = $region52
        $region51: #{tpu_custom_call.1} parent=39 // pred_region
          %298 = dma.done [#allocation6], 16384
        $region52: #{tpu_custom_call.1} parent=39 // pred_fallthru
          _
        // Predicated region
        $region53: #{tpu_custom_call.1} parent=39 // pred_check
          %p299 = pneg %p115
        $region54: #{tpu_custom_call.1} parent=39 // pred_check_branch
          %301 = sbr.rel (%p299) target = $region56
        $region55: #{tpu_custom_call.1} parent=39 // pred_region
          %303 = dma.done [#allocation9], 16384
        $region56: #{tpu_custom_call.1} parent=39 // pred_fallthru
          _
        // Predicated region
        $region57: #{tpu_custom_call.1} parent=39 // pred_check
          %p304 = pneg %p136
        $region58: #{tpu_custom_call.1} parent=39 // pred_check_branch
          %306 = sbr.rel (%p304) target = $region60
        $region59: #{tpu_custom_call.1} parent=39 // pred_region
          %308 = dma.done [#allocation9], 64
        $region60: #{tpu_custom_call.1} parent=39 // pred_fallthru
          _
        %s309 = sand.u32 %s34, 1
        %s310 = scalar_lea.sflag [#allocation3], %s309
        %s311 = sand.u32 %s34, 1
        %s312 = smul.addr %s311, 64
        %s313 = scalar_lea.vmem [#allocation2], %s312
        %p314 = pneg %p47
        %p315 = pneg %p44
        %s316 = sand.u32 %s26, 1
        %s317 = scalar_lea.sflag [#allocation6], %s316
        %s318 = sand.u32 %s60, 1
        %s319 = smul.addr %s318, 64
        %s320 = scalar_lea.vmem [#allocation5], %s319
        %p321 = pneg %p73
        %p322 = pneg %p70
        %p323 = pneg %p94
        %p324 = pneg %p91
        %p325 = pneg %p115
        %p326 = pneg %p112
        %p327 = pneg %p136
        %p328 = pneg %p133
        %p329 = pneg %p162
        %p330 = pneg %p159
        %s331 = sand.u32 %s149, 1
        %s332 = scalar_lea.sflag [#allocation4], %s331
        %s333 = sand.u32 %s149, 1
        %s334 = smul.addr %s333, 128
        %s335 = scalar_lea.vmem [#allocation11], %s334
        %s336 = smul.u32 4, %s26
        %s337 = smul.u32 4, %s26
        %s338 = smul.u32 4, %s26
        %v339 = vld [vmem:[%s278] sm:$0xff]
        %v340 = vld [vmem:[%s278 + $0x8] sm:$0xff]
        %v341 = vld [vmem:[%s278 + $0x10] sm:$0xff]
        %v342 = vld [vmem:[%s278 + $0x18] sm:$0xff]
        %v343 = vld [vmem:[%s278 + $0x20] sm:$0xff]
        %v344 = vld [vmem:[%s278 + $0x28] sm:$0xff]
        %v345 = vld [vmem:[%s278 + $0x30] sm:$0xff]
        %v346 = vld [vmem:[%s278 + $0x38] sm:$0xff]
        %v347 = vld [vmem:[#allocation7] sm:$0xff]
        %v348 = vld [vmem:[#allocation7 + $0x8] sm:$0xff]
        %v349 = vld [vmem:[#allocation7 + $0x10] sm:$0xff]
        %v350 = vld [vmem:[#allocation7 + $0x18] sm:$0xff]
        %v351 = vld [vmem:[#allocation7 + $0x20] sm:$0xff]
        %v352 = vld [vmem:[#allocation7 + $0x28] sm:$0xff]
        %v353 = vld [vmem:[#allocation7 + $0x30] sm:$0xff]
        %v354 = vld [vmem:[#allocation7 + $0x38] sm:$0xff]
        %v355 = vld [vmem:[#allocation7 + $0x40] sm:$0xff]
        %v356 = vld [vmem:[#allocation7 + $0x48] sm:$0xff]
        %v357 = vld [vmem:[#allocation7 + $0x50] sm:$0xff]
        %v358 = vld [vmem:[#allocation7 + $0x58] sm:$0xff]
        %v359 = vld [vmem:[#allocation7 + $0x60] sm:$0xff]
        %v360 = vld [vmem:[#allocation7 + $0x68] sm:$0xff]
        %v361 = vld [vmem:[#allocation7 + $0x70] sm:$0xff]
        %v362 = vld [vmem:[#allocation7 + $0x78] sm:$0xff]
        %v363 = vld [vmem:[#allocation7 + $0x80] sm:$0xff]
        %v364 = vld [vmem:[#allocation7 + $0x88] sm:$0xff]
        %v365 = vld [vmem:[#allocation7 + $0x90] sm:$0xff]
        %v366 = vld [vmem:[#allocation7 + $0x98] sm:$0xff]
        %v367 = vld [vmem:[#allocation7 + $0xa0] sm:$0xff]
        %v368 = vld [vmem:[#allocation7 + $0xa8] sm:$0xff]
        %v369 = vld [vmem:[#allocation7 + $0xb0] sm:$0xff]
        %v370 = vld [vmem:[#allocation7 + $0xb8] sm:$0xff]
        %v371 = vld [vmem:[#allocation7 + $0xc0] sm:$0xff]
        %v372 = vld [vmem:[#allocation7 + $0xc8] sm:$0xff]
        %v373 = vld [vmem:[#allocation7 + $0xd0] sm:$0xff]
        %v374 = vld [vmem:[#allocation7 + $0xd8] sm:$0xff]
        %v375 = vld [vmem:[#allocation7 + $0xe0] sm:$0xff]
        %v376 = vld [vmem:[#allocation7 + $0xe8] sm:$0xff]
        %v377 = vld [vmem:[#allocation7 + $0xf0] sm:$0xff]
        %v378 = vld [vmem:[#allocation7 + $0xf8] sm:$0xff]
        %v379 = vld [vmem:[#allocation7 + $0x100] sm:$0xff]
        %v380 = vld [vmem:[#allocation7 + $0x108] sm:$0xff]
        %v381 = vld [vmem:[#allocation7 + $0x110] sm:$0xff]
        %v382 = vld [vmem:[#allocation7 + $0x118] sm:$0xff]
        %v383 = vld [vmem:[#allocation7 + $0x120] sm:$0xff]
        %v384 = vld [vmem:[#allocation7 + $0x128] sm:$0xff]
        %v385 = vld [vmem:[#allocation7 + $0x130] sm:$0xff]
        %v386 = vld [vmem:[#allocation7 + $0x138] sm:$0xff]
        %v387 = vld [vmem:[#allocation7 + $0x140] sm:$0xff]
        %v388 = vld [vmem:[#allocation7 + $0x148] sm:$0xff]
        %v389 = vld [vmem:[#allocation7 + $0x150] sm:$0xff]
        %v390 = vld [vmem:[#allocation7 + $0x158] sm:$0xff]
        %v391 = vld [vmem:[#allocation7 + $0x160] sm:$0xff]
        %v392 = vld [vmem:[#allocation7 + $0x168] sm:$0xff]
        %v393 = vld [vmem:[#allocation7 + $0x170] sm:$0xff]
        %v394 = vld [vmem:[#allocation7 + $0x178] sm:$0xff]
        %v395 = vld [vmem:[#allocation7 + $0x180] sm:$0xff]
        %v396 = vld [vmem:[#allocation7 + $0x188] sm:$0xff]
        %v397 = vld [vmem:[#allocation7 + $0x190] sm:$0xff]
        %v398 = vld [vmem:[#allocation7 + $0x198] sm:$0xff]
        %v399 = vld [vmem:[#allocation7 + $0x1a0] sm:$0xff]
        %v400 = vld [vmem:[#allocation7 + $0x1a8] sm:$0xff]
        %v401 = vld [vmem:[#allocation7 + $0x1b0] sm:$0xff]
        %v402 = vld [vmem:[#allocation7 + $0x1b8] sm:$0xff]
        %v403 = vld [vmem:[#allocation7 + $0x1c0] sm:$0xff]
        %v404 = vld [vmem:[#allocation7 + $0x1c8] sm:$0xff]
        %v405 = vld [vmem:[#allocation7 + $0x1d0] sm:$0xff]
        %v406 = vld [vmem:[#allocation7 + $0x1d8] sm:$0xff]
        %v407 = vld [vmem:[#allocation7 + $0x1e0] sm:$0xff]
        %v408 = vld [vmem:[#allocation7 + $0x1e8] sm:$0xff]
        %v409 = vld [vmem:[#allocation7 + $0x1f0] sm:$0xff]
        %v410 = vld [vmem:[#allocation7 + $0x1f8] sm:$0xff]
        %v411 = vld [vmem:[#allocation7 + $0x200] sm:$0xff]
        %v412 = vld [vmem:[#allocation7 + $0x208] sm:$0xff]
        %v413 = vld [vmem:[#allocation7 + $0x210] sm:$0xff]
        %v414 = vld [vmem:[#allocation7 + $0x218] sm:$0xff]
        %v415 = vld [vmem:[#allocation7 + $0x220] sm:$0xff]
        %v416 = vld [vmem:[#allocation7 + $0x228] sm:$0xff]
        %v417 = vld [vmem:[#allocation7 + $0x230] sm:$0xff]
        %v418 = vld [vmem:[#allocation7 + $0x238] sm:$0xff]
        %v419 = vld [vmem:[#allocation7 + $0x240] sm:$0xff]
        %v420 = vld [vmem:[#allocation7 + $0x248] sm:$0xff]
        %v421 = vld [vmem:[#allocation7 + $0x250] sm:$0xff]
        %v422 = vld [vmem:[#allocation7 + $0x258] sm:$0xff]
        %v423 = vld [vmem:[#allocation7 + $0x260] sm:$0xff]
        %v424 = vld [vmem:[#allocation7 + $0x268] sm:$0xff]
        %v425 = vld [vmem:[#allocation7 + $0x270] sm:$0xff]
        %v426 = vld [vmem:[#allocation7 + $0x278] sm:$0xff]
        %v427 = vld [vmem:[#allocation7 + $0x280] sm:$0xff]
        %v428 = vld [vmem:[#allocation7 + $0x288] sm:$0xff]
        %v429 = vld [vmem:[#allocation7 + $0x290] sm:$0xff]
        %v430 = vld [vmem:[#allocation7 + $0x298] sm:$0xff]
        %v431 = vld [vmem:[#allocation7 + $0x2a0] sm:$0xff]
        %v432 = vld [vmem:[#allocation7 + $0x2a8] sm:$0xff]
        %v433 = vld [vmem:[#allocation7 + $0x2b0] sm:$0xff]
        %v434 = vld [vmem:[#allocation7 + $0x2b8] sm:$0xff]
        %v435 = vld [vmem:[#allocation7 + $0x2c0] sm:$0xff]
        %v436 = vld [vmem:[#allocation7 + $0x2c8] sm:$0xff]
        %v437 = vld [vmem:[#allocation7 + $0x2d0] sm:$0xff]
        %v438 = vld [vmem:[#allocation7 + $0x2d8] sm:$0xff]
        %v439 = vld [vmem:[#allocation7 + $0x2e0] sm:$0xff]
        %v440 = vld [vmem:[#allocation7 + $0x2e8] sm:$0xff]
        %v441 = vld [vmem:[#allocation7 + $0x2f0] sm:$0xff]
        %v442 = vld [vmem:[#allocation7 + $0x2f8] sm:$0xff]
        %v443 = vld [vmem:[#allocation7 + $0x300] sm:$0xff]
        %v444 = vld [vmem:[#allocation7 + $0x308] sm:$0xff]
        %v445 = vld [vmem:[#allocation7 + $0x310] sm:$0xff]
        %v446 = vld [vmem:[#allocation7 + $0x318] sm:$0xff]
        %v447 = vld [vmem:[#allocation7 + $0x320] sm:$0xff]
        %v448 = vld [vmem:[#allocation7 + $0x328] sm:$0xff]
        %v449 = vld [vmem:[#allocation7 + $0x330] sm:$0xff]
        %v450 = vld [vmem:[#allocation7 + $0x338] sm:$0xff]
        %v451 = vld [vmem:[#allocation7 + $0x340] sm:$0xff]
        %v452 = vld [vmem:[#allocation7 + $0x348] sm:$0xff]
        %v453 = vld [vmem:[#allocation7 + $0x350] sm:$0xff]
        %v454 = vld [vmem:[#allocation7 + $0x358] sm:$0xff]
        %v455 = vld [vmem:[#allocation7 + $0x360] sm:$0xff]
        %v456 = vld [vmem:[#allocation7 + $0x368] sm:$0xff]
        %v457 = vld [vmem:[#allocation7 + $0x370] sm:$0xff]
        %v458 = vld [vmem:[#allocation7 + $0x378] sm:$0xff]
        %v459 = vld [vmem:[#allocation7 + $0x380] sm:$0xff]
        %v460 = vld [vmem:[#allocation7 + $0x388] sm:$0xff]
        %v461 = vld [vmem:[#allocation7 + $0x390] sm:$0xff]
        %v462 = vld [vmem:[#allocation7 + $0x398] sm:$0xff]
        %v463 = vld [vmem:[#allocation7 + $0x3a0] sm:$0xff]
        %v464 = vld [vmem:[#allocation7 + $0x3a8] sm:$0xff]
        %v465 = vld [vmem:[#allocation7 + $0x3b0] sm:$0xff]
        %v466 = vld [vmem:[#allocation7 + $0x3b8] sm:$0xff]
        %v467 = vld [vmem:[#allocation7 + $0x3c0] sm:$0xff]
        %v468 = vld [vmem:[#allocation7 + $0x3c8] sm:$0xff]
        %v469 = vld [vmem:[#allocation7 + $0x3d0] sm:$0xff]
        %v470 = vld [vmem:[#allocation7 + $0x3d8] sm:$0xff]
        %v471 = vld [vmem:[#allocation7 + $0x3e0] sm:$0xff]
        %v472 = vld [vmem:[#allocation7 + $0x3e8] sm:$0xff]
        %v473 = vld [vmem:[#allocation7 + $0x3f0] sm:$0xff]
        %v474 = vld [vmem:[#allocation7 + $0x3f8] sm:$0xff]
        %v475 = vld [vmem:[%s288] sm:$0xff]
        %v476 = vld [vmem:[%s288 + $0x8] sm:$0xff]
        %v477 = vld [vmem:[%s288 + $0x10] sm:$0xff]
        %v478 = vld [vmem:[%s288 + $0x18] sm:$0xff]
        %v479 = vld [vmem:[%s288 + $0x20] sm:$0xff]
        %v480 = vld [vmem:[%s288 + $0x28] sm:$0xff]
        %v481 = vld [vmem:[%s288 + $0x30] sm:$0xff]
        %v482 = vld [vmem:[%s288 + $0x38] sm:$0xff]
        %v483 = vld [vmem:[#allocation8] sm:$0xff]
        %v484 = vld [vmem:[#allocation8 + $0x8] sm:$0xff]
        %v485 = vld [vmem:[#allocation8 + $0x10] sm:$0xff]
        %v486 = vld [vmem:[#allocation8 + $0x18] sm:$0xff]
        %v487 = vld [vmem:[#allocation8 + $0x20] sm:$0xff]
        %v488 = vld [vmem:[#allocation8 + $0x28] sm:$0xff]
        %v489 = vld [vmem:[#allocation8 + $0x30] sm:$0xff]
        %v490 = vld [vmem:[#allocation8 + $0x38] sm:$0xff]
        %v491 = vld [vmem:[#allocation8 + $0x40] sm:$0xff]
        %v492 = vld [vmem:[#allocation8 + $0x48] sm:$0xff]
        %v493 = vld [vmem:[#allocation8 + $0x50] sm:$0xff]
        %v494 = vld [vmem:[#allocation8 + $0x58] sm:$0xff]
        %v495 = vld [vmem:[#allocation8 + $0x60] sm:$0xff]
        %v496 = vld [vmem:[#allocation8 + $0x68] sm:$0xff]
        %v497 = vld [vmem:[#allocation8 + $0x70] sm:$0xff]
        %v498 = vld [vmem:[#allocation8 + $0x78] sm:$0xff]
        %v499 = vld [vmem:[#allocation8 + $0x80] sm:$0xff]
        %v500 = vld [vmem:[#allocation8 + $0x88] sm:$0xff]
        %v501 = vld [vmem:[#allocation8 + $0x90] sm:$0xff]
        %v502 = vld [vmem:[#allocation8 + $0x98] sm:$0xff]
        %v503 = vld [vmem:[#allocation8 + $0xa0] sm:$0xff]
        %v504 = vld [vmem:[#allocation8 + $0xa8] sm:$0xff]
        %v505 = vld [vmem:[#allocation8 + $0xb0] sm:$0xff]
        %v506 = vld [vmem:[#allocation8 + $0xb8] sm:$0xff]
        %v507 = vld [vmem:[#allocation8 + $0xc0] sm:$0xff]
        %v508 = vld [vmem:[#allocation8 + $0xc8] sm:$0xff]
        %v509 = vld [vmem:[#allocation8 + $0xd0] sm:$0xff]
        %v510 = vld [vmem:[#allocation8 + $0xd8] sm:$0xff]
        %v511 = vld [vmem:[#allocation8 + $0xe0] sm:$0xff]
        %v512 = vld [vmem:[#allocation8 + $0xe8] sm:$0xff]
        %v513 = vld [vmem:[#allocation8 + $0xf0] sm:$0xff]
        %v514 = vld [vmem:[#allocation8 + $0xf8] sm:$0xff]
        %v515 = vld [vmem:[#allocation8 + $0x100] sm:$0xff]
        %v516 = vld [vmem:[#allocation8 + $0x108] sm:$0xff]
        %v517 = vld [vmem:[#allocation8 + $0x110] sm:$0xff]
        %v518 = vld [vmem:[#allocation8 + $0x118] sm:$0xff]
        %v519 = vld [vmem:[#allocation8 + $0x120] sm:$0xff]
        %v520 = vld [vmem:[#allocation8 + $0x128] sm:$0xff]
        %v521 = vld [vmem:[#allocation8 + $0x130] sm:$0xff]
        %v522 = vld [vmem:[#allocation8 + $0x138] sm:$0xff]
        %v523 = vld [vmem:[#allocation8 + $0x140] sm:$0xff]
        %v524 = vld [vmem:[#allocation8 + $0x148] sm:$0xff]
        %v525 = vld [vmem:[#allocation8 + $0x150] sm:$0xff]
        %v526 = vld [vmem:[#allocation8 + $0x158] sm:$0xff]
        %v527 = vld [vmem:[#allocation8 + $0x160] sm:$0xff]
        %v528 = vld [vmem:[#allocation8 + $0x168] sm:$0xff]
        %v529 = vld [vmem:[#allocation8 + $0x170] sm:$0xff]
        %v530 = vld [vmem:[#allocation8 + $0x178] sm:$0xff]
        %v531 = vld [vmem:[#allocation8 + $0x180] sm:$0xff]
        %v532 = vld [vmem:[#allocation8 + $0x188] sm:$0xff]
        %v533 = vld [vmem:[#allocation8 + $0x190] sm:$0xff]
        %v534 = vld [vmem:[#allocation8 + $0x198] sm:$0xff]
        %v535 = vld [vmem:[#allocation8 + $0x1a0] sm:$0xff]
        %v536 = vld [vmem:[#allocation8 + $0x1a8] sm:$0xff]
        %v537 = vld [vmem:[#allocation8 + $0x1b0] sm:$0xff]
        %v538 = vld [vmem:[#allocation8 + $0x1b8] sm:$0xff]
        %v539 = vld [vmem:[#allocation8 + $0x1c0] sm:$0xff]
        %v540 = vld [vmem:[#allocation8 + $0x1c8] sm:$0xff]
        %v541 = vld [vmem:[#allocation8 + $0x1d0] sm:$0xff]
        %v542 = vld [vmem:[#allocation8 + $0x1d8] sm:$0xff]
        %v543 = vld [vmem:[#allocation8 + $0x1e0] sm:$0xff]
        %v544 = vld [vmem:[#allocation8 + $0x1e8] sm:$0xff]
        %v545 = vld [vmem:[#allocation8 + $0x1f0] sm:$0xff]
        %v546 = vld [vmem:[#allocation8 + $0x1f8] sm:$0xff]
        %v547 = vld [vmem:[#allocation8 + $0x200] sm:$0xff]
        %v548 = vld [vmem:[#allocation8 + $0x208] sm:$0xff]
        %v549 = vld [vmem:[#allocation8 + $0x210] sm:$0xff]
        %v550 = vld [vmem:[#allocation8 + $0x218] sm:$0xff]
        %v551 = vld [vmem:[#allocation8 + $0x220] sm:$0xff]
        %v552 = vld [vmem:[#allocation8 + $0x228] sm:$0xff]
        %v553 = vld [vmem:[#allocation8 + $0x230] sm:$0xff]
        %v554 = vld [vmem:[#allocation8 + $0x238] sm:$0xff]
        %v555 = vld [vmem:[#allocation8 + $0x240] sm:$0xff]
        %v556 = vld [vmem:[#allocation8 + $0x248] sm:$0xff]
        %v557 = vld [vmem:[#allocation8 + $0x250] sm:$0xff]
        %v558 = vld [vmem:[#allocation8 + $0x258] sm:$0xff]
        %v559 = vld [vmem:[#allocation8 + $0x260] sm:$0xff]
        %v560 = vld [vmem:[#allocation8 + $0x268] sm:$0xff]
        %v561 = vld [vmem:[#allocation8 + $0x270] sm:$0xff]
        %v562 = vld [vmem:[#allocation8 + $0x278] sm:$0xff]
        %v563 = vld [vmem:[#allocation8 + $0x280] sm:$0xff]
        %v564 = vld [vmem:[#allocation8 + $0x288] sm:$0xff]
        %v565 = vld [vmem:[#allocation8 + $0x290] sm:$0xff]
        %v566 = vld [vmem:[#allocation8 + $0x298] sm:$0xff]
        %v567 = vld [vmem:[#allocation8 + $0x2a0] sm:$0xff]
        %v568 = vld [vmem:[#allocation8 + $0x2a8] sm:$0xff]
        %v569 = vld [vmem:[#allocation8 + $0x2b0] sm:$0xff]
        %v570 = vld [vmem:[#allocation8 + $0x2b8] sm:$0xff]
        %v571 = vld [vmem:[#allocation8 + $0x2c0] sm:$0xff]
        %v572 = vld [vmem:[#allocation8 + $0x2c8] sm:$0xff]
        %v573 = vld [vmem:[#allocation8 + $0x2d0] sm:$0xff]
        %v574 = vld [vmem:[#allocation8 + $0x2d8] sm:$0xff]
        %v575 = vld [vmem:[#allocation8 + $0x2e0] sm:$0xff]
        %v576 = vld [vmem:[#allocation8 + $0x2e8] sm:$0xff]
        %v577 = vld [vmem:[#allocation8 + $0x2f0] sm:$0xff]
        %v578 = vld [vmem:[#allocation8 + $0x2f8] sm:$0xff]
        %v579 = vld [vmem:[#allocation8 + $0x300] sm:$0xff]
        %v580 = vld [vmem:[#allocation8 + $0x308] sm:$0xff]
        %v581 = vld [vmem:[#allocation8 + $0x310] sm:$0xff]
        %v582 = vld [vmem:[#allocation8 + $0x318] sm:$0xff]
        %v583 = vld [vmem:[#allocation8 + $0x320] sm:$0xff]
        %v584 = vld [vmem:[#allocation8 + $0x328] sm:$0xff]
        %v585 = vld [vmem:[#allocation8 + $0x330] sm:$0xff]
        %v586 = vld [vmem:[#allocation8 + $0x338] sm:$0xff]
        %v587 = vld [vmem:[#allocation8 + $0x340] sm:$0xff]
        %v588 = vld [vmem:[#allocation8 + $0x348] sm:$0xff]
        %v589 = vld [vmem:[#allocation8 + $0x350] sm:$0xff]
        %v590 = vld [vmem:[#allocation8 + $0x358] sm:$0xff]
        %v591 = vld [vmem:[#allocation8 + $0x360] sm:$0xff]
        %v592 = vld [vmem:[#allocation8 + $0x368] sm:$0xff]
        %v593 = vld [vmem:[#allocation8 + $0x370] sm:$0xff]
        %v594 = vld [vmem:[#allocation8 + $0x378] sm:$0xff]
        %v595 = vld [vmem:[#allocation8 + $0x380] sm:$0xff]
        %v596 = vld [vmem:[#allocation8 + $0x388] sm:$0xff]
        %v597 = vld [vmem:[#allocation8 + $0x390] sm:$0xff]
        %v598 = vld [vmem:[#allocation8 + $0x398] sm:$0xff]
        %v599 = vld [vmem:[#allocation8 + $0x3a0] sm:$0xff]
        %v600 = vld [vmem:[#allocation8 + $0x3a8] sm:$0xff]
        %v601 = vld [vmem:[#allocation8 + $0x3b0] sm:$0xff]
        %v602 = vld [vmem:[#allocation8 + $0x3b8] sm:$0xff]
        %v603 = vld [vmem:[#allocation8 + $0x3c0] sm:$0xff]
        %v604 = vld [vmem:[#allocation8 + $0x3c8] sm:$0xff]
        %v605 = vld [vmem:[#allocation8 + $0x3d0] sm:$0xff]
        %v606 = vld [vmem:[#allocation8 + $0x3d8] sm:$0xff]
        %v607 = vld [vmem:[#allocation8 + $0x3e0] sm:$0xff]
        %v608 = vld [vmem:[#allocation8 + $0x3e8] sm:$0xff]
        %v609 = vld [vmem:[#allocation8 + $0x3f0] sm:$0xff]
        %v610 = vld [vmem:[#allocation8 + $0x3f8] sm:$0xff]
        %v619 = vunpack.c.l.b16 %v475
        %v620 = vunpack.c.h.b16 %v475
        %v621 = vunpack.c.l.b16 %v476
        %v622 = vunpack.c.h.b16 %v476
        %v623 = vunpack.c.l.b16 %v477
        %v624 = vunpack.c.h.b16 %v477
        %v625 = vunpack.c.l.b16 %v478
        %v626 = vunpack.c.h.b16 %v478
        %v627 = vunpack.c.l.b16 %v479
        %v628 = vunpack.c.h.b16 %v479
        %v629 = vunpack.c.l.b16 %v480
        %v630 = vunpack.c.h.b16 %v480
        %v631 = vunpack.c.l.b16 %v481
        %v632 = vunpack.c.h.b16 %v481
        %v633 = vunpack.c.l.b16 %v482
        %v634 = vunpack.c.h.b16 %v482
        %v635 = vpack.c.b16 %v623, %v619
        %v636 = vpack.c.b16 %v624, %v620
        %v637 = vpack.c.b16 %v625, %v621
        %v638 = vpack.c.b16 %v626, %v622
        %v639 = vpack.c.b16 %v631, %v627
        %v640 = vpack.c.b16 %v632, %v628
        %v641 = vpack.c.b16 %v633, %v629
        %v642 = vpack.c.b16 %v634, %v630
        %v779 = vunpack.c.l.b16 %v483
        %v780 = vunpack.c.h.b16 %v483
        %v781 = vunpack.c.l.b16 %v484
        %v782 = vunpack.c.h.b16 %v484
        %v783 = vunpack.c.l.b16 %v485
        %v784 = vunpack.c.h.b16 %v485
        %v785 = vunpack.c.l.b16 %v486
        %v786 = vunpack.c.h.b16 %v486
        %v787 = vunpack.c.l.b16 %v487
        %v788 = vunpack.c.h.b16 %v487
        %v789 = vunpack.c.l.b16 %v488
        %v790 = vunpack.c.h.b16 %v488
        %v791 = vunpack.c.l.b16 %v489
        %v792 = vunpack.c.h.b16 %v489
        %v793 = vunpack.c.l.b16 %v490
        %v794 = vunpack.c.h.b16 %v490
        %v795 = vunpack.c.l.b16 %v491
        %v796 = vunpack.c.h.b16 %v491
        %v797 = vunpack.c.l.b16 %v492
        %v798 = vunpack.c.h.b16 %v492
        %v799 = vunpack.c.l.b16 %v493
        %v800 = vunpack.c.h.b16 %v493
        %v801 = vunpack.c.l.b16 %v494
        %v802 = vunpack.c.h.b16 %v494
        %v803 = vunpack.c.l.b16 %v495
        %v804 = vunpack.c.h.b16 %v495
        %v805 = vunpack.c.l.b16 %v496
        %v806 = vunpack.c.h.b16 %v496
        %v807 = vunpack.c.l.b16 %v497
        %v808 = vunpack.c.h.b16 %v497
        %v809 = vunpack.c.l.b16 %v498
        %v810 = vunpack.c.h.b16 %v498
        %v811 = vunpack.c.l.b16 %v499
        %v812 = vunpack.c.h.b16 %v499
        %v813 = vunpack.c.l.b16 %v500
        %v814 = vunpack.c.h.b16 %v500
        %v815 = vunpack.c.l.b16 %v501
        %v816 = vunpack.c.h.b16 %v501
        %v817 = vunpack.c.l.b16 %v502
        %v818 = vunpack.c.h.b16 %v502
        %v819 = vunpack.c.l.b16 %v503
        %v820 = vunpack.c.h.b16 %v503
        %v821 = vunpack.c.l.b16 %v504
        %v822 = vunpack.c.h.b16 %v504
        %v823 = vunpack.c.l.b16 %v505
        %v824 = vunpack.c.h.b16 %v505
        %v825 = vunpack.c.l.b16 %v506
        %v826 = vunpack.c.h.b16 %v506
        %v827 = vunpack.c.l.b16 %v507
        %v828 = vunpack.c.h.b16 %v507
        %v829 = vunpack.c.l.b16 %v508
        %v830 = vunpack.c.h.b16 %v508
        %v831 = vunpack.c.l.b16 %v509
        %v832 = vunpack.c.h.b16 %v509
        %v833 = vunpack.c.l.b16 %v510
        %v834 = vunpack.c.h.b16 %v510
        %v835 = vunpack.c.l.b16 %v511
        %v836 = vunpack.c.h.b16 %v511
        %v837 = vunpack.c.l.b16 %v512
        %v838 = vunpack.c.h.b16 %v512
        %v839 = vunpack.c.l.b16 %v513
        %v840 = vunpack.c.h.b16 %v513
        %v841 = vunpack.c.l.b16 %v514
        %v842 = vunpack.c.h.b16 %v514
        %v843 = vunpack.c.l.b16 %v515
        %v844 = vunpack.c.h.b16 %v515
        %v845 = vunpack.c.l.b16 %v516
        %v846 = vunpack.c.h.b16 %v516
        %v847 = vunpack.c.l.b16 %v517
        %v848 = vunpack.c.h.b16 %v517
        %v849 = vunpack.c.l.b16 %v518
        %v850 = vunpack.c.h.b16 %v518
        %v851 = vunpack.c.l.b16 %v519
        %v852 = vunpack.c.h.b16 %v519
        %v853 = vunpack.c.l.b16 %v520
        %v854 = vunpack.c.h.b16 %v520
        %v855 = vunpack.c.l.b16 %v521
        %v856 = vunpack.c.h.b16 %v521
        %v857 = vunpack.c.l.b16 %v522
        %v858 = vunpack.c.h.b16 %v522
        %v859 = vunpack.c.l.b16 %v523
        %v860 = vunpack.c.h.b16 %v523
        %v861 = vunpack.c.l.b16 %v524
        %v862 = vunpack.c.h.b16 %v524
        %v863 = vunpack.c.l.b16 %v525
        %v864 = vunpack.c.h.b16 %v525
        %v865 = vunpack.c.l.b16 %v526
        %v866 = vunpack.c.h.b16 %v526
        %v867 = vunpack.c.l.b16 %v527
        %v868 = vunpack.c.h.b16 %v527
        %v869 = vunpack.c.l.b16 %v528
        %v870 = vunpack.c.h.b16 %v528
        %v871 = vunpack.c.l.b16 %v529
        %v872 = vunpack.c.h.b16 %v529
        %v873 = vunpack.c.l.b16 %v530
        %v874 = vunpack.c.h.b16 %v530
        %v875 = vunpack.c.l.b16 %v531
        %v876 = vunpack.c.h.b16 %v531
        %v877 = vunpack.c.l.b16 %v532
        %v878 = vunpack.c.h.b16 %v532
        %v879 = vunpack.c.l.b16 %v533
        %v880 = vunpack.c.h.b16 %v533
        %v881 = vunpack.c.l.b16 %v534
        %v882 = vunpack.c.h.b16 %v534
        %v883 = vunpack.c.l.b16 %v535
        %v884 = vunpack.c.h.b16 %v535
        %v885 = vunpack.c.l.b16 %v536
        %v886 = vunpack.c.h.b16 %v536
        %v887 = vunpack.c.l.b16 %v537
        %v888 = vunpack.c.h.b16 %v537
        %v889 = vunpack.c.l.b16 %v538
        %v890 = vunpack.c.h.b16 %v538
        %v891 = vunpack.c.l.b16 %v539
        %v892 = vunpack.c.h.b16 %v539
        %v893 = vunpack.c.l.b16 %v540
        %v894 = vunpack.c.h.b16 %v540
        %v895 = vunpack.c.l.b16 %v541
        %v896 = vunpack.c.h.b16 %v541
        %v897 = vunpack.c.l.b16 %v542
        %v898 = vunpack.c.h.b16 %v542
        %v899 = vunpack.c.l.b16 %v543
        %v900 = vunpack.c.h.b16 %v543
        %v901 = vunpack.c.l.b16 %v544
        %v902 = vunpack.c.h.b16 %v544
        %v903 = vunpack.c.l.b16 %v545
        %v904 = vunpack.c.h.b16 %v545
        %v905 = vunpack.c.l.b16 %v546
        %v906 = vunpack.c.h.b16 %v546
        %v907 = vunpack.c.l.b16 %v547
        %v908 = vunpack.c.h.b16 %v547
        %v909 = vunpack.c.l.b16 %v548
        %v910 = vunpack.c.h.b16 %v548
        %v911 = vunpack.c.l.b16 %v549
        %v912 = vunpack.c.h.b16 %v549
        %v913 = vunpack.c.l.b16 %v550
        %v914 = vunpack.c.h.b16 %v550
        %v915 = vunpack.c.l.b16 %v551
        %v916 = vunpack.c.h.b16 %v551
        %v917 = vunpack.c.l.b16 %v552
        %v918 = vunpack.c.h.b16 %v552
        %v919 = vunpack.c.l.b16 %v553
        %v920 = vunpack.c.h.b16 %v553
        %v921 = vunpack.c.l.b16 %v554
        %v922 = vunpack.c.h.b16 %v554
        %v923 = vunpack.c.l.b16 %v555
        %v924 = vunpack.c.h.b16 %v555
        %v925 = vunpack.c.l.b16 %v556
        %v926 = vunpack.c.h.b16 %v556
        %v927 = vunpack.c.l.b16 %v557
        %v928 = vunpack.c.h.b16 %v557
        %v929 = vunpack.c.l.b16 %v558
        %v930 = vunpack.c.h.b16 %v558
        %v931 = vunpack.c.l.b16 %v559
        %v932 = vunpack.c.h.b16 %v559
        %v933 = vunpack.c.l.b16 %v560
        %v934 = vunpack.c.h.b16 %v560
        %v935 = vunpack.c.l.b16 %v561
        %v936 = vunpack.c.h.b16 %v561
        %v937 = vunpack.c.l.b16 %v562
        %v938 = vunpack.c.h.b16 %v562
        %v939 = vunpack.c.l.b16 %v563
        %v940 = vunpack.c.h.b16 %v563
        %v941 = vunpack.c.l.b16 %v564
        %v942 = vunpack.c.h.b16 %v564
        %v943 = vunpack.c.l.b16 %v565
        %v944 = vunpack.c.h.b16 %v565
        %v945 = vunpack.c.l.b16 %v566
        %v946 = vunpack.c.h.b16 %v566
        %v947 = vunpack.c.l.b16 %v567
        %v948 = vunpack.c.h.b16 %v567
        %v949 = vunpack.c.l.b16 %v568
        %v950 = vunpack.c.h.b16 %v568
        %v951 = vunpack.c.l.b16 %v569
        %v952 = vunpack.c.h.b16 %v569
        %v953 = vunpack.c.l.b16 %v570
        %v954 = vunpack.c.h.b16 %v570
        %v955 = vunpack.c.l.b16 %v571
        %v956 = vunpack.c.h.b16 %v571
        %v957 = vunpack.c.l.b16 %v572
        %v958 = vunpack.c.h.b16 %v572
        %v959 = vunpack.c.l.b16 %v573
        %v960 = vunpack.c.h.b16 %v573
        %v961 = vunpack.c.l.b16 %v574
        %v962 = vunpack.c.h.b16 %v574
        %v963 = vunpack.c.l.b16 %v575
        %v964 = vunpack.c.h.b16 %v575
        %v965 = vunpack.c.l.b16 %v576
        %v966 = vunpack.c.h.b16 %v576
        %v967 = vunpack.c.l.b16 %v577
        %v968 = vunpack.c.h.b16 %v577
        %v969 = vunpack.c.l.b16 %v578
        %v970 = vunpack.c.h.b16 %v578
        %v971 = vunpack.c.l.b16 %v579
        %v972 = vunpack.c.h.b16 %v579
        %v973 = vunpack.c.l.b16 %v580
        %v974 = vunpack.c.h.b16 %v580
        %v975 = vunpack.c.l.b16 %v581
        %v976 = vunpack.c.h.b16 %v581
        %v977 = vunpack.c.l.b16 %v582
        %v978 = vunpack.c.h.b16 %v582
        %v979 = vunpack.c.l.b16 %v583
        %v980 = vunpack.c.h.b16 %v583
        %v981 = vunpack.c.l.b16 %v584
        %v982 = vunpack.c.h.b16 %v584
        %v983 = vunpack.c.l.b16 %v585
        %v984 = vunpack.c.h.b16 %v585
        %v985 = vunpack.c.l.b16 %v586
        %v986 = vunpack.c.h.b16 %v586
        %v987 = vunpack.c.l.b16 %v587
        %v988 = vunpack.c.h.b16 %v587
        %v989 = vunpack.c.l.b16 %v588
        %v990 = vunpack.c.h.b16 %v588
        %v991 = vunpack.c.l.b16 %v589
        %v992 = vunpack.c.h.b16 %v589
        %v993 = vunpack.c.l.b16 %v590
        %v994 = vunpack.c.h.b16 %v590
        %v995 = vunpack.c.l.b16 %v591
        %v996 = vunpack.c.h.b16 %v591
        %v997 = vunpack.c.l.b16 %v592
        %v998 = vunpack.c.h.b16 %v592
        %v999 = vunpack.c.l.b16 %v593
        %v1000 = vunpack.c.h.b16 %v593
        %v1001 = vunpack.c.l.b16 %v594
        %v1002 = vunpack.c.h.b16 %v594
        %v1003 = vunpack.c.l.b16 %v595
        %v1004 = vunpack.c.h.b16 %v595
        %v1005 = vunpack.c.l.b16 %v596
        %v1006 = vunpack.c.h.b16 %v596
        %v1007 = vunpack.c.l.b16 %v597
        %v1008 = vunpack.c.h.b16 %v597
        %v1009 = vunpack.c.l.b16 %v598
        %v1010 = vunpack.c.h.b16 %v598
        %v1011 = vunpack.c.l.b16 %v599
        %v1012 = vunpack.c.h.b16 %v599
        %v1013 = vunpack.c.l.b16 %v600
        %v1014 = vunpack.c.h.b16 %v600
        %v1015 = vunpack.c.l.b16 %v601
        %v1016 = vunpack.c.h.b16 %v601
        %v1017 = vunpack.c.l.b16 %v602
        %v1018 = vunpack.c.h.b16 %v602
        %v1019 = vunpack.c.l.b16 %v603
        %v1020 = vunpack.c.h.b16 %v603
        %v1021 = vunpack.c.l.b16 %v604
        %v1022 = vunpack.c.h.b16 %v604
        %v1023 = vunpack.c.l.b16 %v605
        %v1024 = vunpack.c.h.b16 %v605
        %v1025 = vunpack.c.l.b16 %v606
        %v1026 = vunpack.c.h.b16 %v606
        %v1027 = vunpack.c.l.b16 %v607
        %v1028 = vunpack.c.h.b16 %v607
        %v1029 = vunpack.c.l.b16 %v608
        %v1030 = vunpack.c.h.b16 %v608
        %v1031 = vunpack.c.l.b16 %v609
        %v1032 = vunpack.c.h.b16 %v609
        %v1033 = vunpack.c.l.b16 %v610
        %v1034 = vunpack.c.h.b16 %v610
        %v1035 = vpack.c.b16 %v783, %v779
        %v1036 = vpack.c.b16 %v784, %v780
        %v1037 = vpack.c.b16 %v785, %v781
        %v1038 = vpack.c.b16 %v786, %v782
        %v1039 = vpack.c.b16 %v791, %v787
        %v1040 = vpack.c.b16 %v792, %v788
        %v1041 = vpack.c.b16 %v793, %v789
        %v1042 = vpack.c.b16 %v794, %v790
        %v1043 = vpack.c.b16 %v799, %v795
        %v1044 = vpack.c.b16 %v800, %v796
        %v1045 = vpack.c.b16 %v801, %v797
        %v1046 = vpack.c.b16 %v802, %v798
        %v1047 = vpack.c.b16 %v807, %v803
        %v1048 = vpack.c.b16 %v808, %v804
        %v1049 = vpack.c.b16 %v809, %v805
        %v1050 = vpack.c.b16 %v810, %v806
        %v1051 = vpack.c.b16 %v815, %v811
        %v1052 = vpack.c.b16 %v816, %v812
        %v1053 = vpack.c.b16 %v817, %v813
        %v1054 = vpack.c.b16 %v818, %v814
        %v1055 = vpack.c.b16 %v823, %v819
        %v1056 = vpack.c.b16 %v824, %v820
        %v1057 = vpack.c.b16 %v825, %v821
        %v1058 = vpack.c.b16 %v826, %v822
        %v1059 = vpack.c.b16 %v831, %v827
        %v1060 = vpack.c.b16 %v832, %v828
        %v1061 = vpack.c.b16 %v833, %v829
        %v1062 = vpack.c.b16 %v834, %v830
        %v1063 = vpack.c.b16 %v839, %v835
        %v1064 = vpack.c.b16 %v840, %v836
        %v1065 = vpack.c.b16 %v841, %v837
        %v1066 = vpack.c.b16 %v842, %v838
        %v1067 = vpack.c.b16 %v847, %v843
        %v1068 = vpack.c.b16 %v848, %v844
        %v1069 = vpack.c.b16 %v849, %v845
        %v1070 = vpack.c.b16 %v850, %v846
        %v1071 = vpack.c.b16 %v855, %v851
        %v1072 = vpack.c.b16 %v856, %v852
        %v1073 = vpack.c.b16 %v857, %v853
        %v1074 = vpack.c.b16 %v858, %v854
        %v1075 = vpack.c.b16 %v863, %v859
        %v1076 = vpack.c.b16 %v864, %v860
        %v1077 = vpack.c.b16 %v865, %v861
        %v1078 = vpack.c.b16 %v866, %v862
        %v1079 = vpack.c.b16 %v871, %v867
        %v1080 = vpack.c.b16 %v872, %v868
        %v1081 = vpack.c.b16 %v873, %v869
        %v1082 = vpack.c.b16 %v874, %v870
        %v1083 = vpack.c.b16 %v879, %v875
        %v1084 = vpack.c.b16 %v880, %v876
        %v1085 = vpack.c.b16 %v881, %v877
        %v1086 = vpack.c.b16 %v882, %v878
        %v1087 = vpack.c.b16 %v887, %v883
        %v1088 = vpack.c.b16 %v888, %v884
        %v1089 = vpack.c.b16 %v889, %v885
        %v1090 = vpack.c.b16 %v890, %v886
        %v1091 = vpack.c.b16 %v895, %v891
        %v1092 = vpack.c.b16 %v896, %v892
        %v1093 = vpack.c.b16 %v897, %v893
        %v1094 = vpack.c.b16 %v898, %v894
        %v1095 = vpack.c.b16 %v903, %v899
        %v1096 = vpack.c.b16 %v904, %v900
        %v1097 = vpack.c.b16 %v905, %v901
        %v1098 = vpack.c.b16 %v906, %v902
        %v1099 = vpack.c.b16 %v911, %v907
        %v1100 = vpack.c.b16 %v912, %v908
        %v1101 = vpack.c.b16 %v913, %v909
        %v1102 = vpack.c.b16 %v914, %v910
        %v1103 = vpack.c.b16 %v919, %v915
        %v1104 = vpack.c.b16 %v920, %v916
        %v1105 = vpack.c.b16 %v921, %v917
        %v1106 = vpack.c.b16 %v922, %v918
        %v1107 = vpack.c.b16 %v927, %v923
        %v1108 = vpack.c.b16 %v928, %v924
        %v1109 = vpack.c.b16 %v929, %v925
        %v1110 = vpack.c.b16 %v930, %v926
        %v1111 = vpack.c.b16 %v935, %v931
        %v1112 = vpack.c.b16 %v936, %v932
        %v1113 = vpack.c.b16 %v937, %v933
        %v1114 = vpack.c.b16 %v938, %v934
        %v1115 = vpack.c.b16 %v943, %v939
        %v1116 = vpack.c.b16 %v944, %v940
        %v1117 = vpack.c.b16 %v945, %v941
        %v1118 = vpack.c.b16 %v946, %v942
        %v1119 = vpack.c.b16 %v951, %v947
        %v1120 = vpack.c.b16 %v952, %v948
        %v1121 = vpack.c.b16 %v953, %v949
        %v1122 = vpack.c.b16 %v954, %v950
        %v1123 = vpack.c.b16 %v959, %v955
        %v1124 = vpack.c.b16 %v960, %v956
        %v1125 = vpack.c.b16 %v961, %v957
        %v1126 = vpack.c.b16 %v962, %v958
        %v1127 = vpack.c.b16 %v967, %v963
        %v1128 = vpack.c.b16 %v968, %v964
        %v1129 = vpack.c.b16 %v969, %v965
        %v1130 = vpack.c.b16 %v970, %v966
        %v1131 = vpack.c.b16 %v975, %v971
        %v1132 = vpack.c.b16 %v976, %v972
        %v1133 = vpack.c.b16 %v977, %v973
        %v1134 = vpack.c.b16 %v978, %v974
        %v1135 = vpack.c.b16 %v983, %v979
        %v1136 = vpack.c.b16 %v984, %v980
        %v1137 = vpack.c.b16 %v985, %v981
        %v1138 = vpack.c.b16 %v986, %v982
        %v1139 = vpack.c.b16 %v991, %v987
        %v1140 = vpack.c.b16 %v992, %v988
        %v1141 = vpack.c.b16 %v993, %v989
        %v1142 = vpack.c.b16 %v994, %v990
        %v1143 = vpack.c.b16 %v999, %v995
        %v1144 = vpack.c.b16 %v1000, %v996
        %v1145 = vpack.c.b16 %v1001, %v997
        %v1146 = vpack.c.b16 %v1002, %v998
        %v1147 = vpack.c.b16 %v1007, %v1003
        %v1148 = vpack.c.b16 %v1008, %v1004
        %v1149 = vpack.c.b16 %v1009, %v1005
        %v1150 = vpack.c.b16 %v1010, %v1006
        %v1151 = vpack.c.b16 %v1015, %v1011
        %v1152 = vpack.c.b16 %v1016, %v1012
        %v1153 = vpack.c.b16 %v1017, %v1013
        %v1154 = vpack.c.b16 %v1018, %v1014
        %v1155 = vpack.c.b16 %v1023, %v1019
        %v1156 = vpack.c.b16 %v1024, %v1020
        %v1157 = vpack.c.b16 %v1025, %v1021
        %v1158 = vpack.c.b16 %v1026, %v1022
        %v1159 = vpack.c.b16 %v1031, %v1027
        %v1160 = vpack.c.b16 %v1032, %v1028
        %v1161 = vpack.c.b16 %v1033, %v1029
        %v1162 = vpack.c.b16 %v1034, %v1030
        %1291 = vmatpush.bf16.msra.mxu0 %v1063
        %1292 = vmatpush.bf16.msra.mxu0 %v1059
        %1293 = vmatpush.bf16.msra.mxu0 %v1055
        %1294 = vmatpush.bf16.msra.mxu0 %v1051
        %1295 = vmatpush.bf16.msra.mxu0 %v1047
        %1296 = vmatpush.bf16.msra.mxu0 %v1043
        %1297 = vmatpush.bf16.msra.mxu0 %v1039
        %1298 = vmatpush.bf16.msra.mxu0 %v1035
        %1299 = vmatmul.bf16.gmra.mxu0 %v635
        %v1300 = vpop.f32.mrf.mxu0
        %v1301 = vadd.f32 0.0, %v1300
        %v1302 = vpop.f32.mrf.mxu0
        %v1303 = vadd.f32 0.0, %v1302
        %1304 = vmatmul.bf16.gmra.mxu0 %v639
        %v1305 = vpop.f32.mrf.mxu0
        %v1306 = vadd.f32 0.0, %v1305
        %v1307 = vpop.f32.mrf.mxu0
        %v1308 = vadd.f32 0.0, %v1307
        %1309 = vdwg.mxu0
        %1310 = vmatpush.bf16.msra.mxu0 %v1095
        %1311 = vmatpush.bf16.msra.mxu0 %v1091
        %1312 = vmatpush.bf16.msra.mxu0 %v1087
        %1313 = vmatpush.bf16.msra.mxu0 %v1083
        %1314 = vmatpush.bf16.msra.mxu0 %v1079
        %1315 = vmatpush.bf16.msra.mxu0 %v1075
        %1316 = vmatpush.bf16.msra.mxu0 %v1071
        %1317 = vmatpush.bf16.msra.mxu0 %v1067
        %1318 = vmatmul.bf16.gmra.mxu0 %v636
        %v1319 = vpop.f32.mrf.mxu0
        %v1320 = vadd.f32 %v1301, %v1319
        %v1321 = vpop.f32.mrf.mxu0
        %v1322 = vadd.f32 %v1303, %v1321
        %1323 = vmatmul.bf16.gmra.mxu0 %v640
        %v1324 = vpop.f32.mrf.mxu0
        %v1325 = vadd.f32 %v1306, %v1324
        %v1326 = vpop.f32.mrf.mxu0
        %v1327 = vadd.f32 %v1308, %v1326
        %1328 = vdwg.mxu0
        %1329 = vmatpush.bf16.msra.mxu0 %v1127
        %1330 = vmatpush.bf16.msra.mxu0 %v1123
        %1331 = vmatpush.bf16.msra.mxu0 %v1119
        %1332 = vmatpush.bf16.msra.mxu0 %v1115
        %1333 = vmatpush.bf16.msra.mxu0 %v1111
        %1334 = vmatpush.bf16.msra.mxu0 %v1107
        %1335 = vmatpush.bf16.msra.mxu0 %v1103
        %1336 = vmatpush.bf16.msra.mxu0 %v1099
        %1337 = vmatmul.bf16.gmra.mxu0 %v637
        %v1338 = vpop.f32.mrf.mxu0
        %v1339 = vadd.f32 %v1320, %v1338
        %v1340 = vpop.f32.mrf.mxu0
        %v1341 = vadd.f32 %v1322, %v1340
        %1342 = vmatmul.bf16.gmra.mxu0 %v641
        %v1343 = vpop.f32.mrf.mxu0
        %v1344 = vadd.f32 %v1325, %v1343
        %v1345 = vpop.f32.mrf.mxu0
        %v1346 = vadd.f32 %v1327, %v1345
        %1347 = vdwg.mxu0
        %1348 = vmatpush.bf16.msra.mxu0 %v1159
        %1349 = vmatpush.bf16.msra.mxu0 %v1155
        %1350 = vmatpush.bf16.msra.mxu0 %v1151
        %1351 = vmatpush.bf16.msra.mxu0 %v1147
        %1352 = vmatpush.bf16.msra.mxu0 %v1143
        %1353 = vmatpush.bf16.msra.mxu0 %v1139
        %1354 = vmatpush.bf16.msra.mxu0 %v1135
        %1355 = vmatpush.bf16.msra.mxu0 %v1131
        %1356 = vmatmul.bf16.gmra.mxu0 %v638
        %v1357 = vpop.f32.mrf.mxu0
        %v1358 = vadd.f32 %v1339, %v1357
        %v1359 = vpop.f32.mrf.mxu0
        %v1360 = vadd.f32 %v1341, %v1359
        %1361 = vmatmul.bf16.gmra.mxu0 %v642
        %v1362 = vpop.f32.mrf.mxu0
        %v1363 = vadd.f32 %v1344, %v1362
        %v1364 = vpop.f32.mrf.mxu0
        %v1365 = vadd.f32 %v1346, %v1364
        %1366 = vdwg.mxu0
        %1367 = vmatpush.bf16.msra.mxu0 %v1064
        %1368 = vmatpush.bf16.msra.mxu0 %v1060
        %1369 = vmatpush.bf16.msra.mxu0 %v1056
        %1370 = vmatpush.bf16.msra.mxu0 %v1052
        %1371 = vmatpush.bf16.msra.mxu0 %v1048
        %1372 = vmatpush.bf16.msra.mxu0 %v1044
        %1373 = vmatpush.bf16.msra.mxu0 %v1040
        %1374 = vmatpush.bf16.msra.mxu0 %v1036
        %1375 = vmatmul.bf16.gmra.mxu0 %v635
        %v1376 = vpop.f32.mrf.mxu0
        %v1377 = vadd.f32 0.0, %v1376
        %v1378 = vpop.f32.mrf.mxu0
        %v1379 = vadd.f32 0.0, %v1378
        %1380 = vmatmul.bf16.gmra.mxu0 %v639
        %v1381 = vpop.f32.mrf.mxu0
        %v1382 = vadd.f32 0.0, %v1381
        %v1383 = vpop.f32.mrf.mxu0
        %v1384 = vadd.f32 0.0, %v1383
        %1385 = vdwg.mxu0
        %1386 = vmatpush.bf16.msra.mxu0 %v1096
        %1387 = vmatpush.bf16.msra.mxu0 %v1092
        %1388 = vmatpush.bf16.msra.mxu0 %v1088
        %1389 = vmatpush.bf16.msra.mxu0 %v1084
        %1390 = vmatpush.bf16.msra.mxu0 %v1080
        %1391 = vmatpush.bf16.msra.mxu0 %v1076
        %1392 = vmatpush.bf16.msra.mxu0 %v1072
        %1393 = vmatpush.bf16.msra.mxu0 %v1068
        %1394 = vmatmul.bf16.gmra.mxu0 %v636
        %v1395 = vpop.f32.mrf.mxu0
        %v1396 = vadd.f32 %v1377, %v1395
        %v1397 = vpop.f32.mrf.mxu0
        %v1398 = vadd.f32 %v1379, %v1397
        %1399 = vmatmul.bf16.gmra.mxu0 %v640
        %v1400 = vpop.f32.mrf.mxu0
        %v1401 = vadd.f32 %v1382, %v1400
        %v1402 = vpop.f32.mrf.mxu0
        %v1403 = vadd.f32 %v1384, %v1402
        %1404 = vdwg.mxu0
        %1405 = vmatpush.bf16.msra.mxu0 %v1128
        %1406 = vmatpush.bf16.msra.mxu0 %v1124
        %1407 = vmatpush.bf16.msra.mxu0 %v1120
        %1408 = vmatpush.bf16.msra.mxu0 %v1116
        %1409 = vmatpush.bf16.msra.mxu0 %v1112
        %1410 = vmatpush.bf16.msra.mxu0 %v1108
        %1411 = vmatpush.bf16.msra.mxu0 %v1104
        %1412 = vmatpush.bf16.msra.mxu0 %v1100
        %1413 = vmatmul.bf16.gmra.mxu0 %v637
        %v1414 = vpop.f32.mrf.mxu0
        %v1415 = vadd.f32 %v1396, %v1414
        %v1416 = vpop.f32.mrf.mxu0
        %v1417 = vadd.f32 %v1398, %v1416
        %1418 = vmatmul.bf16.gmra.mxu0 %v641
        %v1419 = vpop.f32.mrf.mxu0
        %v1420 = vadd.f32 %v1401, %v1419
        %v1421 = vpop.f32.mrf.mxu0
        %v1422 = vadd.f32 %v1403, %v1421
        %1423 = vdwg.mxu0
        %1424 = vmatpush.bf16.msra.mxu0 %v1160
        %1425 = vmatpush.bf16.msra.mxu0 %v1156
        %1426 = vmatpush.bf16.msra.mxu0 %v1152
        %1427 = vmatpush.bf16.msra.mxu0 %v1148
        %1428 = vmatpush.bf16.msra.mxu0 %v1144
        %1429 = vmatpush.bf16.msra.mxu0 %v1140
        %1430 = vmatpush.bf16.msra.mxu0 %v1136
        %1431 = vmatpush.bf16.msra.mxu0 %v1132
        %1432 = vmatmul.bf16.gmra.mxu0 %v638
        %v1433 = vpop.f32.mrf.mxu0
        %v1434 = vadd.f32 %v1415, %v1433
        %v1435 = vpop.f32.mrf.mxu0
        %v1436 = vadd.f32 %v1417, %v1435
        %1437 = vmatmul.bf16.gmra.mxu0 %v642
        %v1438 = vpop.f32.mrf.mxu0
        %v1439 = vadd.f32 %v1420, %v1438
        %v1440 = vpop.f32.mrf.mxu0
        %v1441 = vadd.f32 %v1422, %v1440
        %1442 = vdwg.mxu0
        %1443 = vmatpush.bf16.msra.mxu0 %v1065
        %1444 = vmatpush.bf16.msra.mxu0 %v1061
        %1445 = vmatpush.bf16.msra.mxu0 %v1057
        %1446 = vmatpush.bf16.msra.mxu0 %v1053
        %1447 = vmatpush.bf16.msra.mxu0 %v1049
        %1448 = vmatpush.bf16.msra.mxu0 %v1045
        %1449 = vmatpush.bf16.msra.mxu0 %v1041
        %1450 = vmatpush.bf16.msra.mxu0 %v1037
        %1451 = vmatmul.bf16.gmra.mxu0 %v635
        %v1452 = vpop.f32.mrf.mxu0
        %v1453 = vadd.f32 0.0, %v1452
        %v1454 = vpop.f32.mrf.mxu0
        %v1455 = vadd.f32 0.0, %v1454
        %1456 = vmatmul.bf16.gmra.mxu0 %v639
        %v1457 = vpop.f32.mrf.mxu0
        %v1458 = vadd.f32 0.0, %v1457
        %v1459 = vpop.f32.mrf.mxu0
        %v1460 = vadd.f32 0.0, %v1459
        %1461 = vdwg.mxu0
        %1462 = vmatpush.bf16.msra.mxu0 %v1097
        %1463 = vmatpush.bf16.msra.mxu0 %v1093
        %1464 = vmatpush.bf16.msra.mxu0 %v1089
        %1465 = vmatpush.bf16.msra.mxu0 %v1085
        %1466 = vmatpush.bf16.msra.mxu0 %v1081
        %1467 = vmatpush.bf16.msra.mxu0 %v1077
        %1468 = vmatpush.bf16.msra.mxu0 %v1073
        %1469 = vmatpush.bf16.msra.mxu0 %v1069
        %1470 = vmatmul.bf16.gmra.mxu0 %v636
        %v1471 = vpop.f32.mrf.mxu0
        %v1472 = vadd.f32 %v1453, %v1471
        %v1473 = vpop.f32.mrf.mxu0
        %v1474 = vadd.f32 %v1455, %v1473
        %1475 = vmatmul.bf16.gmra.mxu0 %v640
        %v1476 = vpop.f32.mrf.mxu0
        %v1477 = vadd.f32 %v1458, %v1476
        %v1478 = vpop.f32.mrf.mxu0
        %v1479 = vadd.f32 %v1460, %v1478
        %1480 = vdwg.mxu0
        %1481 = vmatpush.bf16.msra.mxu0 %v1129
        %1482 = vmatpush.bf16.msra.mxu0 %v1125
        %1483 = vmatpush.bf16.msra.mxu0 %v1121
        %1484 = vmatpush.bf16.msra.mxu0 %v1117
        %1485 = vmatpush.bf16.msra.mxu0 %v1113
        %1486 = vmatpush.bf16.msra.mxu0 %v1109
        %1487 = vmatpush.bf16.msra.mxu0 %v1105
        %1488 = vmatpush.bf16.msra.mxu0 %v1101
        %1489 = vmatmul.bf16.gmra.mxu0 %v637
        %v1490 = vpop.f32.mrf.mxu0
        %v1491 = vadd.f32 %v1472, %v1490
        %v1492 = vpop.f32.mrf.mxu0
        %v1493 = vadd.f32 %v1474, %v1492
        %1494 = vmatmul.bf16.gmra.mxu0 %v641
        %v1495 = vpop.f32.mrf.mxu0
        %v1496 = vadd.f32 %v1477, %v1495
        %v1497 = vpop.f32.mrf.mxu0
        %v1498 = vadd.f32 %v1479, %v1497
        %1499 = vdwg.mxu0
        %1500 = vmatpush.bf16.msra.mxu0 %v1161
        %1501 = vmatpush.bf16.msra.mxu0 %v1157
        %1502 = vmatpush.bf16.msra.mxu0 %v1153
        %1503 = vmatpush.bf16.msra.mxu0 %v1149
        %1504 = vmatpush.bf16.msra.mxu0 %v1145
        %1505 = vmatpush.bf16.msra.mxu0 %v1141
        %1506 = vmatpush.bf16.msra.mxu0 %v1137
        %1507 = vmatpush.bf16.msra.mxu0 %v1133
        %1508 = vmatmul.bf16.gmra.mxu0 %v638
        %v1509 = vpop.f32.mrf.mxu0
        %v1510 = vadd.f32 %v1491, %v1509
        %v1511 = vpop.f32.mrf.mxu0
        %v1512 = vadd.f32 %v1493, %v1511
        %1513 = vmatmul.bf16.gmra.mxu0 %v642
        %v1514 = vpop.f32.mrf.mxu0
        %v1515 = vadd.f32 %v1496, %v1514
        %v1516 = vpop.f32.mrf.mxu0
        %v1517 = vadd.f32 %v1498, %v1516
        %1518 = vdwg.mxu0
        %1519 = vmatpush.bf16.msra.mxu0 %v1066
        %1520 = vmatpush.bf16.msra.mxu0 %v1062
        %1521 = vmatpush.bf16.msra.mxu0 %v1058
        %1522 = vmatpush.bf16.msra.mxu0 %v1054
        %1523 = vmatpush.bf16.msra.mxu0 %v1050
        %1524 = vmatpush.bf16.msra.mxu0 %v1046
        %1525 = vmatpush.bf16.msra.mxu0 %v1042
        %1526 = vmatpush.bf16.msra.mxu0 %v1038
        %1527 = vmatmul.bf16.gmra.mxu0 %v635
        %v1528 = vpop.f32.mrf.mxu0
        %v1529 = vadd.f32 0.0, %v1528
        %v1530 = vpop.f32.mrf.mxu0
        %v1531 = vadd.f32 0.0, %v1530
        %1532 = vmatmul.bf16.gmra.mxu0 %v639
        %v1533 = vpop.f32.mrf.mxu0
        %v1534 = vadd.f32 0.0, %v1533
        %v1535 = vpop.f32.mrf.mxu0
        %v1536 = vadd.f32 0.0, %v1535
        %1537 = vdwg.mxu0
        %1538 = vmatpush.bf16.msra.mxu0 %v1098
        %1539 = vmatpush.bf16.msra.mxu0 %v1094
        %1540 = vmatpush.bf16.msra.mxu0 %v1090
        %1541 = vmatpush.bf16.msra.mxu0 %v1086
        %1542 = vmatpush.bf16.msra.mxu0 %v1082
        %1543 = vmatpush.bf16.msra.mxu0 %v1078
        %1544 = vmatpush.bf16.msra.mxu0 %v1074
        %1545 = vmatpush.bf16.msra.mxu0 %v1070
        %1546 = vmatmul.bf16.gmra.mxu0 %v636
        %v1547 = vpop.f32.mrf.mxu0
        %v1548 = vadd.f32 %v1529, %v1547
        %v1549 = vpop.f32.mrf.mxu0
        %v1550 = vadd.f32 %v1531, %v1549
        %1551 = vmatmul.bf16.gmra.mxu0 %v640
        %v1552 = vpop.f32.mrf.mxu0
        %v1553 = vadd.f32 %v1534, %v1552
        %v1554 = vpop.f32.mrf.mxu0
        %v1555 = vadd.f32 %v1536, %v1554
        %1556 = vdwg.mxu0
        %1557 = vmatpush.bf16.msra.mxu0 %v1130
        %1558 = vmatpush.bf16.msra.mxu0 %v1126
        %1559 = vmatpush.bf16.msra.mxu0 %v1122
        %1560 = vmatpush.bf16.msra.mxu0 %v1118
        %1561 = vmatpush.bf16.msra.mxu0 %v1114
        %1562 = vmatpush.bf16.msra.mxu0 %v1110
        %1563 = vmatpush.bf16.msra.mxu0 %v1106
        %1564 = vmatpush.bf16.msra.mxu0 %v1102
        %1565 = vmatmul.bf16.gmra.mxu0 %v637
        %v1566 = vpop.f32.mrf.mxu0
        %v1567 = vadd.f32 %v1548, %v1566
        %v1568 = vpop.f32.mrf.mxu0
        %v1569 = vadd.f32 %v1550, %v1568
        %1570 = vmatmul.bf16.gmra.mxu0 %v641
        %v1571 = vpop.f32.mrf.mxu0
        %v1572 = vadd.f32 %v1553, %v1571
        %v1573 = vpop.f32.mrf.mxu0
        %v1574 = vadd.f32 %v1555, %v1573
        %1575 = vdwg.mxu0
        %1576 = vmatpush.bf16.msra.mxu0 %v1162
        %1577 = vmatpush.bf16.msra.mxu0 %v1158
        %1578 = vmatpush.bf16.msra.mxu0 %v1154
        %1579 = vmatpush.bf16.msra.mxu0 %v1150
        %1580 = vmatpush.bf16.msra.mxu0 %v1146
        %1581 = vmatpush.bf16.msra.mxu0 %v1142
        %1582 = vmatpush.bf16.msra.mxu0 %v1138
        %1583 = vmatpush.bf16.msra.mxu0 %v1134
        %1584 = vmatmul.bf16.gmra.mxu0 %v638
        %v1585 = vpop.f32.mrf.mxu0
        %v1586 = vadd.f32 %v1567, %v1585
        %v1587 = vpop.f32.mrf.mxu0
        %v1588 = vadd.f32 %v1569, %v1587
        %1589 = vmatmul.bf16.gmra.mxu0 %v642
        %v1590 = vpop.f32.mrf.mxu0
        %v1591 = vadd.f32 %v1572, %v1590
        %v1592 = vpop.f32.mrf.mxu0
        %v1593 = vadd.f32 %v1574, %v1592
        %1594 = vdwg.mxu0
        %v1603 = vunpack.c.l.b16 %v339
        %v1604 = vunpack.c.h.b16 %v339
        %v1605 = vunpack.c.l.b16 %v340
        %v1606 = vunpack.c.h.b16 %v340
        %v1607 = vunpack.c.l.b16 %v341
        %v1608 = vunpack.c.h.b16 %v341
        %v1609 = vunpack.c.l.b16 %v342
        %v1610 = vunpack.c.h.b16 %v342
        %v1611 = vunpack.c.l.b16 %v343
        %v1612 = vunpack.c.h.b16 %v343
        %v1613 = vunpack.c.l.b16 %v344
        %v1614 = vunpack.c.h.b16 %v344
        %v1615 = vunpack.c.l.b16 %v345
        %v1616 = vunpack.c.h.b16 %v345
        %v1617 = vunpack.c.l.b16 %v346
        %v1618 = vunpack.c.h.b16 %v346
        %v1619 = vpack.c.b16 %v1607, %v1603
        %v1620 = vpack.c.b16 %v1608, %v1604
        %v1621 = vpack.c.b16 %v1609, %v1605
        %v1622 = vpack.c.b16 %v1610, %v1606
        %v1623 = vpack.c.b16 %v1615, %v1611
        %v1624 = vpack.c.b16 %v1616, %v1612
        %v1625 = vpack.c.b16 %v1617, %v1613
        %v1626 = vpack.c.b16 %v1618, %v1614
        %v1763 = vunpack.c.l.b16 %v347
        %v1764 = vunpack.c.h.b16 %v347
        %v1765 = vunpack.c.l.b16 %v348
        %v1766 = vunpack.c.h.b16 %v348
        %v1767 = vunpack.c.l.b16 %v349
        %v1768 = vunpack.c.h.b16 %v349
        %v1769 = vunpack.c.l.b16 %v350
        %v1770 = vunpack.c.h.b16 %v350
        %v1771 = vunpack.c.l.b16 %v351
        %v1772 = vunpack.c.h.b16 %v351
        %v1773 = vunpack.c.l.b16 %v352
        %v1774 = vunpack.c.h.b16 %v352
        %v1775 = vunpack.c.l.b16 %v353
        %v1776 = vunpack.c.h.b16 %v353
        %v1777 = vunpack.c.l.b16 %v354
        %v1778 = vunpack.c.h.b16 %v354
        %v1779 = vunpack.c.l.b16 %v355
        %v1780 = vunpack.c.h.b16 %v355
        %v1781 = vunpack.c.l.b16 %v356
        %v1782 = vunpack.c.h.b16 %v356
        %v1783 = vunpack.c.l.b16 %v357
        %v1784 = vunpack.c.h.b16 %v357
        %v1785 = vunpack.c.l.b16 %v358
        %v1786 = vunpack.c.h.b16 %v358
        %v1787 = vunpack.c.l.b16 %v359
        %v1788 = vunpack.c.h.b16 %v359
        %v1789 = vunpack.c.l.b16 %v360
        %v1790 = vunpack.c.h.b16 %v360
        %v1791 = vunpack.c.l.b16 %v361
        %v1792 = vunpack.c.h.b16 %v361
        %v1793 = vunpack.c.l.b16 %v362
        %v1794 = vunpack.c.h.b16 %v362
        %v1795 = vunpack.c.l.b16 %v363
        %v1796 = vunpack.c.h.b16 %v363
        %v1797 = vunpack.c.l.b16 %v364
        %v1798 = vunpack.c.h.b16 %v364
        %v1799 = vunpack.c.l.b16 %v365
        %v1800 = vunpack.c.h.b16 %v365
        %v1801 = vunpack.c.l.b16 %v366
        %v1802 = vunpack.c.h.b16 %v366
        %v1803 = vunpack.c.l.b16 %v367
        %v1804 = vunpack.c.h.b16 %v367
        %v1805 = vunpack.c.l.b16 %v368
        %v1806 = vunpack.c.h.b16 %v368
        %v1807 = vunpack.c.l.b16 %v369
        %v1808 = vunpack.c.h.b16 %v369
        %v1809 = vunpack.c.l.b16 %v370
        %v1810 = vunpack.c.h.b16 %v370
        %v1811 = vunpack.c.l.b16 %v371
        %v1812 = vunpack.c.h.b16 %v371
        %v1813 = vunpack.c.l.b16 %v372
        %v1814 = vunpack.c.h.b16 %v372
        %v1815 = vunpack.c.l.b16 %v373
        %v1816 = vunpack.c.h.b16 %v373
        %v1817 = vunpack.c.l.b16 %v374
        %v1818 = vunpack.c.h.b16 %v374
        %v1819 = vunpack.c.l.b16 %v375
        %v1820 = vunpack.c.h.b16 %v375
        %v1821 = vunpack.c.l.b16 %v376
        %v1822 = vunpack.c.h.b16 %v376
        %v1823 = vunpack.c.l.b16 %v377
        %v1824 = vunpack.c.h.b16 %v377
        %v1825 = vunpack.c.l.b16 %v378
        %v1826 = vunpack.c.h.b16 %v378
        %v1827 = vunpack.c.l.b16 %v379
        %v1828 = vunpack.c.h.b16 %v379
        %v1829 = vunpack.c.l.b16 %v380
        %v1830 = vunpack.c.h.b16 %v380
        %v1831 = vunpack.c.l.b16 %v381
        %v1832 = vunpack.c.h.b16 %v381
        %v1833 = vunpack.c.l.b16 %v382
        %v1834 = vunpack.c.h.b16 %v382
        %v1835 = vunpack.c.l.b16 %v383
        %v1836 = vunpack.c.h.b16 %v383
        %v1837 = vunpack.c.l.b16 %v384
        %v1838 = vunpack.c.h.b16 %v384
        %v1839 = vunpack.c.l.b16 %v385
        %v1840 = vunpack.c.h.b16 %v385
        %v1841 = vunpack.c.l.b16 %v386
        %v1842 = vunpack.c.h.b16 %v386
        %v1843 = vunpack.c.l.b16 %v387
        %v1844 = vunpack.c.h.b16 %v387
        %v1845 = vunpack.c.l.b16 %v388
        %v1846 = vunpack.c.h.b16 %v388
        %v1847 = vunpack.c.l.b16 %v389
        %v1848 = vunpack.c.h.b16 %v389
        %v1849 = vunpack.c.l.b16 %v390
        %v1850 = vunpack.c.h.b16 %v390
        %v1851 = vunpack.c.l.b16 %v391
        %v1852 = vunpack.c.h.b16 %v391
        %v1853 = vunpack.c.l.b16 %v392
        %v1854 = vunpack.c.h.b16 %v392
        %v1855 = vunpack.c.l.b16 %v393
        %v1856 = vunpack.c.h.b16 %v393
        %v1857 = vunpack.c.l.b16 %v394
        %v1858 = vunpack.c.h.b16 %v394
        %v1859 = vunpack.c.l.b16 %v395
        %v1860 = vunpack.c.h.b16 %v395
        %v1861 = vunpack.c.l.b16 %v396
        %v1862 = vunpack.c.h.b16 %v396
        %v1863 = vunpack.c.l.b16 %v397
        %v1864 = vunpack.c.h.b16 %v397
        %v1865 = vunpack.c.l.b16 %v398
        %v1866 = vunpack.c.h.b16 %v398
        %v1867 = vunpack.c.l.b16 %v399
        %v1868 = vunpack.c.h.b16 %v399
        %v1869 = vunpack.c.l.b16 %v400
        %v1870 = vunpack.c.h.b16 %v400
        %v1871 = vunpack.c.l.b16 %v401
        %v1872 = vunpack.c.h.b16 %v401
        %v1873 = vunpack.c.l.b16 %v402
        %v1874 = vunpack.c.h.b16 %v402
        %v1875 = vunpack.c.l.b16 %v403
        %v1876 = vunpack.c.h.b16 %v403
        %v1877 = vunpack.c.l.b16 %v404
        %v1878 = vunpack.c.h.b16 %v404
        %v1879 = vunpack.c.l.b16 %v405
        %v1880 = vunpack.c.h.b16 %v405
        %v1881 = vunpack.c.l.b16 %v406
        %v1882 = vunpack.c.h.b16 %v406
        %v1883 = vunpack.c.l.b16 %v407
        %v1884 = vunpack.c.h.b16 %v407
        %v1885 = vunpack.c.l.b16 %v408
        %v1886 = vunpack.c.h.b16 %v408
        %v1887 = vunpack.c.l.b16 %v409
        %v1888 = vunpack.c.h.b16 %v409
        %v1889 = vunpack.c.l.b16 %v410
        %v1890 = vunpack.c.h.b16 %v410
        %v1891 = vunpack.c.l.b16 %v411
        %v1892 = vunpack.c.h.b16 %v411
        %v1893 = vunpack.c.l.b16 %v412
        %v1894 = vunpack.c.h.b16 %v412
        %v1895 = vunpack.c.l.b16 %v413
        %v1896 = vunpack.c.h.b16 %v413
        %v1897 = vunpack.c.l.b16 %v414
        %v1898 = vunpack.c.h.b16 %v414
        %v1899 = vunpack.c.l.b16 %v415
        %v1900 = vunpack.c.h.b16 %v415
        %v1901 = vunpack.c.l.b16 %v416
        %v1902 = vunpack.c.h.b16 %v416
        %v1903 = vunpack.c.l.b16 %v417
        %v1904 = vunpack.c.h.b16 %v417
        %v1905 = vunpack.c.l.b16 %v418
        %v1906 = vunpack.c.h.b16 %v418
        %v1907 = vunpack.c.l.b16 %v419
        %v1908 = vunpack.c.h.b16 %v419
        %v1909 = vunpack.c.l.b16 %v420
        %v1910 = vunpack.c.h.b16 %v420
        %v1911 = vunpack.c.l.b16 %v421
        %v1912 = vunpack.c.h.b16 %v421
        %v1913 = vunpack.c.l.b16 %v422
        %v1914 = vunpack.c.h.b16 %v422
        %v1915 = vunpack.c.l.b16 %v423
        %v1916 = vunpack.c.h.b16 %v423
        %v1917 = vunpack.c.l.b16 %v424
        %v1918 = vunpack.c.h.b16 %v424
        %v1919 = vunpack.c.l.b16 %v425
        %v1920 = vunpack.c.h.b16 %v425
        %v1921 = vunpack.c.l.b16 %v426
        %v1922 = vunpack.c.h.b16 %v426
        %v1923 = vunpack.c.l.b16 %v427
        %v1924 = vunpack.c.h.b16 %v427
        %v1925 = vunpack.c.l.b16 %v428
        %v1926 = vunpack.c.h.b16 %v428
        %v1927 = vunpack.c.l.b16 %v429
        %v1928 = vunpack.c.h.b16 %v429
        %v1929 = vunpack.c.l.b16 %v430
        %v1930 = vunpack.c.h.b16 %v430
        %v1931 = vunpack.c.l.b16 %v431
        %v1932 = vunpack.c.h.b16 %v431
        %v1933 = vunpack.c.l.b16 %v432
        %v1934 = vunpack.c.h.b16 %v432
        %v1935 = vunpack.c.l.b16 %v433
        %v1936 = vunpack.c.h.b16 %v433
        %v1937 = vunpack.c.l.b16 %v434
        %v1938 = vunpack.c.h.b16 %v434
        %v1939 = vunpack.c.l.b16 %v435
        %v1940 = vunpack.c.h.b16 %v435
        %v1941 = vunpack.c.l.b16 %v436
        %v1942 = vunpack.c.h.b16 %v436
        %v1943 = vunpack.c.l.b16 %v437
        %v1944 = vunpack.c.h.b16 %v437
        %v1945 = vunpack.c.l.b16 %v438
        %v1946 = vunpack.c.h.b16 %v438
        %v1947 = vunpack.c.l.b16 %v439
        %v1948 = vunpack.c.h.b16 %v439
        %v1949 = vunpack.c.l.b16 %v440
        %v1950 = vunpack.c.h.b16 %v440
        %v1951 = vunpack.c.l.b16 %v441
        %v1952 = vunpack.c.h.b16 %v441
        %v1953 = vunpack.c.l.b16 %v442
        %v1954 = vunpack.c.h.b16 %v442
        %v1955 = vunpack.c.l.b16 %v443
        %v1956 = vunpack.c.h.b16 %v443
        %v1957 = vunpack.c.l.b16 %v444
        %v1958 = vunpack.c.h.b16 %v444
        %v1959 = vunpack.c.l.b16 %v445
        %v1960 = vunpack.c.h.b16 %v445
        %v1961 = vunpack.c.l.b16 %v446
        %v1962 = vunpack.c.h.b16 %v446
        %v1963 = vunpack.c.l.b16 %v447
        %v1964 = vunpack.c.h.b16 %v447
        %v1965 = vunpack.c.l.b16 %v448
        %v1966 = vunpack.c.h.b16 %v448
        %v1967 = vunpack.c.l.b16 %v449
        %v1968 = vunpack.c.h.b16 %v449
        %v1969 = vunpack.c.l.b16 %v450
        %v1970 = vunpack.c.h.b16 %v450
        %v1971 = vunpack.c.l.b16 %v451
        %v1972 = vunpack.c.h.b16 %v451
        %v1973 = vunpack.c.l.b16 %v452
        %v1974 = vunpack.c.h.b16 %v452
        %v1975 = vunpack.c.l.b16 %v453
        %v1976 = vunpack.c.h.b16 %v453
        %v1977 = vunpack.c.l.b16 %v454
        %v1978 = vunpack.c.h.b16 %v454
        %v1979 = vunpack.c.l.b16 %v455
        %v1980 = vunpack.c.h.b16 %v455
        %v1981 = vunpack.c.l.b16 %v456
        %v1982 = vunpack.c.h.b16 %v456
        %v1983 = vunpack.c.l.b16 %v457
        %v1984 = vunpack.c.h.b16 %v457
        %v1985 = vunpack.c.l.b16 %v458
        %v1986 = vunpack.c.h.b16 %v458
        %v1987 = vunpack.c.l.b16 %v459
        %v1988 = vunpack.c.h.b16 %v459
        %v1989 = vunpack.c.l.b16 %v460
        %v1990 = vunpack.c.h.b16 %v460
        %v1991 = vunpack.c.l.b16 %v461
        %v1992 = vunpack.c.h.b16 %v461
        %v1993 = vunpack.c.l.b16 %v462
        %v1994 = vunpack.c.h.b16 %v462
        %v1995 = vunpack.c.l.b16 %v463
        %v1996 = vunpack.c.h.b16 %v463
        %v1997 = vunpack.c.l.b16 %v464
        %v1998 = vunpack.c.h.b16 %v464
        %v1999 = vunpack.c.l.b16 %v465
        %v2000 = vunpack.c.h.b16 %v465
        %v2001 = vunpack.c.l.b16 %v466
        %v2002 = vunpack.c.h.b16 %v466
        %v2003 = vunpack.c.l.b16 %v467
        %v2004 = vunpack.c.h.b16 %v467
        %v2005 = vunpack.c.l.b16 %v468
        %v2006 = vunpack.c.h.b16 %v468
        %v2007 = vunpack.c.l.b16 %v469
        %v2008 = vunpack.c.h.b16 %v469
        %v2009 = vunpack.c.l.b16 %v470
        %v2010 = vunpack.c.h.b16 %v470
        %v2011 = vunpack.c.l.b16 %v471
        %v2012 = vunpack.c.h.b16 %v471
        %v2013 = vunpack.c.l.b16 %v472
        %v2014 = vunpack.c.h.b16 %v472
        %v2015 = vunpack.c.l.b16 %v473
        %v2016 = vunpack.c.h.b16 %v473
        %v2017 = vunpack.c.l.b16 %v474
        %v2018 = vunpack.c.h.b16 %v474
        %v2019 = vpack.c.b16 %v1767, %v1763
        %v2020 = vpack.c.b16 %v1768, %v1764
        %v2021 = vpack.c.b16 %v1769, %v1765
        %v2022 = vpack.c.b16 %v1770, %v1766
        %v2023 = vpack.c.b16 %v1775, %v1771
        %v2024 = vpack.c.b16 %v1776, %v1772
        %v2025 = vpack.c.b16 %v1777, %v1773
        %v2026 = vpack.c.b16 %v1778, %v1774
        %v2027 = vpack.c.b16 %v1783, %v1779
        %v2028 = vpack.c.b16 %v1784, %v1780
        %v2029 = vpack.c.b16 %v1785, %v1781
        %v2030 = vpack.c.b16 %v1786, %v1782
        %v2031 = vpack.c.b16 %v1791, %v1787
        %v2032 = vpack.c.b16 %v1792, %v1788
        %v2033 = vpack.c.b16 %v1793, %v1789
        %v2034 = vpack.c.b16 %v1794, %v1790
        %v2035 = vpack.c.b16 %v1799, %v1795
        %v2036 = vpack.c.b16 %v1800, %v1796
        %v2037 = vpack.c.b16 %v1801, %v1797
        %v2038 = vpack.c.b16 %v1802, %v1798
        %v2039 = vpack.c.b16 %v1807, %v1803
        %v2040 = vpack.c.b16 %v1808, %v1804
        %v2041 = vpack.c.b16 %v1809, %v1805
        %v2042 = vpack.c.b16 %v1810, %v1806
        %v2043 = vpack.c.b16 %v1815, %v1811
        %v2044 = vpack.c.b16 %v1816, %v1812
        %v2045 = vpack.c.b16 %v1817, %v1813
        %v2046 = vpack.c.b16 %v1818, %v1814
        %v2047 = vpack.c.b16 %v1823, %v1819
        %v2048 = vpack.c.b16 %v1824, %v1820
        %v2049 = vpack.c.b16 %v1825, %v1821
        %v2050 = vpack.c.b16 %v1826, %v1822
        %v2051 = vpack.c.b16 %v1831, %v1827
        %v2052 = vpack.c.b16 %v1832, %v1828
        %v2053 = vpack.c.b16 %v1833, %v1829
        %v2054 = vpack.c.b16 %v1834, %v1830
        %v2055 = vpack.c.b16 %v1839, %v1835
        %v2056 = vpack.c.b16 %v1840, %v1836
        %v2057 = vpack.c.b16 %v1841, %v1837
        %v2058 = vpack.c.b16 %v1842, %v1838
        %v2059 = vpack.c.b16 %v1847, %v1843
        %v2060 = vpack.c.b16 %v1848, %v1844
        %v2061 = vpack.c.b16 %v1849, %v1845
        %v2062 = vpack.c.b16 %v1850, %v1846
        %v2063 = vpack.c.b16 %v1855, %v1851
        %v2064 = vpack.c.b16 %v1856, %v1852
        %v2065 = vpack.c.b16 %v1857, %v1853
        %v2066 = vpack.c.b16 %v1858, %v1854
        %v2067 = vpack.c.b16 %v1863, %v1859
        %v2068 = vpack.c.b16 %v1864, %v1860
        %v2069 = vpack.c.b16 %v1865, %v1861
        %v2070 = vpack.c.b16 %v1866, %v1862
        %v2071 = vpack.c.b16 %v1871, %v1867
        %v2072 = vpack.c.b16 %v1872, %v1868
        %v2073 = vpack.c.b16 %v1873, %v1869
        %v2074 = vpack.c.b16 %v1874, %v1870
        %v2075 = vpack.c.b16 %v1879, %v1875
        %v2076 = vpack.c.b16 %v1880, %v1876
        %v2077 = vpack.c.b16 %v1881, %v1877
        %v2078 = vpack.c.b16 %v1882, %v1878
        %v2079 = vpack.c.b16 %v1887, %v1883
        %v2080 = vpack.c.b16 %v1888, %v1884
        %v2081 = vpack.c.b16 %v1889, %v1885
        %v2082 = vpack.c.b16 %v1890, %v1886
        %v2083 = vpack.c.b16 %v1895, %v1891
        %v2084 = vpack.c.b16 %v1896, %v1892
        %v2085 = vpack.c.b16 %v1897, %v1893
        %v2086 = vpack.c.b16 %v1898, %v1894
        %v2087 = vpack.c.b16 %v1903, %v1899
        %v2088 = vpack.c.b16 %v1904, %v1900
        %v2089 = vpack.c.b16 %v1905, %v1901
        %v2090 = vpack.c.b16 %v1906, %v1902
        %v2091 = vpack.c.b16 %v1911, %v1907
        %v2092 = vpack.c.b16 %v1912, %v1908
        %v2093 = vpack.c.b16 %v1913, %v1909
        %v2094 = vpack.c.b16 %v1914, %v1910
        %v2095 = vpack.c.b16 %v1919, %v1915
        %v2096 = vpack.c.b16 %v1920, %v1916
        %v2097 = vpack.c.b16 %v1921, %v1917
        %v2098 = vpack.c.b16 %v1922, %v1918
        %v2099 = vpack.c.b16 %v1927, %v1923
        %v2100 = vpack.c.b16 %v1928, %v1924
        %v2101 = vpack.c.b16 %v1929, %v1925
        %v2102 = vpack.c.b16 %v1930, %v1926
        %v2103 = vpack.c.b16 %v1935, %v1931
        %v2104 = vpack.c.b16 %v1936, %v1932
        %v2105 = vpack.c.b16 %v1937, %v1933
        %v2106 = vpack.c.b16 %v1938, %v1934
        %v2107 = vpack.c.b16 %v1943, %v1939
        %v2108 = vpack.c.b16 %v1944, %v1940
        %v2109 = vpack.c.b16 %v1945, %v1941
        %v2110 = vpack.c.b16 %v1946, %v1942
        %v2111 = vpack.c.b16 %v1951, %v1947
        %v2112 = vpack.c.b16 %v1952, %v1948
        %v2113 = vpack.c.b16 %v1953, %v1949
        %v2114 = vpack.c.b16 %v1954, %v1950
        %v2115 = vpack.c.b16 %v1959, %v1955
        %v2116 = vpack.c.b16 %v1960, %v1956
        %v2117 = vpack.c.b16 %v1961, %v1957
        %v2118 = vpack.c.b16 %v1962, %v1958
        %v2119 = vpack.c.b16 %v1967, %v1963
        %v2120 = vpack.c.b16 %v1968, %v1964
        %v2121 = vpack.c.b16 %v1969, %v1965
        %v2122 = vpack.c.b16 %v1970, %v1966
        %v2123 = vpack.c.b16 %v1975, %v1971
        %v2124 = vpack.c.b16 %v1976, %v1972
        %v2125 = vpack.c.b16 %v1977, %v1973
        %v2126 = vpack.c.b16 %v1978, %v1974
        %v2127 = vpack.c.b16 %v1983, %v1979
        %v2128 = vpack.c.b16 %v1984, %v1980
        %v2129 = vpack.c.b16 %v1985, %v1981
        %v2130 = vpack.c.b16 %v1986, %v1982
        %v2131 = vpack.c.b16 %v1991, %v1987
        %v2132 = vpack.c.b16 %v1992, %v1988
        %v2133 = vpack.c.b16 %v1993, %v1989
        %v2134 = vpack.c.b16 %v1994, %v1990
        %v2135 = vpack.c.b16 %v1999, %v1995
        %v2136 = vpack.c.b16 %v2000, %v1996
        %v2137 = vpack.c.b16 %v2001, %v1997
        %v2138 = vpack.c.b16 %v2002, %v1998
        %v2139 = vpack.c.b16 %v2007, %v2003
        %v2140 = vpack.c.b16 %v2008, %v2004
        %v2141 = vpack.c.b16 %v2009, %v2005
        %v2142 = vpack.c.b16 %v2010, %v2006
        %v2143 = vpack.c.b16 %v2015, %v2011
        %v2144 = vpack.c.b16 %v2016, %v2012
        %v2145 = vpack.c.b16 %v2017, %v2013
        %v2146 = vpack.c.b16 %v2018, %v2014
        %2275 = vmatpush.bf16.msra.mxu0 %v2047
        %2276 = vmatpush.bf16.msra.mxu0 %v2043
        %2277 = vmatpush.bf16.msra.mxu0 %v2039
        %2278 = vmatpush.bf16.msra.mxu0 %v2035
        %2279 = vmatpush.bf16.msra.mxu0 %v2031
        %2280 = vmatpush.bf16.msra.mxu0 %v2027
        %2281 = vmatpush.bf16.msra.mxu0 %v2023
        %2282 = vmatpush.bf16.msra.mxu0 %v2019
        %2283 = vmatmul.bf16.gmra.mxu0 %v1619
        %v2284 = vpop.f32.mrf.mxu0
        %v2285 = vadd.f32 %v1358, %v2284
        %v2286 = vpop.f32.mrf.mxu0
        %v2287 = vadd.f32 %v1360, %v2286
        %2288 = vmatmul.bf16.gmra.mxu0 %v1623
        %v2289 = vpop.f32.mrf.mxu0
        %v2290 = vadd.f32 %v1363, %v2289
        %v2291 = vpop.f32.mrf.mxu0
        %v2292 = vadd.f32 %v1365, %v2291
        %2293 = vdwg.mxu0
        %2294 = vmatpush.bf16.msra.mxu0 %v2079
        %2295 = vmatpush.bf16.msra.mxu0 %v2075
        %2296 = vmatpush.bf16.msra.mxu0 %v2071
        %2297 = vmatpush.bf16.msra.mxu0 %v2067
        %2298 = vmatpush.bf16.msra.mxu0 %v2063
        %2299 = vmatpush.bf16.msra.mxu0 %v2059
        %2300 = vmatpush.bf16.msra.mxu0 %v2055
        %2301 = vmatpush.bf16.msra.mxu0 %v2051
        %2302 = vmatmul.bf16.gmra.mxu0 %v1620
        %v2303 = vpop.f32.mrf.mxu0
        %v2304 = vadd.f32 %v2285, %v2303
        %v2305 = vpop.f32.mrf.mxu0
        %v2306 = vadd.f32 %v2287, %v2305
        %2307 = vmatmul.bf16.gmra.mxu0 %v1624
        %v2308 = vpop.f32.mrf.mxu0
        %v2309 = vadd.f32 %v2290, %v2308
        %v2310 = vpop.f32.mrf.mxu0
        %v2311 = vadd.f32 %v2292, %v2310
        %2312 = vdwg.mxu0
        %2313 = vmatpush.bf16.msra.mxu0 %v2111
        %2314 = vmatpush.bf16.msra.mxu0 %v2107
        %2315 = vmatpush.bf16.msra.mxu0 %v2103
        %2316 = vmatpush.bf16.msra.mxu0 %v2099
        %2317 = vmatpush.bf16.msra.mxu0 %v2095
        %2318 = vmatpush.bf16.msra.mxu0 %v2091
        %2319 = vmatpush.bf16.msra.mxu0 %v2087
        %2320 = vmatpush.bf16.msra.mxu0 %v2083
        %2321 = vmatmul.bf16.gmra.mxu0 %v1621
        %v2322 = vpop.f32.mrf.mxu0
        %v2323 = vadd.f32 %v2304, %v2322
        %v2324 = vpop.f32.mrf.mxu0
        %v2325 = vadd.f32 %v2306, %v2324
        %2326 = vmatmul.bf16.gmra.mxu0 %v1625
        %v2327 = vpop.f32.mrf.mxu0
        %v2328 = vadd.f32 %v2309, %v2327
        %v2329 = vpop.f32.mrf.mxu0
        %v2330 = vadd.f32 %v2311, %v2329
        %2331 = vdwg.mxu0
        %2332 = vmatpush.bf16.msra.mxu0 %v2143
        %2333 = vmatpush.bf16.msra.mxu0 %v2139
        %2334 = vmatpush.bf16.msra.mxu0 %v2135
        %2335 = vmatpush.bf16.msra.mxu0 %v2131
        %2336 = vmatpush.bf16.msra.mxu0 %v2127
        %2337 = vmatpush.bf16.msra.mxu0 %v2123
        %2338 = vmatpush.bf16.msra.mxu0 %v2119
        %2339 = vmatpush.bf16.msra.mxu0 %v2115
        %2340 = vmatmul.bf16.gmra.mxu0 %v1622
        %v2341 = vpop.f32.mrf.mxu0
        %v2342 = vadd.f32 %v2323, %v2341
        %v2343 = vpop.f32.mrf.mxu0
        %v2344 = vadd.f32 %v2325, %v2343
        %2345 = vmatmul.bf16.gmra.mxu0 %v1626
        %v2346 = vpop.f32.mrf.mxu0
        %v2347 = vadd.f32 %v2328, %v2346
        %v2348 = vpop.f32.mrf.mxu0
        %v2349 = vadd.f32 %v2330, %v2348
        %2350 = vdwg.mxu0
        %2351 = vmatpush.bf16.msra.mxu0 %v2048
        %2352 = vmatpush.bf16.msra.mxu0 %v2044
        %2353 = vmatpush.bf16.msra.mxu0 %v2040
        %2354 = vmatpush.bf16.msra.mxu0 %v2036
        %2355 = vmatpush.bf16.msra.mxu0 %v2032
        %2356 = vmatpush.bf16.msra.mxu0 %v2028
        %2357 = vmatpush.bf16.msra.mxu0 %v2024
        %2358 = vmatpush.bf16.msra.mxu0 %v2020
        %2359 = vmatmul.bf16.gmra.mxu0 %v1619
        %v2360 = vpop.f32.mrf.mxu0
        %v2361 = vadd.f32 %v1434, %v2360
        %v2362 = vpop.f32.mrf.mxu0
        %v2363 = vadd.f32 %v1436, %v2362
        %2364 = vmatmul.bf16.gmra.mxu0 %v1623
        %v2365 = vpop.f32.mrf.mxu0
        %v2366 = vadd.f32 %v1439, %v2365
        %v2367 = vpop.f32.mrf.mxu0
        %v2368 = vadd.f32 %v1441, %v2367
        %2369 = vdwg.mxu0
        %2370 = vmatpush.bf16.msra.mxu0 %v2080
        %2371 = vmatpush.bf16.msra.mxu0 %v2076
        %2372 = vmatpush.bf16.msra.mxu0 %v2072
        %2373 = vmatpush.bf16.msra.mxu0 %v2068
        %2374 = vmatpush.bf16.msra.mxu0 %v2064
        %2375 = vmatpush.bf16.msra.mxu0 %v2060
        %2376 = vmatpush.bf16.msra.mxu0 %v2056
        %2377 = vmatpush.bf16.msra.mxu0 %v2052
        %2378 = vmatmul.bf16.gmra.mxu0 %v1620
        %v2379 = vpop.f32.mrf.mxu0
        %v2380 = vadd.f32 %v2361, %v2379
        %v2381 = vpop.f32.mrf.mxu0
        %v2382 = vadd.f32 %v2363, %v2381
        %2383 = vmatmul.bf16.gmra.mxu0 %v1624
        %v2384 = vpop.f32.mrf.mxu0
        %v2385 = vadd.f32 %v2366, %v2384
        %v2386 = vpop.f32.mrf.mxu0
        %v2387 = vadd.f32 %v2368, %v2386
        %2388 = vdwg.mxu0
        %2389 = vmatpush.bf16.msra.mxu0 %v2112
        %2390 = vmatpush.bf16.msra.mxu0 %v2108
        %2391 = vmatpush.bf16.msra.mxu0 %v2104
        %2392 = vmatpush.bf16.msra.mxu0 %v2100
        %2393 = vmatpush.bf16.msra.mxu0 %v2096
        %2394 = vmatpush.bf16.msra.mxu0 %v2092
        %2395 = vmatpush.bf16.msra.mxu0 %v2088
        %2396 = vmatpush.bf16.msra.mxu0 %v2084
        %2397 = vmatmul.bf16.gmra.mxu0 %v1621
        %v2398 = vpop.f32.mrf.mxu0
        %v2399 = vadd.f32 %v2380, %v2398
        %v2400 = vpop.f32.mrf.mxu0
        %v2401 = vadd.f32 %v2382, %v2400
        %2402 = vmatmul.bf16.gmra.mxu0 %v1625
        %v2403 = vpop.f32.mrf.mxu0
        %v2404 = vadd.f32 %v2385, %v2403
        %v2405 = vpop.f32.mrf.mxu0
        %v2406 = vadd.f32 %v2387, %v2405
        %2407 = vdwg.mxu0
        %2408 = vmatpush.bf16.msra.mxu0 %v2144
        %2409 = vmatpush.bf16.msra.mxu0 %v2140
        %2410 = vmatpush.bf16.msra.mxu0 %v2136
        %2411 = vmatpush.bf16.msra.mxu0 %v2132
        %2412 = vmatpush.bf16.msra.mxu0 %v2128
        %2413 = vmatpush.bf16.msra.mxu0 %v2124
        %2414 = vmatpush.bf16.msra.mxu0 %v2120
        %2415 = vmatpush.bf16.msra.mxu0 %v2116
        %2416 = vmatmul.bf16.gmra.mxu0 %v1622
        %v2417 = vpop.f32.mrf.mxu0
        %v2418 = vadd.f32 %v2399, %v2417
        %v2419 = vpop.f32.mrf.mxu0
        %v2420 = vadd.f32 %v2401, %v2419
        %2421 = vmatmul.bf16.gmra.mxu0 %v1626
        %v2422 = vpop.f32.mrf.mxu0
        %v2423 = vadd.f32 %v2404, %v2422
        %v2424 = vpop.f32.mrf.mxu0
        %v2425 = vadd.f32 %v2406, %v2424
        %2426 = vdwg.mxu0
        %2427 = vmatpush.bf16.msra.mxu0 %v2049
        %2428 = vmatpush.bf16.msra.mxu0 %v2045
        %2429 = vmatpush.bf16.msra.mxu0 %v2041
        %2430 = vmatpush.bf16.msra.mxu0 %v2037
        %2431 = vmatpush.bf16.msra.mxu0 %v2033
        %2432 = vmatpush.bf16.msra.mxu0 %v2029
        %2433 = vmatpush.bf16.msra.mxu0 %v2025
        %2434 = vmatpush.bf16.msra.mxu0 %v2021
        %2435 = vmatmul.bf16.gmra.mxu0 %v1619
        %v2436 = vpop.f32.mrf.mxu0
        %v2437 = vadd.f32 %v1510, %v2436
        %v2438 = vpop.f32.mrf.mxu0
        %v2439 = vadd.f32 %v1512, %v2438
        %2440 = vmatmul.bf16.gmra.mxu0 %v1623
        %v2441 = vpop.f32.mrf.mxu0
        %v2442 = vadd.f32 %v1515, %v2441
        %v2443 = vpop.f32.mrf.mxu0
        %v2444 = vadd.f32 %v1517, %v2443
        %2445 = vdwg.mxu0
        %2446 = vmatpush.bf16.msra.mxu0 %v2081
        %2447 = vmatpush.bf16.msra.mxu0 %v2077
        %2448 = vmatpush.bf16.msra.mxu0 %v2073
        %2449 = vmatpush.bf16.msra.mxu0 %v2069
        %2450 = vmatpush.bf16.msra.mxu0 %v2065
        %2451 = vmatpush.bf16.msra.mxu0 %v2061
        %2452 = vmatpush.bf16.msra.mxu0 %v2057
        %2453 = vmatpush.bf16.msra.mxu0 %v2053
        %2454 = vmatmul.bf16.gmra.mxu0 %v1620
        %v2455 = vpop.f32.mrf.mxu0
        %v2456 = vadd.f32 %v2437, %v2455
        %v2457 = vpop.f32.mrf.mxu0
        %v2458 = vadd.f32 %v2439, %v2457
        %2459 = vmatmul.bf16.gmra.mxu0 %v1624
        %v2460 = vpop.f32.mrf.mxu0
        %v2461 = vadd.f32 %v2442, %v2460
        %v2462 = vpop.f32.mrf.mxu0
        %v2463 = vadd.f32 %v2444, %v2462
        %2464 = vdwg.mxu0
        %2465 = vmatpush.bf16.msra.mxu0 %v2113
        %2466 = vmatpush.bf16.msra.mxu0 %v2109
        %2467 = vmatpush.bf16.msra.mxu0 %v2105
        %2468 = vmatpush.bf16.msra.mxu0 %v2101
        %2469 = vmatpush.bf16.msra.mxu0 %v2097
        %2470 = vmatpush.bf16.msra.mxu0 %v2093
        %2471 = vmatpush.bf16.msra.mxu0 %v2089
        %2472 = vmatpush.bf16.msra.mxu0 %v2085
        %2473 = vmatmul.bf16.gmra.mxu0 %v1621
        %v2474 = vpop.f32.mrf.mxu0
        %v2475 = vadd.f32 %v2456, %v2474
        %v2476 = vpop.f32.mrf.mxu0
        %v2477 = vadd.f32 %v2458, %v2476
        %2478 = vmatmul.bf16.gmra.mxu0 %v1625
        %v2479 = vpop.f32.mrf.mxu0
        %v2480 = vadd.f32 %v2461, %v2479
        %v2481 = vpop.f32.mrf.mxu0
        %v2482 = vadd.f32 %v2463, %v2481
        %2483 = vdwg.mxu0
        %2484 = vmatpush.bf16.msra.mxu0 %v2145
        %2485 = vmatpush.bf16.msra.mxu0 %v2141
        %2486 = vmatpush.bf16.msra.mxu0 %v2137
        %2487 = vmatpush.bf16.msra.mxu0 %v2133
        %2488 = vmatpush.bf16.msra.mxu0 %v2129
        %2489 = vmatpush.bf16.msra.mxu0 %v2125
        %2490 = vmatpush.bf16.msra.mxu0 %v2121
        %2491 = vmatpush.bf16.msra.mxu0 %v2117
        %2492 = vmatmul.bf16.gmra.mxu0 %v1622
        %v2493 = vpop.f32.mrf.mxu0
        %v2494 = vadd.f32 %v2475, %v2493
        %v2495 = vpop.f32.mrf.mxu0
        %v2496 = vadd.f32 %v2477, %v2495
        %2497 = vmatmul.bf16.gmra.mxu0 %v1626
        %v2498 = vpop.f32.mrf.mxu0
        %v2499 = vadd.f32 %v2480, %v2498
        %v2500 = vpop.f32.mrf.mxu0
        %v2501 = vadd.f32 %v2482, %v2500
        %2502 = vdwg.mxu0
        %2503 = vmatpush.bf16.msra.mxu0 %v2050
        %2504 = vmatpush.bf16.msra.mxu0 %v2046
        %2505 = vmatpush.bf16.msra.mxu0 %v2042
        %2506 = vmatpush.bf16.msra.mxu0 %v2038
        %2507 = vmatpush.bf16.msra.mxu0 %v2034
        %2508 = vmatpush.bf16.msra.mxu0 %v2030
        %2509 = vmatpush.bf16.msra.mxu0 %v2026
        %2510 = vmatpush.bf16.msra.mxu0 %v2022
        %2511 = vmatmul.bf16.gmra.mxu0 %v1619
        %v2512 = vpop.f32.mrf.mxu0
        %v2513 = vadd.f32 %v1586, %v2512
        %v2514 = vpop.f32.mrf.mxu0
        %v2515 = vadd.f32 %v1588, %v2514
        %2516 = vmatmul.bf16.gmra.mxu0 %v1623
        %v2517 = vpop.f32.mrf.mxu0
        %v2518 = vadd.f32 %v1591, %v2517
        %v2519 = vpop.f32.mrf.mxu0
        %v2520 = vadd.f32 %v1593, %v2519
        %2521 = vdwg.mxu0
        %2522 = vmatpush.bf16.msra.mxu0 %v2082
        %2523 = vmatpush.bf16.msra.mxu0 %v2078
        %2524 = vmatpush.bf16.msra.mxu0 %v2074
        %2525 = vmatpush.bf16.msra.mxu0 %v2070
        %2526 = vmatpush.bf16.msra.mxu0 %v2066
        %2527 = vmatpush.bf16.msra.mxu0 %v2062
        %2528 = vmatpush.bf16.msra.mxu0 %v2058
        %2529 = vmatpush.bf16.msra.mxu0 %v2054
        %2530 = vmatmul.bf16.gmra.mxu0 %v1620
        %v2531 = vpop.f32.mrf.mxu0
        %v2532 = vadd.f32 %v2513, %v2531
        %v2533 = vpop.f32.mrf.mxu0
        %v2534 = vadd.f32 %v2515, %v2533
        %2535 = vmatmul.bf16.gmra.mxu0 %v1624
        %v2536 = vpop.f32.mrf.mxu0
        %v2537 = vadd.f32 %v2518, %v2536
        %v2538 = vpop.f32.mrf.mxu0
        %v2539 = vadd.f32 %v2520, %v2538
        %2540 = vdwg.mxu0
        %2541 = vmatpush.bf16.msra.mxu0 %v2114
        %2542 = vmatpush.bf16.msra.mxu0 %v2110
        %2543 = vmatpush.bf16.msra.mxu0 %v2106
        %2544 = vmatpush.bf16.msra.mxu0 %v2102
        %2545 = vmatpush.bf16.msra.mxu0 %v2098
        %2546 = vmatpush.bf16.msra.mxu0 %v2094
        %2547 = vmatpush.bf16.msra.mxu0 %v2090
        %2548 = vmatpush.bf16.msra.mxu0 %v2086
        %2549 = vmatmul.bf16.gmra.mxu0 %v1621
        %v2550 = vpop.f32.mrf.mxu0
        %v2551 = vadd.f32 %v2532, %v2550
        %v2552 = vpop.f32.mrf.mxu0
        %v2553 = vadd.f32 %v2534, %v2552
        %2554 = vmatmul.bf16.gmra.mxu0 %v1625
        %v2555 = vpop.f32.mrf.mxu0
        %v2556 = vadd.f32 %v2537, %v2555
        %v2557 = vpop.f32.mrf.mxu0
        %v2558 = vadd.f32 %v2539, %v2557
        %2559 = vdwg.mxu0
        %2560 = vmatpush.bf16.msra.mxu0 %v2146
        %2561 = vmatpush.bf16.msra.mxu0 %v2142
        %2562 = vmatpush.bf16.msra.mxu0 %v2138
        %2563 = vmatpush.bf16.msra.mxu0 %v2134
        %2564 = vmatpush.bf16.msra.mxu0 %v2130
        %2565 = vmatpush.bf16.msra.mxu0 %v2126
        %2566 = vmatpush.bf16.msra.mxu0 %v2122
        %2567 = vmatpush.bf16.msra.mxu0 %v2118
        %2568 = vmatmul.bf16.gmra.mxu0 %v1622
        %v2569 = vpop.f32.mrf.mxu0
        %v2570 = vadd.f32 %v2551, %v2569
        %v2571 = vpop.f32.mrf.mxu0
        %v2572 = vadd.f32 %v2553, %v2571
        %2573 = vmatmul.bf16.gmra.mxu0 %v1626
        %v2574 = vpop.f32.mrf.mxu0
        %v2575 = vadd.f32 %v2556, %v2574
        %v2576 = vpop.f32.mrf.mxu0
        %v2577 = vadd.f32 %v2558, %v2576
        %2578 = vdwg.mxu0
        %v2579 = vld [vmem:[#allocation10] sm:$0xf]
        %v2581 = vperm.slane %v2579, 0
        %v2582 = vperm.slane %v2579, 1
        %v2583 = vperm.slane %v2579, 2
        %v2584 = vperm.slane %v2579, 3
        %v2589 = vadd.f32 %v2342, %v2581
        %v2590 = vadd.f32 %v2418, %v2582
        %v2591 = vadd.f32 %v2494, %v2583
        %v2592 = vadd.f32 %v2570, %v2584
        %v2593 = vadd.f32 %v2344, %v2581
        %v2594 = vadd.f32 %v2420, %v2582
        %v2595 = vadd.f32 %v2496, %v2583
        %v2596 = vadd.f32 %v2572, %v2584
        %v2597 = vadd.f32 %v2347, %v2581
        %v2598 = vadd.f32 %v2423, %v2582
        %v2599 = vadd.f32 %v2499, %v2583
        %v2600 = vadd.f32 %v2575, %v2584
        %v2601 = vadd.f32 %v2349, %v2581
        %v2602 = vadd.f32 %v2425, %v2582
        %v2603 = vadd.f32 %v2501, %v2583
        %v2604 = vadd.f32 %v2577, %v2584
        %v2605 = vmax.f32 %v2589, 0.0
        %v2606 = vmax.f32 %v2590, 0.0
        %v2607 = vmax.f32 %v2591, 0.0
        %v2608 = vmax.f32 %v2592, 0.0
        %v2609 = vmax.f32 %v2593, 0.0
        %v2610 = vmax.f32 %v2594, 0.0
        %v2611 = vmax.f32 %v2595, 0.0
        %v2612 = vmax.f32 %v2596, 0.0
        %v2613 = vmax.f32 %v2597, 0.0
        %v2614 = vmax.f32 %v2598, 0.0
        %v2615 = vmax.f32 %v2599, 0.0
        %v2616 = vmax.f32 %v2600, 0.0
        %v2617 = vmax.f32 %v2601, 0.0
        %v2618 = vmax.f32 %v2602, 0.0
        %v2619 = vmax.f32 %v2603, 0.0
        %v2620 = vmax.f32 %v2604, 0.0
        %2621 = vst [vmem:[%s335] sm:$0xff] %v2605
        %2622 = vst [vmem:[%s335 + $0x8] sm:$0xff] %v2606
        %2623 = vst [vmem:[%s335 + $0x10] sm:$0xff] %v2607
        %2624 = vst [vmem:[%s335 + $0x18] sm:$0xff] %v2608
        %2625 = vst [vmem:[%s335 + $0x20] sm:$0xff] %v2609
        %2626 = vst [vmem:[%s335 + $0x28] sm:$0xff] %v2610
        %2627 = vst [vmem:[%s335 + $0x30] sm:$0xff] %v2611
        %2628 = vst [vmem:[%s335 + $0x38] sm:$0xff] %v2612
        %2629 = vst [vmem:[%s335 + $0x40] sm:$0xff] %v2613
        %2630 = vst [vmem:[%s335 + $0x48] sm:$0xff] %v2614
        %2631 = vst [vmem:[%s335 + $0x50] sm:$0xff] %v2615
        %2632 = vst [vmem:[%s335 + $0x58] sm:$0xff] %v2616
        %2633 = vst [vmem:[%s335 + $0x60] sm:$0xff] %v2617
        %2634 = vst [vmem:[%s335 + $0x68] sm:$0xff] %v2618
        %2635 = vst [vmem:[%s335 + $0x70] sm:$0xff] %v2619
        %2636 = vst [vmem:[%s335 + $0x78] sm:$0xff] %v2620
        %s2637 = sand.u32 %s149, 1
        %s2638 = scalar_lea.sflag [#allocation4], %s2637
        %s2639 = sand.u32 %s149, 1
        %s2640 = smul.addr %s2639, 128
        %s2641 = scalar_lea.vmem [#allocation11], %s2640
        // Predicated region
        $region61: #{tpu_custom_call.1} parent=39 // pred_check
          %p2642 = pneg %p159
        $region62: #{tpu_custom_call.1} parent=39 // pred_check_branch
          %2644 = sbr.rel (%p2642) target = $region64
        $region63: #{tpu_custom_call.1} parent=39 // pred_region
          %s2645 = smul.u32 4, %s26
          %2647 = vsyncadd %s2638, 0
          %s2648 = smul.addr %s2645, 4
          %s2649 = smul.addr %s2648, 8
          %s2650 = scalar_lea.hbm %s5, %s2649
          %s2651 = sshll.u32 %s2641, 4
          %s2652 = int_to_ptr.vmem [resolvable:$true] %s2651
          %s2653 = sshll.u32 %s2650, 4
          %s2654 = int_to_ptr.hbm [resolvable:$true] %s2653
          %2659 = dma.vmem_to_hbm [thread:$0]  %s2652, 2048, %s2654, %s2638, 512, 512, 32
        $region64: #{tpu_custom_call.1} parent=39 // pred_fallthru
          _
      $region40: #{tpu_custom_call.1} parent=5 // pred_fallthru
        _
      %p2660 = scmp.le.s32.totalorder 2, %s21
      // Predicated region
      $region65: #{tpu_custom_call.1} parent=5 // pred_check
        %p2661 = pneg %p2660
      $region66: #{tpu_custom_call.1} parent=5 // pred_check_branch
        %2663 = sbr.rel (%p2661) target = $region68
      $region67: #{tpu_custom_call.1} parent=5 // pred_region
        %s2664 = ssub.s32 %s21, 2
        // Predicated region
        $region69: #{tpu_custom_call.1} parent=67 // pred_check
          %p2665 = pneg %p165
        $region70: #{tpu_custom_call.1} parent=67 // pred_check_branch
          %2667 = sbr.rel (%p2665) target = $region72
        $region71: #{tpu_custom_call.1} parent=67 // pred_region
          %s2668 = sand.u32 %s150, 1
          %s2669 = scalar_lea.sflag [#allocation4], %s2668
          %s2670 = sand.u32 %s150, 1
          %s2671 = smul.addr %s2670, 128
          %s2672 = scalar_lea.vmem [#allocation11], %s2671
          %2674 = dma.done %s2669, 2048
        $region72: #{tpu_custom_call.1} parent=67 // pred_fallthru
          _
      $region68: #{tpu_custom_call.1} parent=5 // pred_fallthru
        _
    $region6: #{tpu_custom_call.1} parent=1 // loop_footer
      %s25 = sadd.s32 1, %s21
    $region7: #{tpu_custom_call.1} parent=1 // loop_footer_branch
      %20 = sbr.rel target = $region3
    $region8: #{tpu_custom_call.1} parent=1 // loop_exit
      _
    %2675 = vsyncpa [#allocation3], 1
    %s2676 = scalar_lea.sflag [#allocation3], 1
    %2677 = vsyncpa %s2676, 1
    %2678 = vsyncpa [#allocation6], 1
    %s2679 = scalar_lea.sflag [#allocation6], 1
    %2680 = vsyncpa %s2679, 1
    %2681 = vsyncpa [#allocation9], 1
    %2682 = vsyncpa [#allocation4], 1
    %s2683 = scalar_lea.sflag [#allocation4], 1
    %2684 = vsyncpa %s2683, 1

// kernel: tpu_custom_call.1
$region0: #{tpu_custom_call.1}
  #allocation0 [shape = 'u32[]', space=smem, size = 0x4, offset = 0x4, fixed_abs, tag = 'smem constant byte address 0x4 - core index']
  #allocation1 [shape = 'u32[72,128]{1,0:T(1,128)}', space=vmem, size = 0x9000, scoped, tag = 'internal scratch']
  %s0 = inlined_call_operand.hbm [shape: bf16[64,512], index: 0, kind: input, shape index: {}]
  %s1 = inlined_call_operand.hbm [shape: bf16[64,512], index: 1, kind: input, shape index: {}]
  %s2 = inlined_call_operand.hbm [shape: bf16[512,512], index: 2, kind: input, shape index: {}]
  %s3 = inlined_call_operand.hbm [shape: bf16[512,512], index: 3, kind: input, shape index: {}]
  %s4 = inlined_call_operand.hbm [shape: f32[1,512], index: 4, kind: input, shape index: {}]
  %s5 = inlined_call_operand.hbm [shape: f32[64,512], index: 5, kind: output, shape index: {}]
  %s6 = sld [smem:[#allocation0]]
  $region73: #{tpu_custom_call.1} parent=0
    _
  %s8 = ssub.s32 1, %s6
  %s9 = scalar_select 0, %s8, %s6
  $region1: #{tpu_custom_call.1} parent=0
    #allocation2 [shape = 'u8[65536]{0}', space=vmem, size = 0x10000, scoped, tag = 'input window, operand 0']
    #allocation3 [shape = 's32[2]{0}', space=sflag, size = 0x8, scoped, tag = 'scoped memory for tpu_custom_call.1']
    #allocation4 [shape = 's32[2]{0}', space=sflag, size = 0x8, scoped, tag = 'scoped memory for tpu_custom_call.1']
    #allocation5 [shape = 'u8[65536]{0}', space=vmem, size = 0x10000, scoped, tag = 'input window, operand 1']
    #allocation6 [shape = 's32[2]{0}', space=sflag, size = 0x8, scoped, tag = 'scoped memory for tpu_custom_call.1']
    #allocation7 [shape = 'u8[524288]{0}', space=vmem, size = 0x80000, scoped, tag = 'input window, operand 2, single buffered']
    #allocation8 [shape = 'u8[524288]{0}', space=vmem, size = 0x80000, scoped, tag = 'input window, operand 3, single buffered']
    #allocation9 [shape = 's32[1]{0}', space=sflag, size = 0x4, scoped, tag = 'scoped memory for tpu_custom_call.1']
    #allocation10 [shape = 'u8[2048]{0}', space=vmem, size = 0x800, scoped, tag = 'input window, operand 4, single buffered']
    #allocation11 [shape = 'u8[131072]{0}', space=vmem, size = 0x20000, scoped, tag = 'output window, operand 0']
    %10 = vsyncpa [#allocation3], 0
    %s11 = scalar_lea.sflag [#allocation3], 1
    %12 = vsyncpa %s11, 0
    %13 = vsyncpa [#allocation6], 0
    %s14 = scalar_lea.sflag [#allocation6], 1
    %15 = vsyncpa %s14, 0
    %16 = vsyncpa [#allocation9], 0
    %17 = vsyncpa [#allocation4], 0
    %s18 = scalar_lea.sflag [#allocation4], 1
    %19 = vsyncpa %s18, 0
    loop: start=0, step=1, limit=4
    $region2: #{tpu_custom_call.1} parent=1 // loop_pre_header
      _
    $region3: #{tpu_custom_call.1} parent=1 // loop_header
      %s21 = sphi 0, %s25
      %p22 = scmp.ge.s32.totalorder %s21, 4
      %s31 = sphi 0, %s33
      %s34 = sphi 0, %s31
      %s35 = sphi 0, %s34
      %s51 = sphi 0, %s35
      %s57 = sphi 0, %s59
      %s60 = sphi 0, %s57
      %s61 = sphi 0, %s60
      %s77 = sphi 0, %s61
      %s81 = sphi 0, %s81
      %s83 = sphi 0, %s81
      %s84 = sphi 0, %s83
      %s98 = sphi 0, %s84
      %s102 = sphi 0, %s102
      %s104 = sphi 0, %s102
      %s105 = sphi 0, %s104
      %s119 = sphi 0, %s105
      %s123 = sphi 0, %s123
      %s125 = sphi 0, %s123
      %s126 = sphi 0, %s125
      %s140 = sphi 0, %s126
      %s146 = sphi 0, %s148
      %s149 = sphi 0, %s146
      %s150 = sphi 0, %s149
      %s166 = sphi 0, %s150
    $region4: #{tpu_custom_call.1} parent=1 // loop_header_branch
      %24 = sbr.rel (%p22) target = $region8
    $region5: #{tpu_custom_call.1} parent=1 // loop_body
      %s26 = ssub.s32 %s21, 1
      %s27 = ssub.s32 %s21, 2
      %s28 = sadd.s32 %s21, 1
      %s29 = ssub.s32 %s21, %s28
      %p30 = scmp.eq.s32.totalorder %s29, 0
      %s32 = sadd.s32 %s31, 1
      %s33 = scalar_select %p30, %s31, %s32
      %p36 = pneg %p30
      %p37 = scmp.eq.s32.totalorder %s21, 1
      %p38 = por %p36, %p37
      %p39 = scmp.ne.s32.totalorder %s31, %s34
      %p40 = scmp.eq.s32.totalorder %s21, 0
      %p41 = por %p39, %p40
      %p42 = scmp.ne.s32.totalorder %s31, %s34
      %p43 = scmp.eq.s32.totalorder %s26, 1
      %p44 = por %p42, %p43
      %p45 = scmp.ne.s32.totalorder %s34, %s35
      %p46 = scmp.eq.s32.totalorder %s26, 0
      %p47 = por %p45, %p46
      %p48 = scmp.ne.s32.totalorder %s34, %s35
      %p49 = scmp.eq.s32.totalorder %s27, 1
      %p50 = por %p48, %p49
      %p52 = scmp.ne.s32.totalorder %s35, %s51
      %p53 = scmp.eq.s32.totalorder %s27, 0
      %p54 = por %p52, %p53
      %s55 = ssub.s32 %s21, %s28
      %p56 = scmp.eq.s32.totalorder %s55, 0
      %s58 = sadd.s32 %s57, 1
      %s59 = scalar_select %p56, %s57, %s58
      %p62 = pneg %p56
      %p63 = scmp.eq.s32.totalorder %s21, 1
      %p64 = por %p62, %p63
      %p65 = scmp.ne.s32.totalorder %s57, %s60
      %p66 = scmp.eq.s32.totalorder %s21, 0
      %p67 = por %p65, %p66
      %p68 = scmp.ne.s32.totalorder %s57, %s60
      %p69 = scmp.eq.s32.totalorder %s26, 1
      %p70 = por %p68, %p69
      %p71 = scmp.ne.s32.totalorder %s60, %s61
      %p72 = scmp.eq.s32.totalorder %s26, 0
      %p73 = por %p71, %p72
      %p74 = scmp.ne.s32.totalorder %s60, %s61
      %p75 = scmp.eq.s32.totalorder %s27, 1
      %p76 = por %p74, %p75
      %p78 = scmp.ne.s32.totalorder %s61, %s77
      %p79 = scmp.eq.s32.totalorder %s27, 0
      %p80 = por %p78, %p79
      %s82 = sadd.s32 %s81, 1
      %p85 = scmp.eq.s32.totalorder %s21, 1
      %p86 = scmp.ne.s32.totalorder %s81, %s83
      %p87 = scmp.eq.s32.totalorder %s21, 0
      %p88 = por %p86, %p87
      %p89 = scmp.ne.s32.totalorder %s81, %s83
      %p90 = scmp.eq.s32.totalorder %s26, 1
      %p91 = por %p89, %p90
      %p92 = scmp.ne.s32.totalorder %s83, %s84
      %p93 = scmp.eq.s32.totalorder %s26, 0
      %p94 = por %p92, %p93
      %p95 = scmp.ne.s32.totalorder %s83, %s84
      %p96 = scmp.eq.s32.totalorder %s27, 1
      %p97 = por %p95, %p96
      %p99 = scmp.ne.s32.totalorder %s84, %s98
      %p100 = scmp.eq.s32.totalorder %s27, 0
      %p101 = por %p99, %p100
      %s103 = sadd.s32 %s102, 1
      %p106 = scmp.eq.s32.totalorder %s21, 1
      %p107 = scmp.ne.s32.totalorder %s102, %s104
      %p108 = scmp.eq.s32.totalorder %s21, 0
      %p109 = por %p107, %p108
      %p110 = scmp.ne.s32.totalorder %s102, %s104
      %p111 = scmp.eq.s32.totalorder %s26, 1
      %p112 = por %p110, %p111
      %p113 = scmp.ne.s32.totalorder %s104, %s105
      %p114 = scmp.eq.s32.totalorder %s26, 0
      %p115 = por %p113, %p114
      %p116 = scmp.ne.s32.totalorder %s104, %s105
      %p117 = scmp.eq.s32.totalorder %s27, 1
      %p118 = por %p116, %p117
      %p120 = scmp.ne.s32.totalorder %s105, %s119
      %p121 = scmp.eq.s32.totalorder %s27, 0
      %p122 = por %p120, %p121
      %s124 = sadd.s32 %s123, 1
      %p127 = scmp.eq.s32.totalorder %s21, 1
      %p128 = scmp.ne.s32.totalorder %s123, %s125
      %p129 = scmp.eq.s32.totalorder %s21, 0
      %p130 = por %p128, %p129
      %p131 = scmp.ne.s32.totalorder %s123, %s125
      %p132 = scmp.eq.s32.totalorder %s26, 1
      %p133 = por %p131, %p132
      %p134 = scmp.ne.s32.totalorder %s125, %s126
      %p135 = scmp.eq.s32.totalorder %s26, 0
      %p136 = por %p134, %p135
      %p137 = scmp.ne.s32.totalorder %s125, %s126
      %p138 = scmp.eq.s32.totalorder %s27, 1
      %p139 = por %p137, %p138
      %p141 = scmp.ne.s32.totalorder %s126, %s140
      %p142 = scmp.eq.s32.totalorder %s27, 0
      %p143 = por %p141, %p142
      %s144 = ssub.s32 %s21, %s28
      %p145 = scmp.eq.s32.totalorder %s144, 0
      %s147 = sadd.s32 %s146, 1
      %s148 = scalar_select %p145, %s146, %s147
      %p151 = pneg %p145
      %p152 = scmp.eq.s32.totalorder %s21, 1
      %p153 = por %p151, %p152
      %p154 = scmp.ne.s32.totalorder %s146, %s149
      %p155 = scmp.eq.s32.totalorder %s21, 0
      %p156 = por %p154, %p155
      %p157 = scmp.ne.s32.totalorder %s146, %s149
      %p158 = scmp.eq.s32.totalorder %s26, 1
      %p159 = por %p157, %p158
      %p160 = scmp.ne.s32.totalorder %s149, %s150
      %p161 = scmp.eq.s32.totalorder %s26, 0
      %p162 = por %p160, %p161
      %p163 = scmp.ne.s32.totalorder %s149, %s150
      %p164 = scmp.eq.s32.totalorder %s27, 1
      %p165 = por %p163, %p164
      %p167 = scmp.ne.s32.totalorder %s150, %s166
      %p168 = scmp.eq.s32.totalorder %s27, 0
      %p169 = por %p167, %p168
      %p170 = scmp.le.s32.totalorder 1, %s21
      %p171 = scmp.lt.s32.totalorder %s21, 3
      %p172 = pnand %p170, %p171
      %p173 = pneg %p172
      // Predicated region
      $region9: #{tpu_custom_call.1} parent=5 // pred_check
        _
      $region10: #{tpu_custom_call.1} parent=5 // pred_check_branch
        %175 = sbr.rel (%p172) target = $region12
      $region11: #{tpu_custom_call.1} parent=5 // pred_region
        %s176 = ssub.s32 %s21, 1
        // Predicated region
        $region13: #{tpu_custom_call.1} parent=11 // pred_check
          %p177 = pneg %p94
        $region14: #{tpu_custom_call.1} parent=11 // pred_check_branch
          %179 = sbr.rel (%p177) target = $region16
        $region15: #{tpu_custom_call.1} parent=11 // pred_region
          %181 = vsyncadd [#allocation6], 0
          %s182 = sshll.u32 %s2, 4
          %s183 = int_to_ptr.hbm [resolvable:$true] %s182
          %s184 = sshll.u32 [#allocation7], 4
          %s185 = int_to_ptr.vmem [resolvable:$true] %s184
          %190 = dma.hbm_to_vmem [thread:$0]  %s183, 16384, %s185, [#allocation6], 256, 256, 16
        $region16: #{tpu_custom_call.1} parent=11 // pred_fallthru
          _
        // Predicated region
        $region17: #{tpu_custom_call.1} parent=11 // pred_check
          %p191 = pneg %p115
        $region18: #{tpu_custom_call.1} parent=11 // pred_check_branch
          %193 = sbr.rel (%p191) target = $region20
        $region19: #{tpu_custom_call.1} parent=11 // pred_region
          %195 = vsyncadd [#allocation9], 0
          %s196 = sshll.u32 %s3, 4
          %s197 = int_to_ptr.hbm [resolvable:$true] %s196
          %s198 = sshll.u32 [#allocation8], 4
          %s199 = int_to_ptr.vmem [resolvable:$true] %s198
          %204 = dma.hbm_to_vmem [thread:$0]  %s197, 16384, %s199, [#allocation9], 256, 256, 16
        $region20: #{tpu_custom_call.1} parent=11 // pred_fallthru
          _
        // Predicated region
        $region21: #{tpu_custom_call.1} parent=11 // pred_check
          %p205 = pneg %p136
        $region22: #{tpu_custom_call.1} parent=11 // pred_check_branch
          %207 = sbr.rel (%p205) target = $region24
        $region23: #{tpu_custom_call.1} parent=11 // pred_region
          %209 = vsyncadd [#allocation9], 0
          %s211 = sshll.u32 %s4, 4
          %s212 = int_to_ptr.hbm [resolvable:$true] %s211
          %s213 = sshll.u32 [#allocation10], 4
          %s214 = int_to_ptr.vmem [resolvable:$true] %s213
          %216 = dma.hbm_to_vmem [thread:$0]  %s212, 64, %s214, [#allocation9]
        $region24: #{tpu_custom_call.1} parent=11 // pred_fallthru
          _
      $region12: #{tpu_custom_call.1} parent=5 // pred_fallthru
        _
      %p217 = scmp.lt.s32.totalorder %s21, 2
      // Predicated region
      $region25: #{tpu_custom_call.1} parent=5 // pred_check
        %p218 = pneg %p217
      $region26: #{tpu_custom_call.1} parent=5 // pred_check_branch
        %220 = sbr.rel (%p218) target = $region28
      $region27: #{tpu_custom_call.1} parent=5 // pred_region
        // Predicated region
        $region29: #{tpu_custom_call.1} parent=27 // pred_check
          %p221 = pneg %p41
        $region30: #{tpu_custom_call.1} parent=27 // pred_check_branch
          %223 = sbr.rel (%p221) target = $region32
        $region31: #{tpu_custom_call.1} parent=27 // pred_region
          %s224 = sand.u32 %s31, 1
          %s225 = scalar_lea.sflag [#allocation3], %s224
          %s226 = sand.u32 %s31, 1
          %s227 = smul.addr %s226, 64
          %s228 = scalar_lea.vmem [#allocation2], %s227
          %s229 = smul.u32 4, %s21
          %231 = vsyncadd %s225, 0
          %s232 = smul.addr %s229, 4
          %s233 = smul.addr %s232, 4
          %s234 = scalar_lea.hbm %s0, %s233
          %s235 = sshll.u32 %s234, 4
          %s236 = int_to_ptr.hbm [resolvable:$true] %s235
          %s237 = sshll.u32 %s228, 4
          %s238 = int_to_ptr.vmem [resolvable:$true] %s237
          %243 = dma.hbm_to_vmem [thread:$0]  %s236, 1024, %s238, %s225, 256, 256, 16
        $region32: #{tpu_custom_call.1} parent=27 // pred_fallthru
          _
        // Predicated region
        $region33: #{tpu_custom_call.1} parent=27 // pred_check
          %p244 = pneg %p67
        $region34: #{tpu_custom_call.1} parent=27 // pred_check_branch
          %246 = sbr.rel (%p244) target = $region36
        $region35: #{tpu_custom_call.1} parent=27 // pred_region
          %s247 = sand.u32 %s21, 1
          %s248 = scalar_lea.sflag [#allocation6], %s247
          %s249 = sand.u32 %s57, 1
          %s250 = smul.addr %s249, 64
          %s251 = scalar_lea.vmem [#allocation5], %s250
          %s252 = smul.u32 4, %s21
          %254 = vsyncadd %s248, 0
          %s255 = smul.addr %s252, 4
          %s256 = smul.addr %s255, 4
          %s257 = scalar_lea.hbm %s1, %s256
          %s258 = sshll.u32 %s257, 4
          %s259 = int_to_ptr.hbm [resolvable:$true] %s258
          %s260 = sshll.u32 %s251, 4
          %s261 = int_to_ptr.vmem [resolvable:$true] %s260
          %266 = dma.hbm_to_vmem [thread:$0]  %s259, 1024, %s261, %s248, 256, 256, 16
        $region36: #{tpu_custom_call.1} parent=27 // pred_fallthru
          _
      $region28: #{tpu_custom_call.1} parent=5 // pred_fallthru
        _
      %p267 = scmp.le.s32.totalorder 1, %s21
      %p268 = scmp.lt.s32.totalorder %s21, 3
      %p269 = pnand %p267, %p268
      %p270 = pneg %p269
      // Predicated region
      $region37: #{tpu_custom_call.1} parent=5 // pred_check
        _
      $region38: #{tpu_custom_call.1} parent=5 // pred_check_branch
        %272 = sbr.rel (%p269) target = $region40
      $region39: #{tpu_custom_call.1} parent=5 // pred_region
        %s273 = ssub.s32 %s21, 1
        %s274 = sand.u32 %s34, 1
        %s275 = scalar_lea.sflag [#allocation3], %s274
        %s276 = sand.u32 %s34, 1
        %s277 = smul.addr %s276, 64
        %s278 = scalar_lea.vmem [#allocation2], %s277
        // Predicated region
        $region41: #{tpu_custom_call.1} parent=39 // pred_check
          %p279 = pneg %p47
        $region42: #{tpu_custom_call.1} parent=39 // pred_check_branch
          %281 = sbr.rel (%p279) target = $region44
        $region43: #{tpu_custom_call.1} parent=39 // pred_region
          %283 = dma.done %s275, 1024
        $region44: #{tpu_custom_call.1} parent=39 // pred_fallthru
          _
        %s284 = sand.u32 %s26, 1
        %s285 = scalar_lea.sflag [#allocation6], %s284
        %s286 = sand.u32 %s60, 1
        %s287 = smul.addr %s286, 64
        %s288 = scalar_lea.vmem [#allocation5], %s287
        // Predicated region
        $region45: #{tpu_custom_call.1} parent=39 // pred_check
          %p289 = pneg %p73
        $region46: #{tpu_custom_call.1} parent=39 // pred_check_branch
          %291 = sbr.rel (%p289) target = $region48
        $region47: #{tpu_custom_call.1} parent=39 // pred_region
          %293 = dma.done %s285, 1024
        $region48: #{tpu_custom_call.1} parent=39 // pred_fallthru
          _
        // Predicated region
        $region49: #{tpu_custom_call.1} parent=39 // pred_check
          %p294 = pneg %p94
        $region50: #{tpu_custom_call.1} parent=39 // pred_check_branch
          %296 = sbr.rel (%p294) target = $region52
        $region51: #{tpu_custom_call.1} parent=39 // pred_region
          %298 = dma.done [#allocation6], 16384
        $region52: #{tpu_custom_call.1} parent=39 // pred_fallthru
          _
        // Predicated region
        $region53: #{tpu_custom_call.1} parent=39 // pred_check
          %p299 = pneg %p115
        $region54: #{tpu_custom_call.1} parent=39 // pred_check_branch
          %301 = sbr.rel (%p299) target = $region56
        $region55: #{tpu_custom_call.1} parent=39 // pred_region
          %303 = dma.done [#allocation9], 16384
        $region56: #{tpu_custom_call.1} parent=39 // pred_fallthru
          _
        // Predicated region
        $region57: #{tpu_custom_call.1} parent=39 // pred_check
          %p304 = pneg %p136
        $region58: #{tpu_custom_call.1} parent=39 // pred_check_branch
          %306 = sbr.rel (%p304) target = $region60
        $region59: #{tpu_custom_call.1} parent=39 // pred_region
          %308 = dma.done [#allocation9], 64
        $region60: #{tpu_custom_call.1} parent=39 // pred_fallthru
          _
        %s309 = sand.u32 %s34, 1
        %s310 = scalar_lea.sflag [#allocation3], %s309
        %s311 = sand.u32 %s34, 1
        %s312 = smul.addr %s311, 64
        %s313 = scalar_lea.vmem [#allocation2], %s312
        %p314 = pneg %p47
        %p315 = pneg %p44
        %s316 = sand.u32 %s26, 1
        %s317 = scalar_lea.sflag [#allocation6], %s316
        %s318 = sand.u32 %s60, 1
        %s319 = smul.addr %s318, 64
        %s320 = scalar_lea.vmem [#allocation5], %s319
        %p321 = pneg %p73
        %p322 = pneg %p70
        %p323 = pneg %p94
        %p324 = pneg %p91
        %p325 = pneg %p115
        %p326 = pneg %p112
        %p327 = pneg %p136
        %p328 = pneg %p133
        %p329 = pneg %p162
        %p330 = pneg %p159
        %s331 = sand.u32 %s149, 1
        %s332 = scalar_lea.sflag [#allocation4], %s331
        %s333 = sand.u32 %s149, 1
        %s334 = smul.addr %s333, 128
        %s335 = scalar_lea.vmem [#allocation11], %s334
        %s336 = smul.u32 4, %s26
        %s337 = smul.u32 4, %s26
        %s338 = smul.u32 4, %s26
        %v339 = vld [vmem:[%s278] sm:$0xff]
        %v340 = vld [vmem:[%s278 + $0x8] sm:$0xff]
        %v341 = vld [vmem:[%s278 + $0x10] sm:$0xff]
        %v342 = vld [vmem:[%s278 + $0x18] sm:$0xff]
        %v343 = vld [vmem:[%s278 + $0x20] sm:$0xff]
        %v344 = vld [vmem:[%s278 + $0x28] sm:$0xff]
        %v345 = vld [vmem:[%s278 + $0x30] sm:$0xff]
        %v346 = vld [vmem:[%s278 + $0x38] sm:$0xff]
        %v347 = vld [vmem:[#allocation7] sm:$0xff]
        %v348 = vld [vmem:[#allocation7 + $0x8] sm:$0xff]
        %v349 = vld [vmem:[#allocation7 + $0x10] sm:$0xff]
        %v350 = vld [vmem:[#allocation7 + $0x18] sm:$0xff]
        %v351 = vld [vmem:[#allocation7 + $0x20] sm:$0xff]
        %v352 = vld [vmem:[#allocation7 + $0x28] sm:$0xff]
        %v353 = vld [vmem:[#allocation7 + $0x30] sm:$0xff]
        %v354 = vld [vmem:[#allocation7 + $0x38] sm:$0xff]
        %v355 = vld [vmem:[#allocation7 + $0x40] sm:$0xff]
        %v356 = vld [vmem:[#allocation7 + $0x48] sm:$0xff]
        %v357 = vld [vmem:[#allocation7 + $0x50] sm:$0xff]
        %v358 = vld [vmem:[#allocation7 + $0x58] sm:$0xff]
        %v359 = vld [vmem:[#allocation7 + $0x60] sm:$0xff]
        %v360 = vld [vmem:[#allocation7 + $0x68] sm:$0xff]
        %v361 = vld [vmem:[#allocation7 + $0x70] sm:$0xff]
        %v362 = vld [vmem:[#allocation7 + $0x78] sm:$0xff]
        %v363 = vld [vmem:[#allocation7 + $0x80] sm:$0xff]
        %v364 = vld [vmem:[#allocation7 + $0x88] sm:$0xff]
        %v365 = vld [vmem:[#allocation7 + $0x90] sm:$0xff]
        %v366 = vld [vmem:[#allocation7 + $0x98] sm:$0xff]
        %v367 = vld [vmem:[#allocation7 + $0xa0] sm:$0xff]
        %v368 = vld [vmem:[#allocation7 + $0xa8] sm:$0xff]
        %v369 = vld [vmem:[#allocation7 + $0xb0] sm:$0xff]
        %v370 = vld [vmem:[#allocation7 + $0xb8] sm:$0xff]
        %v371 = vld [vmem:[#allocation7 + $0xc0] sm:$0xff]
        %v372 = vld [vmem:[#allocation7 + $0xc8] sm:$0xff]
        %v373 = vld [vmem:[#allocation7 + $0xd0] sm:$0xff]
        %v374 = vld [vmem:[#allocation7 + $0xd8] sm:$0xff]
        %v375 = vld [vmem:[#allocation7 + $0xe0] sm:$0xff]
        %v376 = vld [vmem:[#allocation7 + $0xe8] sm:$0xff]
        %v377 = vld [vmem:[#allocation7 + $0xf0] sm:$0xff]
        %v378 = vld [vmem:[#allocation7 + $0xf8] sm:$0xff]
        %v379 = vld [vmem:[#allocation7 + $0x100] sm:$0xff]
        %v380 = vld [vmem:[#allocation7 + $0x108] sm:$0xff]
        %v381 = vld [vmem:[#allocation7 + $0x110] sm:$0xff]
        %v382 = vld [vmem:[#allocation7 + $0x118] sm:$0xff]
        %v383 = vld [vmem:[#allocation7 + $0x120] sm:$0xff]
        %v384 = vld [vmem:[#allocation7 + $0x128] sm:$0xff]
        %v385 = vld [vmem:[#allocation7 + $0x130] sm:$0xff]
        %v386 = vld [vmem:[#allocation7 + $0x138] sm:$0xff]
        %v387 = vld [vmem:[#allocation7 + $0x140] sm:$0xff]
        %v388 = vld [vmem:[#allocation7 + $0x148] sm:$0xff]
        %v389 = vld [vmem:[#allocation7 + $0x150] sm:$0xff]
        %v390 = vld [vmem:[#allocation7 + $0x158] sm:$0xff]
        %v391 = vld [vmem:[#allocation7 + $0x160] sm:$0xff]
        %v392 = vld [vmem:[#allocation7 + $0x168] sm:$0xff]
        %v393 = vld [vmem:[#allocation7 + $0x170] sm:$0xff]
        %v394 = vld [vmem:[#allocation7 + $0x178] sm:$0xff]
        %v395 = vld [vmem:[#allocation7 + $0x180] sm:$0xff]
        %v396 = vld [vmem:[#allocation7 + $0x188] sm:$0xff]
        %v397 = vld [vmem:[#allocation7 + $0x190] sm:$0xff]
        %v398 = vld [vmem:[#allocation7 + $0x198] sm:$0xff]
        %v399 = vld [vmem:[#allocation7 + $0x1a0] sm:$0xff]
        %v400 = vld [vmem:[#allocation7 + $0x1a8] sm:$0xff]
        %v401 = vld [vmem:[#allocation7 + $0x1b0] sm:$0xff]
        %v402 = vld [vmem:[#allocation7 + $0x1b8] sm:$0xff]
        %v403 = vld [vmem:[#allocation7 + $0x1c0] sm:$0xff]
        %v404 = vld [vmem:[#allocation7 + $0x1c8] sm:$0xff]
        %v405 = vld [vmem:[#allocation7 + $0x1d0] sm:$0xff]
        %v406 = vld [vmem:[#allocation7 + $0x1d8] sm:$0xff]
        %v407 = vld [vmem:[#allocation7 + $0x1e0] sm:$0xff]
        %v408 = vld [vmem:[#allocation7 + $0x1e8] sm:$0xff]
        %v409 = vld [vmem:[#allocation7 + $0x1f0] sm:$0xff]
        %v410 = vld [vmem:[#allocation7 + $0x1f8] sm:$0xff]
        %v411 = vld [vmem:[#allocation7 + $0x200] sm:$0xff]
        %v412 = vld [vmem:[#allocation7 + $0x208] sm:$0xff]
        %v413 = vld [vmem:[#allocation7 + $0x210] sm:$0xff]
        %v414 = vld [vmem:[#allocation7 + $0x218] sm:$0xff]
        %v415 = vld [vmem:[#allocation7 + $0x220] sm:$0xff]
        %v416 = vld [vmem:[#allocation7 + $0x228] sm:$0xff]
        %v417 = vld [vmem:[#allocation7 + $0x230] sm:$0xff]
        %v418 = vld [vmem:[#allocation7 + $0x238] sm:$0xff]
        %v419 = vld [vmem:[#allocation7 + $0x240] sm:$0xff]
        %v420 = vld [vmem:[#allocation7 + $0x248] sm:$0xff]
        %v421 = vld [vmem:[#allocation7 + $0x250] sm:$0xff]
        %v422 = vld [vmem:[#allocation7 + $0x258] sm:$0xff]
        %v423 = vld [vmem:[#allocation7 + $0x260] sm:$0xff]
        %v424 = vld [vmem:[#allocation7 + $0x268] sm:$0xff]
        %v425 = vld [vmem:[#allocation7 + $0x270] sm:$0xff]
        %v426 = vld [vmem:[#allocation7 + $0x278] sm:$0xff]
        %v427 = vld [vmem:[#allocation7 + $0x280] sm:$0xff]
        %v428 = vld [vmem:[#allocation7 + $0x288] sm:$0xff]
        %v429 = vld [vmem:[#allocation7 + $0x290] sm:$0xff]
        %v430 = vld [vmem:[#allocation7 + $0x298] sm:$0xff]
        %v431 = vld [vmem:[#allocation7 + $0x2a0] sm:$0xff]
        %v432 = vld [vmem:[#allocation7 + $0x2a8] sm:$0xff]
        %v433 = vld [vmem:[#allocation7 + $0x2b0] sm:$0xff]
        %v434 = vld [vmem:[#allocation7 + $0x2b8] sm:$0xff]
        %v435 = vld [vmem:[#allocation7 + $0x2c0] sm:$0xff]
        %v436 = vld [vmem:[#allocation7 + $0x2c8] sm:$0xff]
        %v437 = vld [vmem:[#allocation7 + $0x2d0] sm:$0xff]
        %v438 = vld [vmem:[#allocation7 + $0x2d8] sm:$0xff]
        %v439 = vld [vmem:[#allocation7 + $0x2e0] sm:$0xff]
        %v440 = vld [vmem:[#allocation7 + $0x2e8] sm:$0xff]
        %v441 = vld [vmem:[#allocation7 + $0x2f0] sm:$0xff]
        %v442 = vld [vmem:[#allocation7 + $0x2f8] sm:$0xff]
        %v443 = vld [vmem:[#allocation7 + $0x300] sm:$0xff]
        %v444 = vld [vmem:[#allocation7 + $0x308] sm:$0xff]
        %v445 = vld [vmem:[#allocation7 + $0x310] sm:$0xff]
        %v446 = vld [vmem:[#allocation7 + $0x318] sm:$0xff]
        %v447 = vld [vmem:[#allocation7 + $0x320] sm:$0xff]
        %v448 = vld [vmem:[#allocation7 + $0x328] sm:$0xff]
        %v449 = vld [vmem:[#allocation7 + $0x330] sm:$0xff]
        %v450 = vld [vmem:[#allocation7 + $0x338] sm:$0xff]
        %v451 = vld [vmem:[#allocation7 + $0x340] sm:$0xff]
        %v452 = vld [vmem:[#allocation7 + $0x348] sm:$0xff]
        %v453 = vld [vmem:[#allocation7 + $0x350] sm:$0xff]
        %v454 = vld [vmem:[#allocation7 + $0x358] sm:$0xff]
        %v455 = vld [vmem:[#allocation7 + $0x360] sm:$0xff]
        %v456 = vld [vmem:[#allocation7 + $0x368] sm:$0xff]
        %v457 = vld [vmem:[#allocation7 + $0x370] sm:$0xff]
        %v458 = vld [vmem:[#allocation7 + $0x378] sm:$0xff]
        %v459 = vld [vmem:[#allocation7 + $0x380] sm:$0xff]
        %v460 = vld [vmem:[#allocation7 + $0x388] sm:$0xff]
        %v461 = vld [vmem:[#allocation7 + $0x390] sm:$0xff]
        %v462 = vld [vmem:[#allocation7 + $0x398] sm:$0xff]
        %v463 = vld [vmem:[#allocation7 + $0x3a0] sm:$0xff]
        %v464 = vld [vmem:[#allocation7 + $0x3a8] sm:$0xff]
        %v465 = vld [vmem:[#allocation7 + $0x3b0] sm:$0xff]
        %v466 = vld [vmem:[#allocation7 + $0x3b8] sm:$0xff]
        %v467 = vld [vmem:[#allocation7 + $0x3c0] sm:$0xff]
        %v468 = vld [vmem:[#allocation7 + $0x3c8] sm:$0xff]
        %v469 = vld [vmem:[#allocation7 + $0x3d0] sm:$0xff]
        %v470 = vld [vmem:[#allocation7 + $0x3d8] sm:$0xff]
        %v471 = vld [vmem:[#allocation7 + $0x3e0] sm:$0xff]
        %v472 = vld [vmem:[#allocation7 + $0x3e8] sm:$0xff]
        %v473 = vld [vmem:[#allocation7 + $0x3f0] sm:$0xff]
        %v474 = vld [vmem:[#allocation7 + $0x3f8] sm:$0xff]
        %v475 = vld [vmem:[%s288] sm:$0xff]
        %v476 = vld [vmem:[%s288 + $0x8] sm:$0xff]
        %v477 = vld [vmem:[%s288 + $0x10] sm:$0xff]
        %v478 = vld [vmem:[%s288 + $0x18] sm:$0xff]
        %v479 = vld [vmem:[%s288 + $0x20] sm:$0xff]
        %v480 = vld [vmem:[%s288 + $0x28] sm:$0xff]
        %v481 = vld [vmem:[%s288 + $0x30] sm:$0xff]
        %v482 = vld [vmem:[%s288 + $0x38] sm:$0xff]
        %v483 = vld [vmem:[#allocation8] sm:$0xff]
        %v484 = vld [vmem:[#allocation8 + $0x8] sm:$0xff]
        %v485 = vld [vmem:[#allocation8 + $0x10] sm:$0xff]
        %v486 = vld [vmem:[#allocation8 + $0x18] sm:$0xff]
        %v487 = vld [vmem:[#allocation8 + $0x20] sm:$0xff]
        %v488 = vld [vmem:[#allocation8 + $0x28] sm:$0xff]
        %v489 = vld [vmem:[#allocation8 + $0x30] sm:$0xff]
        %v490 = vld [vmem:[#allocation8 + $0x38] sm:$0xff]
        %v491 = vld [vmem:[#allocation8 + $0x40] sm:$0xff]
        %v492 = vld [vmem:[#allocation8 + $0x48] sm:$0xff]
        %v493 = vld [vmem:[#allocation8 + $0x50] sm:$0xff]
        %v494 = vld [vmem:[#allocation8 + $0x58] sm:$0xff]
        %v495 = vld [vmem:[#allocation8 + $0x60] sm:$0xff]
        %v496 = vld [vmem:[#allocation8 + $0x68] sm:$0xff]
        %v497 = vld [vmem:[#allocation8 + $0x70] sm:$0xff]
        %v498 = vld [vmem:[#allocation8 + $0x78] sm:$0xff]
        %v499 = vld [vmem:[#allocation8 + $0x80] sm:$0xff]
        %v500 = vld [vmem:[#allocation8 + $0x88] sm:$0xff]
        %v501 = vld [vmem:[#allocation8 + $0x90] sm:$0xff]
        %v502 = vld [vmem:[#allocation8 + $0x98] sm:$0xff]
        %v503 = vld [vmem:[#allocation8 + $0xa0] sm:$0xff]
        %v504 = vld [vmem:[#allocation8 + $0xa8] sm:$0xff]
        %v505 = vld [vmem:[#allocation8 + $0xb0] sm:$0xff]
        %v506 = vld [vmem:[#allocation8 + $0xb8] sm:$0xff]
        %v507 = vld [vmem:[#allocation8 + $0xc0] sm:$0xff]
        %v508 = vld [vmem:[#allocation8 + $0xc8] sm:$0xff]
        %v509 = vld [vmem:[#allocation8 + $0xd0] sm:$0xff]
        %v510 = vld [vmem:[#allocation8 + $0xd8] sm:$0xff]
        %v511 = vld [vmem:[#allocation8 + $0xe0] sm:$0xff]
        %v512 = vld [vmem:[#allocation8 + $0xe8] sm:$0xff]
        %v513 = vld [vmem:[#allocation8 + $0xf0] sm:$0xff]
        %v514 = vld [vmem:[#allocation8 + $0xf8] sm:$0xff]
        %v515 = vld [vmem:[#allocation8 + $0x100] sm:$0xff]
        %v516 = vld [vmem:[#allocation8 + $0x108] sm:$0xff]
        %v517 = vld [vmem:[#allocation8 + $0x110] sm:$0xff]
        %v518 = vld [vmem:[#allocation8 + $0x118] sm:$0xff]
        %v519 = vld [vmem:[#allocation8 + $0x120] sm:$0xff]
        %v520 = vld [vmem:[#allocation8 + $0x128] sm:$0xff]
        %v521 = vld [vmem:[#allocation8 + $0x130] sm:$0xff]
        %v522 = vld [vmem:[#allocation8 + $0x138] sm:$0xff]
        %v523 = vld [vmem:[#allocation8 + $0x140] sm:$0xff]
        %v524 = vld [vmem:[#allocation8 + $0x148] sm:$0xff]
        %v525 = vld [vmem:[#allocation8 + $0x150] sm:$0xff]
        %v526 = vld [vmem:[#allocation8 + $0x158] sm:$0xff]
        %v527 = vld [vmem:[#allocation8 + $0x160] sm:$0xff]
        %v528 = vld [vmem:[#allocation8 + $0x168] sm:$0xff]
        %v529 = vld [vmem:[#allocation8 + $0x170] sm:$0xff]
        %v530 = vld [vmem:[#allocation8 + $0x178] sm:$0xff]
        %v531 = vld [vmem:[#allocation8 + $0x180] sm:$0xff]
        %v532 = vld [vmem:[#allocation8 + $0x188] sm:$0xff]
        %v533 = vld [vmem:[#allocation8 + $0x190] sm:$0xff]
        %v534 = vld [vmem:[#allocation8 + $0x198] sm:$0xff]
        %v535 = vld [vmem:[#allocation8 + $0x1a0] sm:$0xff]
        %v536 = vld [vmem:[#allocation8 + $0x1a8] sm:$0xff]
        %v537 = vld [vmem:[#allocation8 + $0x1b0] sm:$0xff]
        %v538 = vld [vmem:[#allocation8 + $0x1b8] sm:$0xff]
        %v539 = vld [vmem:[#allocation8 + $0x1c0] sm:$0xff]
        %v540 = vld [vmem:[#allocation8 + $0x1c8] sm:$0xff]
        %v541 = vld [vmem:[#allocation8 + $0x1d0] sm:$0xff]
        %v542 = vld [vmem:[#allocation8 + $0x1d8] sm:$0xff]
        %v543 = vld [vmem:[#allocation8 + $0x1e0] sm:$0xff]
        %v544 = vld [vmem:[#allocation8 + $0x1e8] sm:$0xff]
        %v545 = vld [vmem:[#allocation8 + $0x1f0] sm:$0xff]
        %v546 = vld [vmem:[#allocation8 + $0x1f8] sm:$0xff]
        %v547 = vld [vmem:[#allocation8 + $0x200] sm:$0xff]
        %v548 = vld [vmem:[#allocation8 + $0x208] sm:$0xff]
        %v549 = vld [vmem:[#allocation8 + $0x210] sm:$0xff]
        %v550 = vld [vmem:[#allocation8 + $0x218] sm:$0xff]
        %v551 = vld [vmem:[#allocation8 + $0x220] sm:$0xff]
        %v552 = vld [vmem:[#allocation8 + $0x228] sm:$0xff]
        %v553 = vld [vmem:[#allocation8 + $0x230] sm:$0xff]
        %v554 = vld [vmem:[#allocation8 + $0x238] sm:$0xff]
        %v555 = vld [vmem:[#allocation8 + $0x240] sm:$0xff]
        %v556 = vld [vmem:[#allocation8 + $0x248] sm:$0xff]
        %v557 = vld [vmem:[#allocation8 + $0x250] sm:$0xff]
        %v558 = vld [vmem:[#allocation8 + $0x258] sm:$0xff]
        %v559 = vld [vmem:[#allocation8 + $0x260] sm:$0xff]
        %v560 = vld [vmem:[#allocation8 + $0x268] sm:$0xff]
        %v561 = vld [vmem:[#allocation8 + $0x270] sm:$0xff]
        %v562 = vld [vmem:[#allocation8 + $0x278] sm:$0xff]
        %v563 = vld [vmem:[#allocation8 + $0x280] sm:$0xff]
        %v564 = vld [vmem:[#allocation8 + $0x288] sm:$0xff]
        %v565 = vld [vmem:[#allocation8 + $0x290] sm:$0xff]
        %v566 = vld [vmem:[#allocation8 + $0x298] sm:$0xff]
        %v567 = vld [vmem:[#allocation8 + $0x2a0] sm:$0xff]
        %v568 = vld [vmem:[#allocation8 + $0x2a8] sm:$0xff]
        %v569 = vld [vmem:[#allocation8 + $0x2b0] sm:$0xff]
        %v570 = vld [vmem:[#allocation8 + $0x2b8] sm:$0xff]
        %v571 = vld [vmem:[#allocation8 + $0x2c0] sm:$0xff]
        %v572 = vld [vmem:[#allocation8 + $0x2c8] sm:$0xff]
        %v573 = vld [vmem:[#allocation8 + $0x2d0] sm:$0xff]
        %v574 = vld [vmem:[#allocation8 + $0x2d8] sm:$0xff]
        %v575 = vld [vmem:[#allocation8 + $0x2e0] sm:$0xff]
        %v576 = vld [vmem:[#allocation8 + $0x2e8] sm:$0xff]
        %v577 = vld [vmem:[#allocation8 + $0x2f0] sm:$0xff]
        %v578 = vld [vmem:[#allocation8 + $0x2f8] sm:$0xff]
        %v579 = vld [vmem:[#allocation8 + $0x300] sm:$0xff]
        %v580 = vld [vmem:[#allocation8 + $0x308] sm:$0xff]
        %v581 = vld [vmem:[#allocation8 + $0x310] sm:$0xff]
        %v582 = vld [vmem:[#allocation8 + $0x318] sm:$0xff]
        %v583 = vld [vmem:[#allocation8 + $0x320] sm:$0xff]
        %v584 = vld [vmem:[#allocation8 + $0x328] sm:$0xff]
        %v585 = vld [vmem:[#allocation8 + $0x330] sm:$0xff]
        %v586 = vld [vmem:[#allocation8 + $0x338] sm:$0xff]
        %v587 = vld [vmem:[#allocation8 + $0x340] sm:$0xff]
        %v588 = vld [vmem:[#allocation8 + $0x348] sm:$0xff]
        %v589 = vld [vmem:[#allocation8 + $0x350] sm:$0xff]
        %v590 = vld [vmem:[#allocation8 + $0x358] sm:$0xff]
        %v591 = vld [vmem:[#allocation8 + $0x360] sm:$0xff]
        %v592 = vld [vmem:[#allocation8 + $0x368] sm:$0xff]
        %v593 = vld [vmem:[#allocation8 + $0x370] sm:$0xff]
        %v594 = vld [vmem:[#allocation8 + $0x378] sm:$0xff]
        %v595 = vld [vmem:[#allocation8 + $0x380] sm:$0xff]
        %v596 = vld [vmem:[#allocation8 + $0x388] sm:$0xff]
        %v597 = vld [vmem:[#allocation8 + $0x390] sm:$0xff]
        %v598 = vld [vmem:[#allocation8 + $0x398] sm:$0xff]
        %v599 = vld [vmem:[#allocation8 + $0x3a0] sm:$0xff]
        %v600 = vld [vmem:[#allocation8 + $0x3a8] sm:$0xff]
        %v601 = vld [vmem:[#allocation8 + $0x3b0] sm:$0xff]
        %v602 = vld [vmem:[#allocation8 + $0x3b8] sm:$0xff]
        %v603 = vld [vmem:[#allocation8 + $0x3c0] sm:$0xff]
        %v604 = vld [vmem:[#allocation8 + $0x3c8] sm:$0xff]
        %v605 = vld [vmem:[#allocation8 + $0x3d0] sm:$0xff]
        %v606 = vld [vmem:[#allocation8 + $0x3d8] sm:$0xff]
        %v607 = vld [vmem:[#allocation8 + $0x3e0] sm:$0xff]
        %v608 = vld [vmem:[#allocation8 + $0x3e8] sm:$0xff]
        %v609 = vld [vmem:[#allocation8 + $0x3f0] sm:$0xff]
        %v610 = vld [vmem:[#allocation8 + $0x3f8] sm:$0xff]
        %v619 = vunpack.c.l.b16 %v475
        %v620 = vunpack.c.h.b16 %v475
        %v621 = vunpack.c.l.b16 %v476
        %v622 = vunpack.c.h.b16 %v476
        %v623 = vunpack.c.l.b16 %v477
        %v624 = vunpack.c.h.b16 %v477
        %v625 = vunpack.c.l.b16 %v478
        %v626 = vunpack.c.h.b16 %v478
        %v627 = vunpack.c.l.b16 %v479
        %v628 = vunpack.c.h.b16 %v479
        %v629 = vunpack.c.l.b16 %v480
        %v630 = vunpack.c.h.b16 %v480
        %v631 = vunpack.c.l.b16 %v481
        %v632 = vunpack.c.h.b16 %v481
        %v633 = vunpack.c.l.b16 %v482
        %v634 = vunpack.c.h.b16 %v482
        %v635 = vpack.c.b16 %v623, %v619
        %v636 = vpack.c.b16 %v624, %v620
        %v637 = vpack.c.b16 %v625, %v621
        %v638 = vpack.c.b16 %v626, %v622
        %v639 = vpack.c.b16 %v631, %v627
        %v640 = vpack.c.b16 %v632, %v628
        %v641 = vpack.c.b16 %v633, %v629
        %v642 = vpack.c.b16 %v634, %v630
        %v779 = vunpack.c.l.b16 %v483
        %v780 = vunpack.c.h.b16 %v483
        %v781 = vunpack.c.l.b16 %v484
        %v782 = vunpack.c.h.b16 %v484
        %v783 = vunpack.c.l.b16 %v485
        %v784 = vunpack.c.h.b16 %v485
        %v785 = vunpack.c.l.b16 %v486
        %v786 = vunpack.c.h.b16 %v486
        %v787 = vunpack.c.l.b16 %v487
        %v788 = vunpack.c.h.b16 %v487
        %v789 = vunpack.c.l.b16 %v488
        %v790 = vunpack.c.h.b16 %v488
        %v791 = vunpack.c.l.b16 %v489
        %v792 = vunpack.c.h.b16 %v489
        %v793 = vunpack.c.l.b16 %v490
        %v794 = vunpack.c.h.b16 %v490
        %v795 = vunpack.c.l.b16 %v491
        %v796 = vunpack.c.h.b16 %v491
        %v797 = vunpack.c.l.b16 %v492
        %v798 = vunpack.c.h.b16 %v492
        %v799 = vunpack.c.l.b16 %v493
        %v800 = vunpack.c.h.b16 %v493
        %v801 = vunpack.c.l.b16 %v494
        %v802 = vunpack.c.h.b16 %v494
        %v803 = vunpack.c.l.b16 %v495
        %v804 = vunpack.c.h.b16 %v495
        %v805 = vunpack.c.l.b16 %v496
        %v806 = vunpack.c.h.b16 %v496
        %v807 = vunpack.c.l.b16 %v497
        %v808 = vunpack.c.h.b16 %v497
        %v809 = vunpack.c.l.b16 %v498
        %v810 = vunpack.c.h.b16 %v498
        %v811 = vunpack.c.l.b16 %v499
        %v812 = vunpack.c.h.b16 %v499
        %v813 = vunpack.c.l.b16 %v500
        %v814 = vunpack.c.h.b16 %v500
        %v815 = vunpack.c.l.b16 %v501
        %v816 = vunpack.c.h.b16 %v501
        %v817 = vunpack.c.l.b16 %v502
        %v818 = vunpack.c.h.b16 %v502
        %v819 = vunpack.c.l.b16 %v503
        %v820 = vunpack.c.h.b16 %v503
        %v821 = vunpack.c.l.b16 %v504
        %v822 = vunpack.c.h.b16 %v504
        %v823 = vunpack.c.l.b16 %v505
        %v824 = vunpack.c.h.b16 %v505
        %v825 = vunpack.c.l.b16 %v506
        %v826 = vunpack.c.h.b16 %v506
        %v827 = vunpack.c.l.b16 %v507
        %v828 = vunpack.c.h.b16 %v507
        %v829 = vunpack.c.l.b16 %v508
        %v830 = vunpack.c.h.b16 %v508
        %v831 = vunpack.c.l.b16 %v509
        %v832 = vunpack.c.h.b16 %v509
        %v833 = vunpack.c.l.b16 %v510
        %v834 = vunpack.c.h.b16 %v510
        %v835 = vunpack.c.l.b16 %v511
        %v836 = vunpack.c.h.b16 %v511
        %v837 = vunpack.c.l.b16 %v512
        %v838 = vunpack.c.h.b16 %v512
        %v839 = vunpack.c.l.b16 %v513
        %v840 = vunpack.c.h.b16 %v513
        %v841 = vunpack.c.l.b16 %v514
        %v842 = vunpack.c.h.b16 %v514
        %v843 = vunpack.c.l.b16 %v515
        %v844 = vunpack.c.h.b16 %v515
        %v845 = vunpack.c.l.b16 %v516
        %v846 = vunpack.c.h.b16 %v516
        %v847 = vunpack.c.l.b16 %v517
        %v848 = vunpack.c.h.b16 %v517
        %v849 = vunpack.c.l.b16 %v518
        %v850 = vunpack.c.h.b16 %v518
        %v851 = vunpack.c.l.b16 %v519
        %v852 = vunpack.c.h.b16 %v519
        %v853 = vunpack.c.l.b16 %v520
        %v854 = vunpack.c.h.b16 %v520
        %v855 = vunpack.c.l.b16 %v521
        %v856 = vunpack.c.h.b16 %v521
        %v857 = vunpack.c.l.b16 %v522
        %v858 = vunpack.c.h.b16 %v522
        %v859 = vunpack.c.l.b16 %v523
        %v860 = vunpack.c.h.b16 %v523
        %v861 = vunpack.c.l.b16 %v524
        %v862 = vunpack.c.h.b16 %v524
        %v863 = vunpack.c.l.b16 %v525
        %v864 = vunpack.c.h.b16 %v525
        %v865 = vunpack.c.l.b16 %v526
        %v866 = vunpack.c.h.b16 %v526
        %v867 = vunpack.c.l.b16 %v527
        %v868 = vunpack.c.h.b16 %v527
        %v869 = vunpack.c.l.b16 %v528
        %v870 = vunpack.c.h.b16 %v528
        %v871 = vunpack.c.l.b16 %v529
        %v872 = vunpack.c.h.b16 %v529
        %v873 = vunpack.c.l.b16 %v530
        %v874 = vunpack.c.h.b16 %v530
        %v875 = vunpack.c.l.b16 %v531
        %v876 = vunpack.c.h.b16 %v531
        %v877 = vunpack.c.l.b16 %v532
        %v878 = vunpack.c.h.b16 %v532
        %v879 = vunpack.c.l.b16 %v533
        %v880 = vunpack.c.h.b16 %v533
        %v881 = vunpack.c.l.b16 %v534
        %v882 = vunpack.c.h.b16 %v534
        %v883 = vunpack.c.l.b16 %v535
        %v884 = vunpack.c.h.b16 %v535
        %v885 = vunpack.c.l.b16 %v536
        %v886 = vunpack.c.h.b16 %v536
        %v887 = vunpack.c.l.b16 %v537
        %v888 = vunpack.c.h.b16 %v537
        %v889 = vunpack.c.l.b16 %v538
        %v890 = vunpack.c.h.b16 %v538
        %v891 = vunpack.c.l.b16 %v539
        %v892 = vunpack.c.h.b16 %v539
        %v893 = vunpack.c.l.b16 %v540
        %v894 = vunpack.c.h.b16 %v540
        %v895 = vunpack.c.l.b16 %v541
        %v896 = vunpack.c.h.b16 %v541
        %v897 = vunpack.c.l.b16 %v542
        %v898 = vunpack.c.h.b16 %v542
        %v899 = vunpack.c.l.b16 %v543
        %v900 = vunpack.c.h.b16 %v543
        %v901 = vunpack.c.l.b16 %v544
        %v902 = vunpack.c.h.b16 %v544
        %v903 = vunpack.c.l.b16 %v545
        %v904 = vunpack.c.h.b16 %v545
        %v905 = vunpack.c.l.b16 %v546
        %v906 = vunpack.c.h.b16 %v546
        %v907 = vunpack.c.l.b16 %v547
        %v908 = vunpack.c.h.b16 %v547
        %v909 = vunpack.c.l.b16 %v548
        %v910 = vunpack.c.h.b16 %v548
        %v911 = vunpack.c.l.b16 %v549
        %v912 = vunpack.c.h.b16 %v549
        %v913 = vunpack.c.l.b16 %v550
        %v914 = vunpack.c.h.b16 %v550
        %v915 = vunpack.c.l.b16 %v551
        %v916 = vunpack.c.h.b16 %v551
        %v917 = vunpack.c.l.b16 %v552
        %v918 = vunpack.c.h.b16 %v552
        %v919 = vunpack.c.l.b16 %v553
        %v920 = vunpack.c.h.b16 %v553
        %v921 = vunpack.c.l.b16 %v554
        %v922 = vunpack.c.h.b16 %v554
        %v923 = vunpack.c.l.b16 %v555
        %v924 = vunpack.c.h.b16 %v555
        %v925 = vunpack.c.l.b16 %v556
        %v926 = vunpack.c.h.b16 %v556
        %v927 = vunpack.c.l.b16 %v557
        %v928 = vunpack.c.h.b16 %v557
        %v929 = vunpack.c.l.b16 %v558
        %v930 = vunpack.c.h.b16 %v558
        %v931 = vunpack.c.l.b16 %v559
        %v932 = vunpack.c.h.b16 %v559
        %v933 = vunpack.c.l.b16 %v560
        %v934 = vunpack.c.h.b16 %v560
        %v935 = vunpack.c.l.b16 %v561
        %v936 = vunpack.c.h.b16 %v561
        %v937 = vunpack.c.l.b16 %v562
        %v938 = vunpack.c.h.b16 %v562
        %v939 = vunpack.c.l.b16 %v563
        %v940 = vunpack.c.h.b16 %v563
        %v941 = vunpack.c.l.b16 %v564
        %v942 = vunpack.c.h.b16 %v564
        %v943 = vunpack.c.l.b16 %v565
        %v944 = vunpack.c.h.b16 %v565
        %v945 = vunpack.c.l.b16 %v566
        %v946 = vunpack.c.h.b16 %v566
        %v947 = vunpack.c.l.b16 %v567
        %v948 = vunpack.c.h.b16 %v567
        %v949 = vunpack.c.l.b16 %v568
        %v950 = vunpack.c.h.b16 %v568
        %v951 = vunpack.c.l.b16 %v569
        %v952 = vunpack.c.h.b16 %v569
        %v953 = vunpack.c.l.b16 %v570
        %v954 = vunpack.c.h.b16 %v570
        %v955 = vunpack.c.l.b16 %v571
        %v956 = vunpack.c.h.b16 %v571
        %v957 = vunpack.c.l.b16 %v572
        %v958 = vunpack.c.h.b16 %v572
        %v959 = vunpack.c.l.b16 %v573
        %v960 = vunpack.c.h.b16 %v573
        %v961 = vunpack.c.l.b16 %v574
        %v962 = vunpack.c.h.b16 %v574
        %v963 = vunpack.c.l.b16 %v575
        %v964 = vunpack.c.h.b16 %v575
        %v965 = vunpack.c.l.b16 %v576
        %v966 = vunpack.c.h.b16 %v576
        %v967 = vunpack.c.l.b16 %v577
        %v968 = vunpack.c.h.b16 %v577
        %v969 = vunpack.c.l.b16 %v578
        %v970 = vunpack.c.h.b16 %v578
        %v971 = vunpack.c.l.b16 %v579
        %v972 = vunpack.c.h.b16 %v579
        %v973 = vunpack.c.l.b16 %v580
        %v974 = vunpack.c.h.b16 %v580
        %v975 = vunpack.c.l.b16 %v581
        %v976 = vunpack.c.h.b16 %v581
        %v977 = vunpack.c.l.b16 %v582
        %v978 = vunpack.c.h.b16 %v582
        %v979 = vunpack.c.l.b16 %v583
        %v980 = vunpack.c.h.b16 %v583
        %v981 = vunpack.c.l.b16 %v584
        %v982 = vunpack.c.h.b16 %v584
        %v983 = vunpack.c.l.b16 %v585
        %v984 = vunpack.c.h.b16 %v585
        %v985 = vunpack.c.l.b16 %v586
        %v986 = vunpack.c.h.b16 %v586
        %v987 = vunpack.c.l.b16 %v587
        %v988 = vunpack.c.h.b16 %v587
        %v989 = vunpack.c.l.b16 %v588
        %v990 = vunpack.c.h.b16 %v588
        %v991 = vunpack.c.l.b16 %v589
        %v992 = vunpack.c.h.b16 %v589
        %v993 = vunpack.c.l.b16 %v590
        %v994 = vunpack.c.h.b16 %v590
        %v995 = vunpack.c.l.b16 %v591
        %v996 = vunpack.c.h.b16 %v591
        %v997 = vunpack.c.l.b16 %v592
        %v998 = vunpack.c.h.b16 %v592
        %v999 = vunpack.c.l.b16 %v593
        %v1000 = vunpack.c.h.b16 %v593
        %v1001 = vunpack.c.l.b16 %v594
        %v1002 = vunpack.c.h.b16 %v594
        %v1003 = vunpack.c.l.b16 %v595
        %v1004 = vunpack.c.h.b16 %v595
        %v1005 = vunpack.c.l.b16 %v596
        %v1006 = vunpack.c.h.b16 %v596
        %v1007 = vunpack.c.l.b16 %v597
        %v1008 = vunpack.c.h.b16 %v597
        %v1009 = vunpack.c.l.b16 %v598
        %v1010 = vunpack.c.h.b16 %v598
        %v1011 = vunpack.c.l.b16 %v599
        %v1012 = vunpack.c.h.b16 %v599
        %v1013 = vunpack.c.l.b16 %v600
        %v1014 = vunpack.c.h.b16 %v600
        %v1015 = vunpack.c.l.b16 %v601
        %v1016 = vunpack.c.h.b16 %v601
        %v1017 = vunpack.c.l.b16 %v602
        %v1018 = vunpack.c.h.b16 %v602
        %v1019 = vunpack.c.l.b16 %v603
        %v1020 = vunpack.c.h.b16 %v603
        %v1021 = vunpack.c.l.b16 %v604
        %v1022 = vunpack.c.h.b16 %v604
        %v1023 = vunpack.c.l.b16 %v605
        %v1024 = vunpack.c.h.b16 %v605
        %v1025 = vunpack.c.l.b16 %v606
        %v1026 = vunpack.c.h.b16 %v606
        %v1027 = vunpack.c.l.b16 %v607
        %v1028 = vunpack.c.h.b16 %v607
        %v1029 = vunpack.c.l.b16 %v608
        %v1030 = vunpack.c.h.b16 %v608
        %v1031 = vunpack.c.l.b16 %v609
        %v1032 = vunpack.c.h.b16 %v609
        %v1033 = vunpack.c.l.b16 %v610
        %v1034 = vunpack.c.h.b16 %v610
        %v1035 = vpack.c.b16 %v783, %v779
        %v1036 = vpack.c.b16 %v784, %v780
        %v1037 = vpack.c.b16 %v785, %v781
        %v1038 = vpack.c.b16 %v786, %v782
        %v1039 = vpack.c.b16 %v791, %v787
        %v1040 = vpack.c.b16 %v792, %v788
        %v1041 = vpack.c.b16 %v793, %v789
        %v1042 = vpack.c.b16 %v794, %v790
        %v1043 = vpack.c.b16 %v799, %v795
        %v1044 = vpack.c.b16 %v800, %v796
        %v1045 = vpack.c.b16 %v801, %v797
        %v1046 = vpack.c.b16 %v802, %v798
        %v1047 = vpack.c.b16 %v807, %v803
        %v1048 = vpack.c.b16 %v808, %v804
        %v1049 = vpack.c.b16 %v809, %v805
        %v1050 = vpack.c.b16 %v810, %v806
        %v1051 = vpack.c.b16 %v815, %v811
        %v1052 = vpack.c.b16 %v816, %v812
        %v1053 = vpack.c.b16 %v817, %v813
        %v1054 = vpack.c.b16 %v818, %v814
        %v1055 = vpack.c.b16 %v823, %v819
        %v1056 = vpack.c.b16 %v824, %v820
        %v1057 = vpack.c.b16 %v825, %v821
        %v1058 = vpack.c.b16 %v826, %v822
        %v1059 = vpack.c.b16 %v831, %v827
        %v1060 = vpack.c.b16 %v832, %v828
        %v1061 = vpack.c.b16 %v833, %v829
        %v1062 = vpack.c.b16 %v834, %v830
        %v1063 = vpack.c.b16 %v839, %v835
        %v1064 = vpack.c.b16 %v840, %v836
        %v1065 = vpack.c.b16 %v841, %v837
        %v1066 = vpack.c.b16 %v842, %v838
        %v1067 = vpack.c.b16 %v847, %v843
        %v1068 = vpack.c.b16 %v848, %v844
        %v1069 = vpack.c.b16 %v849, %v845
        %v1070 = vpack.c.b16 %v850, %v846
        %v1071 = vpack.c.b16 %v855, %v851
        %v1072 = vpack.c.b16 %v856, %v852
        %v1073 = vpack.c.b16 %v857, %v853
        %v1074 = vpack.c.b16 %v858, %v854
        %v1075 = vpack.c.b16 %v863, %v859
        %v1076 = vpack.c.b16 %v864, %v860
        %v1077 = vpack.c.b16 %v865, %v861
        %v1078 = vpack.c.b16 %v866, %v862
        %v1079 = vpack.c.b16 %v871, %v867
        %v1080 = vpack.c.b16 %v872, %v868
        %v1081 = vpack.c.b16 %v873, %v869
        %v1082 = vpack.c.b16 %v874, %v870
        %v1083 = vpack.c.b16 %v879, %v875
        %v1084 = vpack.c.b16 %v880, %v876
        %v1085 = vpack.c.b16 %v881, %v877
        %v1086 = vpack.c.b16 %v882, %v878
        %v1087 = vpack.c.b16 %v887, %v883
        %v1088 = vpack.c.b16 %v888, %v884
        %v1089 = vpack.c.b16 %v889, %v885
        %v1090 = vpack.c.b16 %v890, %v886
        %v1091 = vpack.c.b16 %v895, %v891
        %v1092 = vpack.c.b16 %v896, %v892
        %v1093 = vpack.c.b16 %v897, %v893
        %v1094 = vpack.c.b16 %v898, %v894
        %v1095 = vpack.c.b16 %v903, %v899
        %v1096 = vpack.c.b16 %v904, %v900
        %v1097 = vpack.c.b16 %v905, %v901
        %v1098 = vpack.c.b16 %v906, %v902
        %v1099 = vpack.c.b16 %v911, %v907
        %v1100 = vpack.c.b16 %v912, %v908
        %v1101 = vpack.c.b16 %v913, %v909
        %v1102 = vpack.c.b16 %v914, %v910
        %v1103 = vpack.c.b16 %v919, %v915
        %v1104 = vpack.c.b16 %v920, %v916
        %v1105 = vpack.c.b16 %v921, %v917
        %v1106 = vpack.c.b16 %v922, %v918
        %v1107 = vpack.c.b16 %v927, %v923
        %v1108 = vpack.c.b16 %v928, %v924
        %v1109 = vpack.c.b16 %v929, %v925
        %v1110 = vpack.c.b16 %v930, %v926
        %v1111 = vpack.c.b16 %v935, %v931
        %v1112 = vpack.c.b16 %v936, %v932
        %v1113 = vpack.c.b16 %v937, %v933
        %v1114 = vpack.c.b16 %v938, %v934
        %v1115 = vpack.c.b16 %v943, %v939
        %v1116 = vpack.c.b16 %v944, %v940
        %v1117 = vpack.c.b16 %v945, %v941
        %v1118 = vpack.c.b16 %v946, %v942
        %v1119 = vpack.c.b16 %v951, %v947
        %v1120 = vpack.c.b16 %v952, %v948
        %v1121 = vpack.c.b16 %v953, %v949
        %v1122 = vpack.c.b16 %v954, %v950
        %v1123 = vpack.c.b16 %v959, %v955
        %v1124 = vpack.c.b16 %v960, %v956
        %v1125 = vpack.c.b16 %v961, %v957
        %v1126 = vpack.c.b16 %v962, %v958
        %v1127 = vpack.c.b16 %v967, %v963
        %v1128 = vpack.c.b16 %v968, %v964
        %v1129 = vpack.c.b16 %v969, %v965
        %v1130 = vpack.c.b16 %v970, %v966
        %v1131 = vpack.c.b16 %v975, %v971
        %v1132 = vpack.c.b16 %v976, %v972
        %v1133 = vpack.c.b16 %v977, %v973
        %v1134 = vpack.c.b16 %v978, %v974
        %v1135 = vpack.c.b16 %v983, %v979
        %v1136 = vpack.c.b16 %v984, %v980
        %v1137 = vpack.c.b16 %v985, %v981
        %v1138 = vpack.c.b16 %v986, %v982
        %v1139 = vpack.c.b16 %v991, %v987
        %v1140 = vpack.c.b16 %v992, %v988
        %v1141 = vpack.c.b16 %v993, %v989
        %v1142 = vpack.c.b16 %v994, %v990
        %v1143 = vpack.c.b16 %v999, %v995
        %v1144 = vpack.c.b16 %v1000, %v996
        %v1145 = vpack.c.b16 %v1001, %v997
        %v1146 = vpack.c.b16 %v1002, %v998
        %v1147 = vpack.c.b16 %v1007, %v1003
        %v1148 = vpack.c.b16 %v1008, %v1004
        %v1149 = vpack.c.b16 %v1009, %v1005
        %v1150 = vpack.c.b16 %v1010, %v1006
        %v1151 = vpack.c.b16 %v1015, %v1011
        %v1152 = vpack.c.b16 %v1016, %v1012
        %v1153 = vpack.c.b16 %v1017, %v1013
        %v1154 = vpack.c.b16 %v1018, %v1014
        %v1155 = vpack.c.b16 %v1023, %v1019
        %v1156 = vpack.c.b16 %v1024, %v1020
        %v1157 = vpack.c.b16 %v1025, %v1021
        %v1158 = vpack.c.b16 %v1026, %v1022
        %v1159 = vpack.c.b16 %v1031, %v1027
        %v1160 = vpack.c.b16 %v1032, %v1028
        %v1161 = vpack.c.b16 %v1033, %v1029
        %v1162 = vpack.c.b16 %v1034, %v1030
        %1291 = vmatpush.bf16.msra.mxu0 %v1063
        %1292 = vmatpush.bf16.msra.mxu0 %v1059
        %1293 = vmatpush.bf16.msra.mxu0 %v1055
        %1294 = vmatpush.bf16.msra.mxu0 %v1051
        %1295 = vmatpush.bf16.msra.mxu0 %v1047
        %1296 = vmatpush.bf16.msra.mxu0 %v1043
        %1297 = vmatpush.bf16.msra.mxu0 %v1039
        %1298 = vmatpush.bf16.msra.mxu0 %v1035
        %1299 = vmatmul.bf16.gmra.mxu0 %v635
        %v1300 = vpop.f32.mrf.mxu0
        %v1301 = vadd.f32 0.0, %v1300
        %v1302 = vpop.f32.mrf.mxu0
        %v1303 = vadd.f32 0.0, %v1302
        %1304 = vmatmul.bf16.gmra.mxu0 %v639
        %v1305 = vpop.f32.mrf.mxu0
        %v1306 = vadd.f32 0.0, %v1305
        %v1307 = vpop.f32.mrf.mxu0
        %v1308 = vadd.f32 0.0, %v1307
        %1309 = vdwg.mxu0
        %1310 = vmatpush.bf16.msra.mxu0 %v1095
        %1311 = vmatpush.bf16.msra.mxu0 %v1091
        %1312 = vmatpush.bf16.msra.mxu0 %v1087
        %1313 = vmatpush.bf16.msra.mxu0 %v1083
        %1314 = vmatpush.bf16.msra.mxu0 %v1079
        %1315 = vmatpush.bf16.msra.mxu0 %v1075
        %1316 = vmatpush.bf16.msra.mxu0 %v1071
        %1317 = vmatpush.bf16.msra.mxu0 %v1067
        %1318 = vmatmul.bf16.gmra.mxu0 %v636
        %v1319 = vpop.f32.mrf.mxu0
        %v1320 = vadd.f32 %v1301, %v1319
        %v1321 = vpop.f32.mrf.mxu0
        %v1322 = vadd.f32 %v1303, %v1321
        %1323 = vmatmul.bf16.gmra.mxu0 %v640
        %v1324 = vpop.f32.mrf.mxu0
        %v1325 = vadd.f32 %v1306, %v1324
        %v1326 = vpop.f32.mrf.mxu0
        %v1327 = vadd.f32 %v1308, %v1326
        %1328 = vdwg.mxu0
        %1329 = vmatpush.bf16.msra.mxu0 %v1127
        %1330 = vmatpush.bf16.msra.mxu0 %v1123
        %1331 = vmatpush.bf16.msra.mxu0 %v1119
        %1332 = vmatpush.bf16.msra.mxu0 %v1115
        %1333 = vmatpush.bf16.msra.mxu0 %v1111
        %1334 = vmatpush.bf16.msra.mxu0 %v1107
        %1335 = vmatpush.bf16.msra.mxu0 %v1103
        %1336 = vmatpush.bf16.msra.mxu0 %v1099
        %1337 = vmatmul.bf16.gmra.mxu0 %v637
        %v1338 = vpop.f32.mrf.mxu0
        %v1339 = vadd.f32 %v1320, %v1338
        %v1340 = vpop.f32.mrf.mxu0
        %v1341 = vadd.f32 %v1322, %v1340
        %1342 = vmatmul.bf16.gmra.mxu0 %v641
        %v1343 = vpop.f32.mrf.mxu0
        %v1344 = vadd.f32 %v1325, %v1343
        %v1345 = vpop.f32.mrf.mxu0
        %v1346 = vadd.f32 %v1327, %v1345
        %1347 = vdwg.mxu0
        %1348 = vmatpush.bf16.msra.mxu0 %v1159
        %1349 = vmatpush.bf16.msra.mxu0 %v1155
        %1350 = vmatpush.bf16.msra.mxu0 %v1151
        %1351 = vmatpush.bf16.msra.mxu0 %v1147
        %1352 = vmatpush.bf16.msra.mxu0 %v1143
        %1353 = vmatpush.bf16.msra.mxu0 %v1139
        %1354 = vmatpush.bf16.msra.mxu0 %v1135
        %1355 = vmatpush.bf16.msra.mxu0 %v1131
        %1356 = vmatmul.bf16.gmra.mxu0 %v638
        %v1357 = vpop.f32.mrf.mxu0
        %v1358 = vadd.f32 %v1339, %v1357
        %v1359 = vpop.f32.mrf.mxu0
        %v1360 = vadd.f32 %v1341, %v1359
        %1361 = vmatmul.bf16.gmra.mxu0 %v642
        %v1362 = vpop.f32.mrf.mxu0
        %v1363 = vadd.f32 %v1344, %v1362
        %v1364 = vpop.f32.mrf.mxu0
        %v1365 = vadd.f32 %v1346, %v1364
        %1366 = vdwg.mxu0
        %1367 = vmatpush.bf16.msra.mxu0 %v1064
        %1368 = vmatpush.bf16.msra.mxu0 %v1060
        %1369 = vmatpush.bf16.msra.mxu0 %v1056
        %1370 = vmatpush.bf16.msra.mxu0 %v1052
        %1371 = vmatpush.bf16.msra.mxu0 %v1048
        %1372 = vmatpush.bf16.msra.mxu0 %v1044
        %1373 = vmatpush.bf16.msra.mxu0 %v1040
        %1374 = vmatpush.bf16.msra.mxu0 %v1036
        %1375 = vmatmul.bf16.gmra.mxu0 %v635
        %v1376 = vpop.f32.mrf.mxu0
        %v1377 = vadd.f32 0.0, %v1376
        %v1378 = vpop.f32.mrf.mxu0
        %v1379 = vadd.f32 0.0, %v1378
        %1380 = vmatmul.bf16.gmra.mxu0 %v639
        %v1381 = vpop.f32.mrf.mxu0
        %v1382 = vadd.f32 0.0, %v1381
        %v1383 = vpop.f32.mrf.mxu0
        %v1384 = vadd.f32 0.0, %v1383
        %1385 = vdwg.mxu0
        %1386 = vmatpush.bf16.msra.mxu0 %v1096
        %1387 = vmatpush.bf16.msra.mxu0 %v1092
        %1388 = vmatpush.bf16.msra.mxu0 %v1088
        %1389 = vmatpush.bf16.msra.mxu0 %v1084
        %1390 = vmatpush.bf16.msra.mxu0 %v1080
        %1391 = vmatpush.bf16.msra.mxu0 %v1076
        %1392 = vmatpush.bf16.msra.mxu0 %v1072
        %1393 = vmatpush.bf16.msra.mxu0 %v1068
        %1394 = vmatmul.bf16.gmra.mxu0 %v636
        %v1395 = vpop.f32.mrf.mxu0
        %v1396 = vadd.f32 %v1377, %v1395
        %v1397 = vpop.f32.mrf.mxu0
        %v1398 = vadd.f32 %v1379, %v1397
        %1399 = vmatmul.bf16.gmra.mxu0 %v640
        %v1400 = vpop.f32.mrf.mxu0
        %v1401 = vadd.f32 %v1382, %v1400
        %v1402 = vpop.f32.mrf.mxu0
        %v1403 = vadd.f32 %v1384, %v1402
        %1404 = vdwg.mxu0
        %1405 = vmatpush.bf16.msra.mxu0 %v1128
        %1406 = vmatpush.bf16.msra.mxu0 %v1124
        %1407 = vmatpush.bf16.msra.mxu0 %v1120
        %1408 = vmatpush.bf16.msra.mxu0 %v1116
        %1409 = vmatpush.bf16.msra.mxu0 %v1112
        %1410 = vmatpush.bf16.msra.mxu0 %v1108
        %1411 = vmatpush.bf16.msra.mxu0 %v1104
        %1412 = vmatpush.bf16.msra.mxu0 %v1100
        %1413 = vmatmul.bf16.gmra.mxu0 %v637
        %v1414 = vpop.f32.mrf.mxu0
        %v1415 = vadd.f32 %v1396, %v1414
        %v1416 = vpop.f32.mrf.mxu0
        %v1417 = vadd.f32 %v1398, %v1416
        %1418 = vmatmul.bf16.gmra.mxu0 %v641
        %v1419 = vpop.f32.mrf.mxu0
        %v1420 = vadd.f32 %v1401, %v1419
        %v1421 = vpop.f32.mrf.mxu0
        %v1422 = vadd.f32 %v1403, %v1421
        %1423 = vdwg.mxu0
        %1424 = vmatpush.bf16.msra.mxu0 %v1160
        %1425 = vmatpush.bf16.msra.mxu0 %v1156
        %1426 = vmatpush.bf16.msra.mxu0 %v1152
        %1427 = vmatpush.bf16.msra.mxu0 %v1148
        %1428 = vmatpush.bf16.msra.mxu0 %v1144
        %1429 = vmatpush.bf16.msra.mxu0 %v1140
        %1430 = vmatpush.bf16.msra.mxu0 %v1136
        %1431 = vmatpush.bf16.msra.mxu0 %v1132
        %1432 = vmatmul.bf16.gmra.mxu0 %v638
        %v1433 = vpop.f32.mrf.mxu0
        %v1434 = vadd.f32 %v1415, %v1433
        %v1435 = vpop.f32.mrf.mxu0
        %v1436 = vadd.f32 %v1417, %v1435
        %1437 = vmatmul.bf16.gmra.mxu0 %v642
        %v1438 = vpop.f32.mrf.mxu0
        %v1439 = vadd.f32 %v1420, %v1438
        %v1440 = vpop.f32.mrf.mxu0
        %v1441 = vadd.f32 %v1422, %v1440
        %1442 = vdwg.mxu0
        %1443 = vmatpush.bf16.msra.mxu0 %v1065
        %1444 = vmatpush.bf16.msra.mxu0 %v1061
        %1445 = vmatpush.bf16.msra.mxu0 %v1057
        %1446 = vmatpush.bf16.msra.mxu0 %v1053
        %1447 = vmatpush.bf16.msra.mxu0 %v1049
        %1448 = vmatpush.bf16.msra.mxu0 %v1045
        %1449 = vmatpush.bf16.msra.mxu0 %v1041
        %1450 = vmatpush.bf16.msra.mxu0 %v1037
        %1451 = vmatmul.bf16.gmra.mxu0 %v635
        %v1452 = vpop.f32.mrf.mxu0
        %v1453 = vadd.f32 0.0, %v1452
        %v1454 = vpop.f32.mrf.mxu0
        %v1455 = vadd.f32 0.0, %v1454
        %1456 = vmatmul.bf16.gmra.mxu0 %v639
        %v1457 = vpop.f32.mrf.mxu0
        %v1458 = vadd.f32 0.0, %v1457
        %v1459 = vpop.f32.mrf.mxu0
        %v1460 = vadd.f32 0.0, %v1459
        %1461 = vdwg.mxu0
        %1462 = vmatpush.bf16.msra.mxu0 %v1097
        %1463 = vmatpush.bf16.msra.mxu0 %v1093
        %1464 = vmatpush.bf16.msra.mxu0 %v1089
        %1465 = vmatpush.bf16.msra.mxu0 %v1085
        %1466 = vmatpush.bf16.msra.mxu0 %v1081
        %1467 = vmatpush.bf16.msra.mxu0 %v1077
        %1468 = vmatpush.bf16.msra.mxu0 %v1073
        %1469 = vmatpush.bf16.msra.mxu0 %v1069
        %1470 = vmatmul.bf16.gmra.mxu0 %v636
        %v1471 = vpop.f32.mrf.mxu0
        %v1472 = vadd.f32 %v1453, %v1471
        %v1473 = vpop.f32.mrf.mxu0
        %v1474 = vadd.f32 %v1455, %v1473
        %1475 = vmatmul.bf16.gmra.mxu0 %v640
        %v1476 = vpop.f32.mrf.mxu0
        %v1477 = vadd.f32 %v1458, %v1476
        %v1478 = vpop.f32.mrf.mxu0
        %v1479 = vadd.f32 %v1460, %v1478
        %1480 = vdwg.mxu0
        %1481 = vmatpush.bf16.msra.mxu0 %v1129
        %1482 = vmatpush.bf16.msra.mxu0 %v1125
        %1483 = vmatpush.bf16.msra.mxu0 %v1121
        %1484 = vmatpush.bf16.msra.mxu0 %v1117
        %1485 = vmatpush.bf16.msra.mxu0 %v1113
        %1486 = vmatpush.bf16.msra.mxu0 %v1109
        %1487 = vmatpush.bf16.msra.mxu0 %v1105
        %1488 = vmatpush.bf16.msra.mxu0 %v1101
        %1489 = vmatmul.bf16.gmra.mxu0 %v637
        %v1490 = vpop.f32.mrf.mxu0
        %v1491 = vadd.f32 %v1472, %v1490
        %v1492 = vpop.f32.mrf.mxu0
        %v1493 = vadd.f32 %v1474, %v1492
        %1494 = vmatmul.bf16.gmra.mxu0 %v641
        %v1495 = vpop.f32.mrf.mxu0
        %v1496 = vadd.f32 %v1477, %v1495
        %v1497 = vpop.f32.mrf.mxu0
        %v1498 = vadd.f32 %v1479, %v1497
        %1499 = vdwg.mxu0
        %1500 = vmatpush.bf16.msra.mxu0 %v1161
        %1501 = vmatpush.bf16.msra.mxu0 %v1157
        %1502 = vmatpush.bf16.msra.mxu0 %v1153
        %1503 = vmatpush.bf16.msra.mxu0 %v1149
        %1504 = vmatpush.bf16.msra.mxu0 %v1145
        %1505 = vmatpush.bf16.msra.mxu0 %v1141
        %1506 = vmatpush.bf16.msra.mxu0 %v1137
        %1507 = vmatpush.bf16.msra.mxu0 %v1133
        %1508 = vmatmul.bf16.gmra.mxu0 %v638
        %v1509 = vpop.f32.mrf.mxu0
        %v1510 = vadd.f32 %v1491, %v1509
        %v1511 = vpop.f32.mrf.mxu0
        %v1512 = vadd.f32 %v1493, %v1511
        %1513 = vmatmul.bf16.gmra.mxu0 %v642
        %v1514 = vpop.f32.mrf.mxu0
        %v1515 = vadd.f32 %v1496, %v1514
        %v1516 = vpop.f32.mrf.mxu0
        %v1517 = vadd.f32 %v1498, %v1516
        %1518 = vdwg.mxu0
        %1519 = vmatpush.bf16.msra.mxu0 %v1066
        %1520 = vmatpush.bf16.msra.mxu0 %v1062
        %1521 = vmatpush.bf16.msra.mxu0 %v1058
        %1522 = vmatpush.bf16.msra.mxu0 %v1054
        %1523 = vmatpush.bf16.msra.mxu0 %v1050
        %1524 = vmatpush.bf16.msra.mxu0 %v1046
        %1525 = vmatpush.bf16.msra.mxu0 %v1042
        %1526 = vmatpush.bf16.msra.mxu0 %v1038
        %1527 = vmatmul.bf16.gmra.mxu0 %v635
        %v1528 = vpop.f32.mrf.mxu0
        %v1529 = vadd.f32 0.0, %v1528
        %v1530 = vpop.f32.mrf.mxu0
        %v1531 = vadd.f32 0.0, %v1530
        %1532 = vmatmul.bf16.gmra.mxu0 %v639
        %v1533 = vpop.f32.mrf.mxu0
        %v1534 = vadd.f32 0.0, %v1533
        %v1535 = vpop.f32.mrf.mxu0
        %v1536 = vadd.f32 0.0, %v1535
        %1537 = vdwg.mxu0
        %1538 = vmatpush.bf16.msra.mxu0 %v1098
        %1539 = vmatpush.bf16.msra.mxu0 %v1094
        %1540 = vmatpush.bf16.msra.mxu0 %v1090
        %1541 = vmatpush.bf16.msra.mxu0 %v1086
        %1542 = vmatpush.bf16.msra.mxu0 %v1082
        %1543 = vmatpush.bf16.msra.mxu0 %v1078
        %1544 = vmatpush.bf16.msra.mxu0 %v1074
        %1545 = vmatpush.bf16.msra.mxu0 %v1070
        %1546 = vmatmul.bf16.gmra.mxu0 %v636
        %v1547 = vpop.f32.mrf.mxu0
        %v1548 = vadd.f32 %v1529, %v1547
        %v1549 = vpop.f32.mrf.mxu0
        %v1550 = vadd.f32 %v1531, %v1549
        %1551 = vmatmul.bf16.gmra.mxu0 %v640
        %v1552 = vpop.f32.mrf.mxu0
        %v1553 = vadd.f32 %v1534, %v1552
        %v1554 = vpop.f32.mrf.mxu0
        %v1555 = vadd.f32 %v1536, %v1554
        %1556 = vdwg.mxu0
        %1557 = vmatpush.bf16.msra.mxu0 %v1130
        %1558 = vmatpush.bf16.msra.mxu0 %v1126
        %1559 = vmatpush.bf16.msra.mxu0 %v1122
        %1560 = vmatpush.bf16.msra.mxu0 %v1118
        %1561 = vmatpush.bf16.msra.mxu0 %v1114
        %1562 = vmatpush.bf16.msra.mxu0 %v1110
        %1563 = vmatpush.bf16.msra.mxu0 %v1106
        %1564 = vmatpush.bf16.msra.mxu0 %v1102
        %1565 = vmatmul.bf16.gmra.mxu0 %v637
        %v1566 = vpop.f32.mrf.mxu0
        %v1567 = vadd.f32 %v1548, %v1566
        %v1568 = vpop.f32.mrf.mxu0
        %v1569 = vadd.f32 %v1550, %v1568
        %1570 = vmatmul.bf16.gmra.mxu0 %v641
        %v1571 = vpop.f32.mrf.mxu0
        %v1572 = vadd.f32 %v1553, %v1571
        %v1573 = vpop.f32.mrf.mxu0
        %v1574 = vadd.f32 %v1555, %v1573
        %1575 = vdwg.mxu0
        %1576 = vmatpush.bf16.msra.mxu0 %v1162
        %1577 = vmatpush.bf16.msra.mxu0 %v1158
        %1578 = vmatpush.bf16.msra.mxu0 %v1154
        %1579 = vmatpush.bf16.msra.mxu0 %v1150
        %1580 = vmatpush.bf16.msra.mxu0 %v1146
        %1581 = vmatpush.bf16.msra.mxu0 %v1142
        %1582 = vmatpush.bf16.msra.mxu0 %v1138
        %1583 = vmatpush.bf16.msra.mxu0 %v1134
        %1584 = vmatmul.bf16.gmra.mxu0 %v638
        %v1585 = vpop.f32.mrf.mxu0
        %v1586 = vadd.f32 %v1567, %v1585
        %v1587 = vpop.f32.mrf.mxu0
        %v1588 = vadd.f32 %v1569, %v1587
        %1589 = vmatmul.bf16.gmra.mxu0 %v642
        %v1590 = vpop.f32.mrf.mxu0
        %v1591 = vadd.f32 %v1572, %v1590
        %v1592 = vpop.f32.mrf.mxu0
        %v1593 = vadd.f32 %v1574, %v1592
        %1594 = vdwg.mxu0
        %v1603 = vunpack.c.l.b16 %v339
        %v1604 = vunpack.c.h.b16 %v339
        %v1605 = vunpack.c.l.b16 %v340
        %v1606 = vunpack.c.h.b16 %v340
        %v1607 = vunpack.c.l.b16 %v341
        %v1608 = vunpack.c.h.b16 %v341
        %v1609 = vunpack.c.l.b16 %v342
        %v1610 = vunpack.c.h.b16 %v342
        %v1611 = vunpack.c.l.b16 %v343
        %v1612 = vunpack.c.h.b16 %v343
        %v1613 = vunpack.c.l.b16 %v344
        %v1614 = vunpack.c.h.b16 %v344
        %v1615 = vunpack.c.l.b16 %v345
        %v1616 = vunpack.c.h.b16 %v345
        %v1617 = vunpack.c.l.b16 %v346
        %v1618 = vunpack.c.h.b16 %v346
        %v1619 = vpack.c.b16 %v1607, %v1603
        %v1620 = vpack.c.b16 %v1608, %v1604
        %v1621 = vpack.c.b16 %v1609, %v1605
        %v1622 = vpack.c.b16 %v1610, %v1606
        %v1623 = vpack.c.b16 %v1615, %v1611
        %v1624 = vpack.c.b16 %v1616, %v1612
        %v1625 = vpack.c.b16 %v1617, %v1613
        %v1626 = vpack.c.b16 %v1618, %v1614
        %v1763 = vunpack.c.l.b16 %v347
        %v1764 = vunpack.c.h.b16 %v347
        %v1765 = vunpack.c.l.b16 %v348
        %v1766 = vunpack.c.h.b16 %v348
        %v1767 = vunpack.c.l.b16 %v349
        %v1768 = vunpack.c.h.b16 %v349
        %v1769 = vunpack.c.l.b16 %v350
        %v1770 = vunpack.c.h.b16 %v350
        %v1771 = vunpack.c.l.b16 %v351
        %v1772 = vunpack.c.h.b16 %v351
        %v1773 = vunpack.c.l.b16 %v352
        %v1774 = vunpack.c.h.b16 %v352
        %v1775 = vunpack.c.l.b16 %v353
        %v1776 = vunpack.c.h.b16 %v353
        %v1777 = vunpack.c.l.b16 %v354
        %v1778 = vunpack.c.h.b16 %v354
        %v1779 = vunpack.c.l.b16 %v355
        %v1780 = vunpack.c.h.b16 %v355
        %v1781 = vunpack.c.l.b16 %v356
        %v1782 = vunpack.c.h.b16 %v356
        %v1783 = vunpack.c.l.b16 %v357
        %v1784 = vunpack.c.h.b16 %v357
        %v1785 = vunpack.c.l.b16 %v358
        %v1786 = vunpack.c.h.b16 %v358
        %v1787 = vunpack.c.l.b16 %v359
        %v1788 = vunpack.c.h.b16 %v359
        %v1789 = vunpack.c.l.b16 %v360
        %v1790 = vunpack.c.h.b16 %v360
        %v1791 = vunpack.c.l.b16 %v361
        %v1792 = vunpack.c.h.b16 %v361
        %v1793 = vunpack.c.l.b16 %v362
        %v1794 = vunpack.c.h.b16 %v362
        %v1795 = vunpack.c.l.b16 %v363
        %v1796 = vunpack.c.h.b16 %v363
        %v1797 = vunpack.c.l.b16 %v364
        %v1798 = vunpack.c.h.b16 %v364
        %v1799 = vunpack.c.l.b16 %v365
        %v1800 = vunpack.c.h.b16 %v365
        %v1801 = vunpack.c.l.b16 %v366
        %v1802 = vunpack.c.h.b16 %v366
        %v1803 = vunpack.c.l.b16 %v367
        %v1804 = vunpack.c.h.b16 %v367
        %v1805 = vunpack.c.l.b16 %v368
        %v1806 = vunpack.c.h.b16 %v368
        %v1807 = vunpack.c.l.b16 %v369
        %v1808 = vunpack.c.h.b16 %v369
        %v1809 = vunpack.c.l.b16 %v370
        %v1810 = vunpack.c.h.b16 %v370
        %v1811 = vunpack.c.l.b16 %v371
        %v1812 = vunpack.c.h.b16 %v371
        %v1813 = vunpack.c.l.b16 %v372
        %v1814 = vunpack.c.h.b16 %v372
        %v1815 = vunpack.c.l.b16 %v373
        %v1816 = vunpack.c.h.b16 %v373
        %v1817 = vunpack.c.l.b16 %v374
        %v1818 = vunpack.c.h.b16 %v374
        %v1819 = vunpack.c.l.b16 %v375
        %v1820 = vunpack.c.h.b16 %v375
        %v1821 = vunpack.c.l.b16 %v376
        %v1822 = vunpack.c.h.b16 %v376
        %v1823 = vunpack.c.l.b16 %v377
        %v1824 = vunpack.c.h.b16 %v377
        %v1825 = vunpack.c.l.b16 %v378
        %v1826 = vunpack.c.h.b16 %v378
        %v1827 = vunpack.c.l.b16 %v379
        %v1828 = vunpack.c.h.b16 %v379
        %v1829 = vunpack.c.l.b16 %v380
        %v1830 = vunpack.c.h.b16 %v380
        %v1831 = vunpack.c.l.b16 %v381
        %v1832 = vunpack.c.h.b16 %v381
        %v1833 = vunpack.c.l.b16 %v382
        %v1834 = vunpack.c.h.b16 %v382
        %v1835 = vunpack.c.l.b16 %v383
        %v1836 = vunpack.c.h.b16 %v383
        %v1837 = vunpack.c.l.b16 %v384
        %v1838 = vunpack.c.h.b16 %v384
        %v1839 = vunpack.c.l.b16 %v385
        %v1840 = vunpack.c.h.b16 %v385
        %v1841 = vunpack.c.l.b16 %v386
        %v1842 = vunpack.c.h.b16 %v386
        %v1843 = vunpack.c.l.b16 %v387
        %v1844 = vunpack.c.h.b16 %v387
        %v1845 = vunpack.c.l.b16 %v388
        %v1846 = vunpack.c.h.b16 %v388
        %v1847 = vunpack.c.l.b16 %v389
        %v1848 = vunpack.c.h.b16 %v389
        %v1849 = vunpack.c.l.b16 %v390
        %v1850 = vunpack.c.h.b16 %v390
        %v1851 = vunpack.c.l.b16 %v391
        %v1852 = vunpack.c.h.b16 %v391
        %v1853 = vunpack.c.l.b16 %v392
        %v1854 = vunpack.c.h.b16 %v392
        %v1855 = vunpack.c.l.b16 %v393
        %v1856 = vunpack.c.h.b16 %v393
        %v1857 = vunpack.c.l.b16 %v394
        %v1858 = vunpack.c.h.b16 %v394
        %v1859 = vunpack.c.l.b16 %v395
        %v1860 = vunpack.c.h.b16 %v395
        %v1861 = vunpack.c.l.b16 %v396
        %v1862 = vunpack.c.h.b16 %v396
        %v1863 = vunpack.c.l.b16 %v397
        %v1864 = vunpack.c.h.b16 %v397
        %v1865 = vunpack.c.l.b16 %v398
        %v1866 = vunpack.c.h.b16 %v398
        %v1867 = vunpack.c.l.b16 %v399
        %v1868 = vunpack.c.h.b16 %v399
        %v1869 = vunpack.c.l.b16 %v400
        %v1870 = vunpack.c.h.b16 %v400
        %v1871 = vunpack.c.l.b16 %v401
        %v1872 = vunpack.c.h.b16 %v401
        %v1873 = vunpack.c.l.b16 %v402
        %v1874 = vunpack.c.h.b16 %v402
        %v1875 = vunpack.c.l.b16 %v403
        %v1876 = vunpack.c.h.b16 %v403
        %v1877 = vunpack.c.l.b16 %v404
        %v1878 = vunpack.c.h.b16 %v404
        %v1879 = vunpack.c.l.b16 %v405
        %v1880 = vunpack.c.h.b16 %v405
        %v1881 = vunpack.c.l.b16 %v406
        %v1882 = vunpack.c.h.b16 %v406
        %v1883 = vunpack.c.l.b16 %v407
        %v1884 = vunpack.c.h.b16 %v407
        %v1885 = vunpack.c.l.b16 %v408
        %v1886 = vunpack.c.h.b16 %v408
        %v1887 = vunpack.c.l.b16 %v409
        %v1888 = vunpack.c.h.b16 %v409
        %v1889 = vunpack.c.l.b16 %v410
        %v1890 = vunpack.c.h.b16 %v410
        %v1891 = vunpack.c.l.b16 %v411
        %v1892 = vunpack.c.h.b16 %v411
        %v1893 = vunpack.c.l.b16 %v412
        %v1894 = vunpack.c.h.b16 %v412
        %v1895 = vunpack.c.l.b16 %v413
        %v1896 = vunpack.c.h.b16 %v413
        %v1897 = vunpack.c.l.b16 %v414
        %v1898 = vunpack.c.h.b16 %v414
        %v1899 = vunpack.c.l.b16 %v415
        %v1900 = vunpack.c.h.b16 %v415
        %v1901 = vunpack.c.l.b16 %v416
        %v1902 = vunpack.c.h.b16 %v416
        %v1903 = vunpack.c.l.b16 %v417
        %v1904 = vunpack.c.h.b16 %v417
        %v1905 = vunpack.c.l.b16 %v418
        %v1906 = vunpack.c.h.b16 %v418
        %v1907 = vunpack.c.l.b16 %v419
        %v1908 = vunpack.c.h.b16 %v419
        %v1909 = vunpack.c.l.b16 %v420
        %v1910 = vunpack.c.h.b16 %v420
        %v1911 = vunpack.c.l.b16 %v421
        %v1912 = vunpack.c.h.b16 %v421
        %v1913 = vunpack.c.l.b16 %v422
        %v1914 = vunpack.c.h.b16 %v422
        %v1915 = vunpack.c.l.b16 %v423
        %v1916 = vunpack.c.h.b16 %v423
        %v1917 = vunpack.c.l.b16 %v424
        %v1918 = vunpack.c.h.b16 %v424
        %v1919 = vunpack.c.l.b16 %v425
        %v1920 = vunpack.c.h.b16 %v425
        %v1921 = vunpack.c.l.b16 %v426
        %v1922 = vunpack.c.h.b16 %v426
        %v1923 = vunpack.c.l.b16 %v427
        %v1924 = vunpack.c.h.b16 %v427
        %v1925 = vunpack.c.l.b16 %v428
        %v1926 = vunpack.c.h.b16 %v428
        %v1927 = vunpack.c.l.b16 %v429
        %v1928 = vunpack.c.h.b16 %v429
        %v1929 = vunpack.c.l.b16 %v430
        %v1930 = vunpack.c.h.b16 %v430
        %v1931 = vunpack.c.l.b16 %v431
        %v1932 = vunpack.c.h.b16 %v431
        %v1933 = vunpack.c.l.b16 %v432
        %v1934 = vunpack.c.h.b16 %v432
        %v1935 = vunpack.c.l.b16 %v433
        %v1936 = vunpack.c.h.b16 %v433
        %v1937 = vunpack.c.l.b16 %v434
        %v1938 = vunpack.c.h.b16 %v434
        %v1939 = vunpack.c.l.b16 %v435
        %v1940 = vunpack.c.h.b16 %v435
        %v1941 = vunpack.c.l.b16 %v436
        %v1942 = vunpack.c.h.b16 %v436
        %v1943 = vunpack.c.l.b16 %v437
        %v1944 = vunpack.c.h.b16 %v437
        %v1945 = vunpack.c.l.b16 %v438
        %v1946 = vunpack.c.h.b16 %v438
        %v1947 = vunpack.c.l.b16 %v439
        %v1948 = vunpack.c.h.b16 %v439
        %v1949 = vunpack.c.l.b16 %v440
        %v1950 = vunpack.c.h.b16 %v440
        %v1951 = vunpack.c.l.b16 %v441
        %v1952 = vunpack.c.h.b16 %v441
        %v1953 = vunpack.c.l.b16 %v442
        %v1954 = vunpack.c.h.b16 %v442
        %v1955 = vunpack.c.l.b16 %v443
        %v1956 = vunpack.c.h.b16 %v443
        %v1957 = vunpack.c.l.b16 %v444
        %v1958 = vunpack.c.h.b16 %v444
        %v1959 = vunpack.c.l.b16 %v445
        %v1960 = vunpack.c.h.b16 %v445
        %v1961 = vunpack.c.l.b16 %v446
        %v1962 = vunpack.c.h.b16 %v446
        %v1963 = vunpack.c.l.b16 %v447
        %v1964 = vunpack.c.h.b16 %v447
        %v1965 = vunpack.c.l.b16 %v448
        %v1966 = vunpack.c.h.b16 %v448
        %v1967 = vunpack.c.l.b16 %v449
        %v1968 = vunpack.c.h.b16 %v449
        %v1969 = vunpack.c.l.b16 %v450
        %v1970 = vunpack.c.h.b16 %v450
        %v1971 = vunpack.c.l.b16 %v451
        %v1972 = vunpack.c.h.b16 %v451
        %v1973 = vunpack.c.l.b16 %v452
        %v1974 = vunpack.c.h.b16 %v452
        %v1975 = vunpack.c.l.b16 %v453
        %v1976 = vunpack.c.h.b16 %v453
        %v1977 = vunpack.c.l.b16 %v454
        %v1978 = vunpack.c.h.b16 %v454
        %v1979 = vunpack.c.l.b16 %v455
        %v1980 = vunpack.c.h.b16 %v455
        %v1981 = vunpack.c.l.b16 %v456
        %v1982 = vunpack.c.h.b16 %v456
        %v1983 = vunpack.c.l.b16 %v457
        %v1984 = vunpack.c.h.b16 %v457
        %v1985 = vunpack.c.l.b16 %v458
        %v1986 = vunpack.c.h.b16 %v458
        %v1987 = vunpack.c.l.b16 %v459
        %v1988 = vunpack.c.h.b16 %v459
        %v1989 = vunpack.c.l.b16 %v460
        %v1990 = vunpack.c.h.b16 %v460
        %v1991 = vunpack.c.l.b16 %v461
        %v1992 = vunpack.c.h.b16 %v461
        %v1993 = vunpack.c.l.b16 %v462
        %v1994 = vunpack.c.h.b16 %v462
        %v1995 = vunpack.c.l.b16 %v463
        %v1996 = vunpack.c.h.b16 %v463
        %v1997 = vunpack.c.l.b16 %v464
        %v1998 = vunpack.c.h.b16 %v464
        %v1999 = vunpack.c.l.b16 %v465
        %v2000 = vunpack.c.h.b16 %v465
        %v2001 = vunpack.c.l.b16 %v466
        %v2002 = vunpack.c.h.b16 %v466
        %v2003 = vunpack.c.l.b16 %v467
        %v2004 = vunpack.c.h.b16 %v467
        %v2005 = vunpack.c.l.b16 %v468
        %v2006 = vunpack.c.h.b16 %v468
        %v2007 = vunpack.c.l.b16 %v469
        %v2008 = vunpack.c.h.b16 %v469
        %v2009 = vunpack.c.l.b16 %v470
        %v2010 = vunpack.c.h.b16 %v470
        %v2011 = vunpack.c.l.b16 %v471
        %v2012 = vunpack.c.h.b16 %v471
        %v2013 = vunpack.c.l.b16 %v472
        %v2014 = vunpack.c.h.b16 %v472
        %v2015 = vunpack.c.l.b16 %v473
        %v2016 = vunpack.c.h.b16 %v473
        %v2017 = vunpack.c.l.b16 %v474
        %v2018 = vunpack.c.h.b16 %v474
        %v2019 = vpack.c.b16 %v1767, %v1763
        %v2020 = vpack.c.b16 %v1768, %v1764
        %v2021 = vpack.c.b16 %v1769, %v1765
        %v2022 = vpack.c.b16 %v1770, %v1766
        %v2023 = vpack.c.b16 %v1775, %v1771
        %v2024 = vpack.c.b16 %v1776, %v1772
        %v2025 = vpack.c.b16 %v1777, %v1773
        %v2026 = vpack.c.b16 %v1778, %v1774
        %v2027 = vpack.c.b16 %v1783, %v1779
        %v2028 = vpack.c.b16 %v1784, %v1780
        %v2029 = vpack.c.b16 %v1785, %v1781
        %v2030 = vpack.c.b16 %v1786, %v1782
        %v2031 = vpack.c.b16 %v1791, %v1787
        %v2032 = vpack.c.b16 %v1792, %v1788
        %v2033 = vpack.c.b16 %v1793, %v1789
        %v2034 = vpack.c.b16 %v1794, %v1790
        %v2035 = vpack.c.b16 %v1799, %v1795
        %v2036 = vpack.c.b16 %v1800, %v1796
        %v2037 = vpack.c.b16 %v1801, %v1797
        %v2038 = vpack.c.b16 %v1802, %v1798
        %v2039 = vpack.c.b16 %v1807, %v1803
        %v2040 = vpack.c.b16 %v1808, %v1804
        %v2041 = vpack.c.b16 %v1809, %v1805
        %v2042 = vpack.c.b16 %v1810, %v1806
        %v2043 = vpack.c.b16 %v1815, %v1811
        %v2044 = vpack.c.b16 %v1816, %v1812
        %v2045 = vpack.c.b16 %v1817, %v1813
        %v2046 = vpack.c.b16 %v1818, %v1814
        %v2047 = vpack.c.b16 %v1823, %v1819
        %v2048 = vpack.c.b16 %v1824, %v1820
        %v2049 = vpack.c.b16 %v1825, %v1821
        %v2050 = vpack.c.b16 %v1826, %v1822
        %v2051 = vpack.c.b16 %v1831, %v1827
        %v2052 = vpack.c.b16 %v1832, %v1828
        %v2053 = vpack.c.b16 %v1833, %v1829
        %v2054 = vpack.c.b16 %v1834, %v1830
        %v2055 = vpack.c.b16 %v1839, %v1835
        %v2056 = vpack.c.b16 %v1840, %v1836
        %v2057 = vpack.c.b16 %v1841, %v1837
        %v2058 = vpack.c.b16 %v1842, %v1838
        %v2059 = vpack.c.b16 %v1847, %v1843
        %v2060 = vpack.c.b16 %v1848, %v1844
        %v2061 = vpack.c.b16 %v1849, %v1845
        %v2062 = vpack.c.b16 %v1850, %v1846
        %v2063 = vpack.c.b16 %v1855, %v1851
        %v2064 = vpack.c.b16 %v1856, %v1852
        %v2065 = vpack.c.b16 %v1857, %v1853
        %v2066 = vpack.c.b16 %v1858, %v1854
        %v2067 = vpack.c.b16 %v1863, %v1859
        %v2068 = vpack.c.b16 %v1864, %v1860
        %v2069 = vpack.c.b16 %v1865, %v1861
        %v2070 = vpack.c.b16 %v1866, %v1862
        %v2071 = vpack.c.b16 %v1871, %v1867
        %v2072 = vpack.c.b16 %v1872, %v1868
        %v2073 = vpack.c.b16 %v1873, %v1869
        %v2074 = vpack.c.b16 %v1874, %v1870
        %v2075 = vpack.c.b16 %v1879, %v1875
        %v2076 = vpack.c.b16 %v1880, %v1876
        %v2077 = vpack.c.b16 %v1881, %v1877
        %v2078 = vpack.c.b16 %v1882, %v1878
        %v2079 = vpack.c.b16 %v1887, %v1883
        %v2080 = vpack.c.b16 %v1888, %v1884
        %v2081 = vpack.c.b16 %v1889, %v1885
        %v2082 = vpack.c.b16 %v1890, %v1886
        %v2083 = vpack.c.b16 %v1895, %v1891
        %v2084 = vpack.c.b16 %v1896, %v1892
        %v2085 = vpack.c.b16 %v1897, %v1893
        %v2086 = vpack.c.b16 %v1898, %v1894
        %v2087 = vpack.c.b16 %v1903, %v1899
        %v2088 = vpack.c.b16 %v1904, %v1900
        %v2089 = vpack.c.b16 %v1905, %v1901
        %v2090 = vpack.c.b16 %v1906, %v1902
        %v2091 = vpack.c.b16 %v1911, %v1907
        %v2092 = vpack.c.b16 %v1912, %v1908
        %v2093 = vpack.c.b16 %v1913, %v1909
        %v2094 = vpack.c.b16 %v1914, %v1910
        %v2095 = vpack.c.b16 %v1919, %v1915
        %v2096 = vpack.c.b16 %v1920, %v1916
        %v2097 = vpack.c.b16 %v1921, %v1917
        %v2098 = vpack.c.b16 %v1922, %v1918
        %v2099 = vpack.c.b16 %v1927, %v1923
        %v2100 = vpack.c.b16 %v1928, %v1924
        %v2101 = vpack.c.b16 %v1929, %v1925
        %v2102 = vpack.c.b16 %v1930, %v1926
        %v2103 = vpack.c.b16 %v1935, %v1931
        %v2104 = vpack.c.b16 %v1936, %v1932
        %v2105 = vpack.c.b16 %v1937, %v1933
        %v2106 = vpack.c.b16 %v1938, %v1934
        %v2107 = vpack.c.b16 %v1943, %v1939
        %v2108 = vpack.c.b16 %v1944, %v1940
        %v2109 = vpack.c.b16 %v1945, %v1941
        %v2110 = vpack.c.b16 %v1946, %v1942
        %v2111 = vpack.c.b16 %v1951, %v1947
        %v2112 = vpack.c.b16 %v1952, %v1948
        %v2113 = vpack.c.b16 %v1953, %v1949
        %v2114 = vpack.c.b16 %v1954, %v1950
        %v2115 = vpack.c.b16 %v1959, %v1955
        %v2116 = vpack.c.b16 %v1960, %v1956
        %v2117 = vpack.c.b16 %v1961, %v1957
        %v2118 = vpack.c.b16 %v1962, %v1958
        %v2119 = vpack.c.b16 %v1967, %v1963
        %v2120 = vpack.c.b16 %v1968, %v1964
        %v2121 = vpack.c.b16 %v1969, %v1965
        %v2122 = vpack.c.b16 %v1970, %v1966
        %v2123 = vpack.c.b16 %v1975, %v1971
        %v2124 = vpack.c.b16 %v1976, %v1972
        %v2125 = vpack.c.b16 %v1977, %v1973
        %v2126 = vpack.c.b16 %v1978, %v1974
        %v2127 = vpack.c.b16 %v1983, %v1979
        %v2128 = vpack.c.b16 %v1984, %v1980
        %v2129 = vpack.c.b16 %v1985, %v1981
        %v2130 = vpack.c.b16 %v1986, %v1982
        %v2131 = vpack.c.b16 %v1991, %v1987
        %v2132 = vpack.c.b16 %v1992, %v1988
        %v2133 = vpack.c.b16 %v1993, %v1989
        %v2134 = vpack.c.b16 %v1994, %v1990
        %v2135 = vpack.c.b16 %v1999, %v1995
        %v2136 = vpack.c.b16 %v2000, %v1996
        %v2137 = vpack.c.b16 %v2001, %v1997
        %v2138 = vpack.c.b16 %v2002, %v1998
        %v2139 = vpack.c.b16 %v2007, %v2003
        %v2140 = vpack.c.b16 %v2008, %v2004
        %v2141 = vpack.c.b16 %v2009, %v2005
        %v2142 = vpack.c.b16 %v2010, %v2006
        %v2143 = vpack.c.b16 %v2015, %v2011
        %v2144 = vpack.c.b16 %v2016, %v2012
        %v2145 = vpack.c.b16 %v2017, %v2013
        %v2146 = vpack.c.b16 %v2018, %v2014
        %2275 = vmatpush.bf16.msra.mxu0 %v2047
        %2276 = vmatpush.bf16.msra.mxu0 %v2043
        %2277 = vmatpush.bf16.msra.mxu0 %v2039
        %2278 = vmatpush.bf16.msra.mxu0 %v2035
        %2279 = vmatpush.bf16.msra.mxu0 %v2031
        %2280 = vmatpush.bf16.msra.mxu0 %v2027
        %2281 = vmatpush.bf16.msra.mxu0 %v2023
        %2282 = vmatpush.bf16.msra.mxu0 %v2019
        %2283 = vmatmul.bf16.gmra.mxu0 %v1619
        %v2284 = vpop.f32.mrf.mxu0
        %v2285 = vadd.f32 %v1358, %v2284
        %v2286 = vpop.f32.mrf.mxu0
        %v2287 = vadd.f32 %v1360, %v2286
        %2288 = vmatmul.bf16.gmra.mxu0 %v1623
        %v2289 = vpop.f32.mrf.mxu0
        %v2290 = vadd.f32 %v1363, %v2289
        %v2291 = vpop.f32.mrf.mxu0
        %v2292 = vadd.f32 %v1365, %v2291
        %2293 = vdwg.mxu0
        %2294 = vmatpush.bf16.msra.mxu0 %v2079
        %2295 = vmatpush.bf16.msra.mxu0 %v2075
        %2296 = vmatpush.bf16.msra.mxu0 %v2071
        %2297 = vmatpush.bf16.msra.mxu0 %v2067
        %2298 = vmatpush.bf16.msra.mxu0 %v2063
        %2299 = vmatpush.bf16.msra.mxu0 %v2059
        %2300 = vmatpush.bf16.msra.mxu0 %v2055
        %2301 = vmatpush.bf16.msra.mxu0 %v2051
        %2302 = vmatmul.bf16.gmra.mxu0 %v1620
        %v2303 = vpop.f32.mrf.mxu0
        %v2304 = vadd.f32 %v2285, %v2303
        %v2305 = vpop.f32.mrf.mxu0
        %v2306 = vadd.f32 %v2287, %v2305
        %2307 = vmatmul.bf16.gmra.mxu0 %v1624
        %v2308 = vpop.f32.mrf.mxu0
        %v2309 = vadd.f32 %v2290, %v2308
        %v2310 = vpop.f32.mrf.mxu0
        %v2311 = vadd.f32 %v2292, %v2310
        %2312 = vdwg.mxu0
        %2313 = vmatpush.bf16.msra.mxu0 %v2111
        %2314 = vmatpush.bf16.msra.mxu0 %v2107
        %2315 = vmatpush.bf16.msra.mxu0 %v2103
        %2316 = vmatpush.bf16.msra.mxu0 %v2099
        %2317 = vmatpush.bf16.msra.mxu0 %v2095
        %2318 = vmatpush.bf16.msra.mxu0 %v2091
        %2319 = vmatpush.bf16.msra.mxu0 %v2087
        %2320 = vmatpush.bf16.msra.mxu0 %v2083
        %2321 = vmatmul.bf16.gmra.mxu0 %v1621
        %v2322 = vpop.f32.mrf.mxu0
        %v2323 = vadd.f32 %v2304, %v2322
        %v2324 = vpop.f32.mrf.mxu0
        %v2325 = vadd.f32 %v2306, %v2324
        %2326 = vmatmul.bf16.gmra.mxu0 %v1625
        %v2327 = vpop.f32.mrf.mxu0
        %v2328 = vadd.f32 %v2309, %v2327
        %v2329 = vpop.f32.mrf.mxu0
        %v2330 = vadd.f32 %v2311, %v2329
        %2331 = vdwg.mxu0
        %2332 = vmatpush.bf16.msra.mxu0 %v2143
        %2333 = vmatpush.bf16.msra.mxu0 %v2139
        %2334 = vmatpush.bf16.msra.mxu0 %v2135
        %2335 = vmatpush.bf16.msra.mxu0 %v2131
        %2336 = vmatpush.bf16.msra.mxu0 %v2127
        %2337 = vmatpush.bf16.msra.mxu0 %v2123
        %2338 = vmatpush.bf16.msra.mxu0 %v2119
        %2339 = vmatpush.bf16.msra.mxu0 %v2115
        %2340 = vmatmul.bf16.gmra.mxu0 %v1622
        %v2341 = vpop.f32.mrf.mxu0
        %v2342 = vadd.f32 %v2323, %v2341
        %v2343 = vpop.f32.mrf.mxu0
        %v2344 = vadd.f32 %v2325, %v2343
        %2345 = vmatmul.bf16.gmra.mxu0 %v1626
        %v2346 = vpop.f32.mrf.mxu0
        %v2347 = vadd.f32 %v2328, %v2346
        %v2348 = vpop.f32.mrf.mxu0
        %v2349 = vadd.f32 %v2330, %v2348
        %2350 = vdwg.mxu0
        %2351 = vmatpush.bf16.msra.mxu0 %v2048
        %2352 = vmatpush.bf16.msra.mxu0 %v2044
        %2353 = vmatpush.bf16.msra.mxu0 %v2040
        %2354 = vmatpush.bf16.msra.mxu0 %v2036
        %2355 = vmatpush.bf16.msra.mxu0 %v2032
        %2356 = vmatpush.bf16.msra.mxu0 %v2028
        %2357 = vmatpush.bf16.msra.mxu0 %v2024
        %2358 = vmatpush.bf16.msra.mxu0 %v2020
        %2359 = vmatmul.bf16.gmra.mxu0 %v1619
        %v2360 = vpop.f32.mrf.mxu0
        %v2361 = vadd.f32 %v1434, %v2360
        %v2362 = vpop.f32.mrf.mxu0
        %v2363 = vadd.f32 %v1436, %v2362
        %2364 = vmatmul.bf16.gmra.mxu0 %v1623
        %v2365 = vpop.f32.mrf.mxu0
        %v2366 = vadd.f32 %v1439, %v2365
        %v2367 = vpop.f32.mrf.mxu0
        %v2368 = vadd.f32 %v1441, %v2367
        %2369 = vdwg.mxu0
        %2370 = vmatpush.bf16.msra.mxu0 %v2080
        %2371 = vmatpush.bf16.msra.mxu0 %v2076
        %2372 = vmatpush.bf16.msra.mxu0 %v2072
        %2373 = vmatpush.bf16.msra.mxu0 %v2068
        %2374 = vmatpush.bf16.msra.mxu0 %v2064
        %2375 = vmatpush.bf16.msra.mxu0 %v2060
        %2376 = vmatpush.bf16.msra.mxu0 %v2056
        %2377 = vmatpush.bf16.msra.mxu0 %v2052
        %2378 = vmatmul.bf16.gmra.mxu0 %v1620
        %v2379 = vpop.f32.mrf.mxu0
        %v2380 = vadd.f32 %v2361, %v2379
        %v2381 = vpop.f32.mrf.mxu0
        %v2382 = vadd.f32 %v2363, %v2381
        %2383 = vmatmul.bf16.gmra.mxu0 %v1624
        %v2384 = vpop.f32.mrf.mxu0
        %v2385 = vadd.f32 %v2366, %v2384
        %v2386 = vpop.f32.mrf.mxu0
        %v2387 = vadd.f32 %v2368, %v2386
        %2388 = vdwg.mxu0
        %2389 = vmatpush.bf16.msra.mxu0 %v2112
        %2390 = vmatpush.bf16.msra.mxu0 %v2108
        %2391 = vmatpush.bf16.msra.mxu0 %v2104
        %2392 = vmatpush.bf16.msra.mxu0 %v2100
        %2393 = vmatpush.bf16.msra.mxu0 %v2096
        %2394 = vmatpush.bf16.msra.mxu0 %v2092
        %2395 = vmatpush.bf16.msra.mxu0 %v2088
        %2396 = vmatpush.bf16.msra.mxu0 %v2084
        %2397 = vmatmul.bf16.gmra.mxu0 %v1621
        %v2398 = vpop.f32.mrf.mxu0
        %v2399 = vadd.f32 %v2380, %v2398
        %v2400 = vpop.f32.mrf.mxu0
        %v2401 = vadd.f32 %v2382, %v2400
        %2402 = vmatmul.bf16.gmra.mxu0 %v1625
        %v2403 = vpop.f32.mrf.mxu0
        %v2404 = vadd.f32 %v2385, %v2403
        %v2405 = vpop.f32.mrf.mxu0
        %v2406 = vadd.f32 %v2387, %v2405
        %2407 = vdwg.mxu0
        %2408 = vmatpush.bf16.msra.mxu0 %v2144
        %2409 = vmatpush.bf16.msra.mxu0 %v2140
        %2410 = vmatpush.bf16.msra.mxu0 %v2136
        %2411 = vmatpush.bf16.msra.mxu0 %v2132
        %2412 = vmatpush.bf16.msra.mxu0 %v2128
        %2413 = vmatpush.bf16.msra.mxu0 %v2124
        %2414 = vmatpush.bf16.msra.mxu0 %v2120
        %2415 = vmatpush.bf16.msra.mxu0 %v2116
        %2416 = vmatmul.bf16.gmra.mxu0 %v1622
        %v2417 = vpop.f32.mrf.mxu0
        %v2418 = vadd.f32 %v2399, %v2417
        %v2419 = vpop.f32.mrf.mxu0
        %v2420 = vadd.f32 %v2401, %v2419
        %2421 = vmatmul.bf16.gmra.mxu0 %v1626
        %v2422 = vpop.f32.mrf.mxu0
        %v2423 = vadd.f32 %v2404, %v2422
        %v2424 = vpop.f32.mrf.mxu0
        %v2425 = vadd.f32 %v2406, %v2424
        %2426 = vdwg.mxu0
        %2427 = vmatpush.bf16.msra.mxu0 %v2049
        %2428 = vmatpush.bf16.msra.mxu0 %v2045
        %2429 = vmatpush.bf16.msra.mxu0 %v2041
        %2430 = vmatpush.bf16.msra.mxu0 %v2037
        %2431 = vmatpush.bf16.msra.mxu0 %v2033
        %2432 = vmatpush.bf16.msra.mxu0 %v2029
        %2433 = vmatpush.bf16.msra.mxu0 %v2025
        %2434 = vmatpush.bf16.msra.mxu0 %v2021
        %2435 = vmatmul.bf16.gmra.mxu0 %v1619
        %v2436 = vpop.f32.mrf.mxu0
        %v2437 = vadd.f32 %v1510, %v2436
        %v2438 = vpop.f32.mrf.mxu0
        %v2439 = vadd.f32 %v1512, %v2438
        %2440 = vmatmul.bf16.gmra.mxu0 %v1623
        %v2441 = vpop.f32.mrf.mxu0
        %v2442 = vadd.f32 %v1515, %v2441
        %v2443 = vpop.f32.mrf.mxu0
        %v2444 = vadd.f32 %v1517, %v2443
        %2445 = vdwg.mxu0
        %2446 = vmatpush.bf16.msra.mxu0 %v2081
        %2447 = vmatpush.bf16.msra.mxu0 %v2077
        %2448 = vmatpush.bf16.msra.mxu0 %v2073
        %2449 = vmatpush.bf16.msra.mxu0 %v2069
        %2450 = vmatpush.bf16.msra.mxu0 %v2065
        %2451 = vmatpush.bf16.msra.mxu0 %v2061
        %2452 = vmatpush.bf16.msra.mxu0 %v2057
        %2453 = vmatpush.bf16.msra.mxu0 %v2053
        %2454 = vmatmul.bf16.gmra.mxu0 %v1620
        %v2455 = vpop.f32.mrf.mxu0
        %v2456 = vadd.f32 %v2437, %v2455
        %v2457 = vpop.f32.mrf.mxu0
        %v2458 = vadd.f32 %v2439, %v2457
        %2459 = vmatmul.bf16.gmra.mxu0 %v1624
        %v2460 = vpop.f32.mrf.mxu0
        %v2461 = vadd.f32 %v2442, %v2460
        %v2462 = vpop.f32.mrf.mxu0
        %v2463 = vadd.f32 %v2444, %v2462
        %2464 = vdwg.mxu0
        %2465 = vmatpush.bf16.msra.mxu0 %v2113
        %2466 = vmatpush.bf16.msra.mxu0 %v2109
        %2467 = vmatpush.bf16.msra.mxu0 %v2105
        %2468 = vmatpush.bf16.msra.mxu0 %v2101
        %2469 = vmatpush.bf16.msra.mxu0 %v2097
        %2470 = vmatpush.bf16.msra.mxu0 %v2093
        %2471 = vmatpush.bf16.msra.mxu0 %v2089
        %2472 = vmatpush.bf16.msra.mxu0 %v2085
        %2473 = vmatmul.bf16.gmra.mxu0 %v1621
        %v2474 = vpop.f32.mrf.mxu0
        %v2475 = vadd.f32 %v2456, %v2474
        %v2476 = vpop.f32.mrf.mxu0
        %v2477 = vadd.f32 %v2458, %v2476
        %2478 = vmatmul.bf16.gmra.mxu0 %v1625
        %v2479 = vpop.f32.mrf.mxu0
        %v2480 = vadd.f32 %v2461, %v2479
        %v2481 = vpop.f32.mrf.mxu0
        %v2482 = vadd.f32 %v2463, %v2481
        %2483 = vdwg.mxu0
        %2484 = vmatpush.bf16.msra.mxu0 %v2145
        %2485 = vmatpush.bf16.msra.mxu0 %v2141
        %2486 = vmatpush.bf16.msra.mxu0 %v2137
        %2487 = vmatpush.bf16.msra.mxu0 %v2133
        %2488 = vmatpush.bf16.msra.mxu0 %v2129
        %2489 = vmatpush.bf16.msra.mxu0 %v2125
        %2490 = vmatpush.bf16.msra.mxu0 %v2121
        %2491 = vmatpush.bf16.msra.mxu0 %v2117
        %2492 = vmatmul.bf16.gmra.mxu0 %v1622
        %v2493 = vpop.f32.mrf.mxu0
        %v2494 = vadd.f32 %v2475, %v2493
        %v2495 = vpop.f32.mrf.mxu0
        %v2496 = vadd.f32 %v2477, %v2495
        %2497 = vmatmul.bf16.gmra.mxu0 %v1626
        %v2498 = vpop.f32.mrf.mxu0
        %v2499 = vadd.f32 %v2480, %v2498
        %v2500 = vpop.f32.mrf.mxu0
        %v2501 = vadd.f32 %v2482, %v2500
        %2502 = vdwg.mxu0
        %2503 = vmatpush.bf16.msra.mxu0 %v2050
        %2504 = vmatpush.bf16.msra.mxu0 %v2046
        %2505 = vmatpush.bf16.msra.mxu0 %v2042
        %2506 = vmatpush.bf16.msra.mxu0 %v2038
        %2507 = vmatpush.bf16.msra.mxu0 %v2034
        %2508 = vmatpush.bf16.msra.mxu0 %v2030
        %2509 = vmatpush.bf16.msra.mxu0 %v2026
        %2510 = vmatpush.bf16.msra.mxu0 %v2022
        %2511 = vmatmul.bf16.gmra.mxu0 %v1619
        %v2512 = vpop.f32.mrf.mxu0
        %v2513 = vadd.f32 %v1586, %v2512
        %v2514 = vpop.f32.mrf.mxu0
        %v2515 = vadd.f32 %v1588, %v2514
        %2516 = vmatmul.bf16.gmra.mxu0 %v1623
        %v2517 = vpop.f32.mrf.mxu0
        %v2518 = vadd.f32 %v1591, %v2517
        %v2519 = vpop.f32.mrf.mxu0
        %v2520 = vadd.f32 %v1593, %v2519
        %2521 = vdwg.mxu0
        %2522 = vmatpush.bf16.msra.mxu0 %v2082
        %2523 = vmatpush.bf16.msra.mxu0 %v2078
        %2524 = vmatpush.bf16.msra.mxu0 %v2074
        %2525 = vmatpush.bf16.msra.mxu0 %v2070
        %2526 = vmatpush.bf16.msra.mxu0 %v2066
        %2527 = vmatpush.bf16.msra.mxu0 %v2062
        %2528 = vmatpush.bf16.msra.mxu0 %v2058
        %2529 = vmatpush.bf16.msra.mxu0 %v2054
        %2530 = vmatmul.bf16.gmra.mxu0 %v1620
        %v2531 = vpop.f32.mrf.mxu0
        %v2532 = vadd.f32 %v2513, %v2531
        %v2533 = vpop.f32.mrf.mxu0
        %v2534 = vadd.f32 %v2515, %v2533
        %2535 = vmatmul.bf16.gmra.mxu0 %v1624
        %v2536 = vpop.f32.mrf.mxu0
        %v2537 = vadd.f32 %v2518, %v2536
        %v2538 = vpop.f32.mrf.mxu0
        %v2539 = vadd.f32 %v2520, %v2538
        %2540 = vdwg.mxu0
        %2541 = vmatpush.bf16.msra.mxu0 %v2114
        %2542 = vmatpush.bf16.msra.mxu0 %v2110
        %2543 = vmatpush.bf16.msra.mxu0 %v2106
        %2544 = vmatpush.bf16.msra.mxu0 %v2102
        %2545 = vmatpush.bf16.msra.mxu0 %v2098
        %2546 = vmatpush.bf16.msra.mxu0 %v2094
        %2547 = vmatpush.bf16.msra.mxu0 %v2090
        %2548 = vmatpush.bf16.msra.mxu0 %v2086
        %2549 = vmatmul.bf16.gmra.mxu0 %v1621
        %v2550 = vpop.f32.mrf.mxu0
        %v2551 = vadd.f32 %v2532, %v2550
        %v2552 = vpop.f32.mrf.mxu0
        %v2553 = vadd.f32 %v2534, %v2552
        %2554 = vmatmul.bf16.gmra.mxu0 %v1625
        %v2555 = vpop.f32.mrf.mxu0
        %v2556 = vadd.f32 %v2537, %v2555
        %v2557 = vpop.f32.mrf.mxu0
        %v2558 = vadd.f32 %v2539, %v2557
        %2559 = vdwg.mxu0
        %2560 = vmatpush.bf16.msra.mxu0 %v2146
        %2561 = vmatpush.bf16.msra.mxu0 %v2142
        %2562 = vmatpush.bf16.msra.mxu0 %v2138
        %2563 = vmatpush.bf16.msra.mxu0 %v2134
        %2564 = vmatpush.bf16.msra.mxu0 %v2130
        %2565 = vmatpush.bf16.msra.mxu0 %v2126
        %2566 = vmatpush.bf16.msra.mxu0 %v2122
        %2567 = vmatpush.bf16.msra.mxu0 %v2118
        %2568 = vmatmul.bf16.gmra.mxu0 %v1622
        %v2569 = vpop.f32.mrf.mxu0
        %v2570 = vadd.f32 %v2551, %v2569
        %v2571 = vpop.f32.mrf.mxu0
        %v2572 = vadd.f32 %v2553, %v2571
        %2573 = vmatmul.bf16.gmra.mxu0 %v1626
        %v2574 = vpop.f32.mrf.mxu0
        %v2575 = vadd.f32 %v2556, %v2574
        %v2576 = vpop.f32.mrf.mxu0
        %v2577 = vadd.f32 %v2558, %v2576
        %2578 = vdwg.mxu0
        %v2579 = vld [vmem:[#allocation10] sm:$0xf]
        %v2581 = vperm.slane %v2579, 0
        %v2582 = vperm.slane %v2579, 1
        %v2583 = vperm.slane %v2579, 2
        %v2584 = vperm.slane %v2579, 3
        %v2589 = vadd.f32 %v2342, %v2581
        %v2590 = vadd.f32 %v2418, %v2582
        %v2591 = vadd.f32 %v2494, %v2583
        %v2592 = vadd.f32 %v2570, %v2584
        %v2593 = vadd.f32 %v2344, %v2581
        %v2594 = vadd.f32 %v2420, %v2582
        %v2595 = vadd.f32 %v2496, %v2583
        %v2596 = vadd.f32 %v2572, %v2584
        %v2597 = vadd.f32 %v2347, %v2581
        %v2598 = vadd.f32 %v2423, %v2582
        %v2599 = vadd.f32 %v2499, %v2583
        %v2600 = vadd.f32 %v2575, %v2584
        %v2601 = vadd.f32 %v2349, %v2581
        %v2602 = vadd.f32 %v2425, %v2582
        %v2603 = vadd.f32 %v2501, %v2583
        %v2604 = vadd.f32 %v2577, %v2584
        %v2605 = vmax.f32 %v2589, 0.0
        %v2606 = vmax.f32 %v2590, 0.0
        %v2607 = vmax.f32 %v2591, 0.0
        %v2608 = vmax.f32 %v2592, 0.0
        %v2609 = vmax.f32 %v2593, 0.0
        %v2610 = vmax.f32 %v2594, 0.0
        %v2611 = vmax.f32 %v2595, 0.0
        %v2612 = vmax.f32 %v2596, 0.0
        %v2613 = vmax.f32 %v2597, 0.0
        %v2614 = vmax.f32 %v2598, 0.0
        %v2615 = vmax.f32 %v2599, 0.0
        %v2616 = vmax.f32 %v2600, 0.0
        %v2617 = vmax.f32 %v2601, 0.0
        %v2618 = vmax.f32 %v2602, 0.0
        %v2619 = vmax.f32 %v2603, 0.0
        %v2620 = vmax.f32 %v2604, 0.0
        %2621 = vst [vmem:[%s335] sm:$0xff] %v2605
        %2622 = vst [vmem:[%s335 + $0x8] sm:$0xff] %v2606
        %2623 = vst [vmem:[%s335 + $0x10] sm:$0xff] %v2607
        %2624 = vst [vmem:[%s335 + $0x18] sm:$0xff] %v2608
        %2625 = vst [vmem:[%s335 + $0x20] sm:$0xff] %v2609
        %2626 = vst [vmem:[%s335 + $0x28] sm:$0xff] %v2610
        %2627 = vst [vmem:[%s335 + $0x30] sm:$0xff] %v2611
        %2628 = vst [vmem:[%s335 + $0x38] sm:$0xff] %v2612
        %2629 = vst [vmem:[%s335 + $0x40] sm:$0xff] %v2613
        %2630 = vst [vmem:[%s335 + $0x48] sm:$0xff] %v2614
        %2631 = vst [vmem:[%s335 + $0x50] sm:$0xff] %v2615
        %2632 = vst [vmem:[%s335 + $0x58] sm:$0xff] %v2616
        %2633 = vst [vmem:[%s335 + $0x60] sm:$0xff] %v2617
        %2634 = vst [vmem:[%s335 + $0x68] sm:$0xff] %v2618
        %2635 = vst [vmem:[%s335 + $0x70] sm:$0xff] %v2619
        %2636 = vst [vmem:[%s335 + $0x78] sm:$0xff] %v2620
        %s2637 = sand.u32 %s149, 1
        %s2638 = scalar_lea.sflag [#allocation4], %s2637
        %s2639 = sand.u32 %s149, 1
        %s2640 = smul.addr %s2639, 128
        %s2641 = scalar_lea.vmem [#allocation11], %s2640
        // Predicated region
        $region61: #{tpu_custom_call.1} parent=39 // pred_check
          %p2642 = pneg %p159
        $region62: #{tpu_custom_call.1} parent=39 // pred_check_branch
          %2644 = sbr.rel (%p2642) target = $region64
        $region63: #{tpu_custom_call.1} parent=39 // pred_region
          %s2645 = smul.u32 4, %s26
          %2647 = vsyncadd %s2638, 0
          %s2648 = smul.addr %s2645, 4
          %s2649 = smul.addr %s2648, 8
          %s2650 = scalar_lea.hbm %s5, %s2649
          %s2651 = sshll.u32 %s2641, 4
          %s2652 = int_to_ptr.vmem [resolvable:$true] %s2651
          %s2653 = sshll.u32 %s2650, 4
          %s2654 = int_to_ptr.hbm [resolvable:$true] %s2653
          %2659 = dma.vmem_to_hbm [thread:$0]  %s2652, 2048, %s2654, %s2638, 512, 512, 32
        $region64: #{tpu_custom_call.1} parent=39 // pred_fallthru
          _
      $region40: #{tpu_custom_call.1} parent=5 // pred_fallthru
        _
      %p2660 = scmp.le.s32.totalorder 2, %s21
      // Predicated region
      $region65: #{tpu_custom_call.1} parent=5 // pred_check
        %p2661 = pneg %p2660
      $region66: #{tpu_custom_call.1} parent=5 // pred_check_branch
        %2663 = sbr.rel (%p2661) target = $region68
      $region67: #{tpu_custom_call.1} parent=5 // pred_region
        %s2664 = ssub.s32 %s21, 2
        // Predicated region
        $region69: #{tpu_custom_call.1} parent=67 // pred_check
          %p2665 = pneg %p165
        $region70: #{tpu_custom_call.1} parent=67 // pred_check_branch
          %2667 = sbr.rel (%p2665) target = $region72
        $region71: #{tpu_custom_call.1} parent=67 // pred_region
          %s2668 = sand.u32 %s150, 1
          %s2669 = scalar_lea.sflag [#allocation4], %s2668
          %s2670 = sand.u32 %s150, 1
          %s2671 = smul.addr %s2670, 128
          %s2672 = scalar_lea.vmem [#allocation11], %s2671
          %2674 = dma.done %s2669, 2048
        $region72: #{tpu_custom_call.1} parent=67 // pred_fallthru
          _
      $region68: #{tpu_custom_call.1} parent=5 // pred_fallthru
        _
    $region6: #{tpu_custom_call.1} parent=1 // loop_footer
      %s25 = sadd.s32 1, %s21
    $region7: #{tpu_custom_call.1} parent=1 // loop_footer_branch
      %20 = sbr.rel target = $region3
    $region8: #{tpu_custom_call.1} parent=1 // loop_exit
      _
    %2675 = vsyncpa [#allocation3], 1
    %s2676 = scalar_lea.sflag [#allocation3], 1
    %2677 = vsyncpa %s2676, 1
    %2678 = vsyncpa [#allocation6], 1
    %s2679 = scalar_lea.sflag [#allocation6], 1
    %2680 = vsyncpa %s2679, 1
    %2681 = vsyncpa [#allocation9], 1
    %2682 = vsyncpa [#allocation4], 1
    %s2683 = scalar_lea.sflag [#allocation4], 1
    %2684 = vsyncpa %s2683, 1

</llo_original>
